<compile_context>
chip_gen: v7x
topology: tpu7x:2x2x1
jax: 0.10.0
libtpu: 0.0.40
codegen_flags: <defaults>
</compile_context>

<pallas_src>
import functools

import jax
import jax.numpy as jnp
from jax.experimental import pallas as pl
from jax.experimental.pallas import tpu as pltpu


# ---------------------------------------------------------------------------
# Kernel
# ---------------------------------------------------------------------------
def _mhsa_kernel(x_ref, wqkv_ref, bqkv_ref, wo_ref, bo_ref, *out_refs,
                 bt, n, d, heads, head_dim, inv_scale):
    out_ref = out_refs[0]
    attn_ref = out_refs[1] if len(out_refs) > 1 else None

    hdt = heads * head_dim
    m = bt * n                                       # rows per grid step

    x = x_ref[...]                                   # (m, d), bf16

    # Fused Q/K/V projection: one MXU matmul, bf16 operands, f32 accumulation.
    qkv = jnp.dot(x, wqkv_ref[...], preferred_element_type=jnp.float32)
    qkv = qkv + bqkv_ref[...]                        # (m, 3*hdt), f32

    q = qkv[:, 0 * hdt:1 * hdt] * inv_scale          # scale q, not the NxN scores
    k = qkv[:, 1 * hdt:2 * hdt]
    v = qkv[:, 2 * hdt:3 * hdt]

    def split_heads(t):
        # (m, hdt) -> (bt*heads, n, head_dim) with ONE reshape + ONE axis swap
        # (replaces `heads` lane-axis slices + concatenates per tensor).
        t = t.reshape(bt, n, heads, head_dim)
        return jnp.swapaxes(t, 1, 2).reshape(bt * heads, n, head_dim)

    qh = split_heads(q).astype(jnp.bfloat16)
    kh = split_heads(k).astype(jnp.bfloat16)
    vh = split_heads(v).astype(jnp.bfloat16)

    # Scores + softmax, batched over (bt*heads): bf16 into the MXU, f32 out;
    # all softmax math stays in f32.
    s = jnp.einsum('bqd,bkd->bqk', qh, kh,
                   preferred_element_type=jnp.float32)       # (bt*heads, n, n)
    s = s - jnp.max(s, axis=-1, keepdims=True)
    e = jnp.exp(s)
    denom = jnp.sum(e, axis=-1, keepdims=True)               # (bt*heads, n, 1)
    # Exact reciprocal on the tiny row-sum tensor: attention rows sum to 1 in
    # f32 (addresses the approx-reciprocal correctness concern at ~zero cost).
    p = e * (1.0 / denom)

    if attn_ref is not None:
        # Batch-major layout matches (B, heads, N, N) directly: no wrapper-side
        # transpose over the dominant HBM tensor.
        attn_ref[...] = p.reshape(bt, heads, n, n).astype(attn_ref.dtype)

    ctx = jnp.einsum('bqk,bkd->bqd', p.astype(jnp.bfloat16), vh,
                     preferred_element_type=jnp.float32)     # (bt*heads, n, hd)

    # Merge heads back onto the lane axis and do ONE full-K output projection
    # (K = D) instead of `heads` underfilled K=head_dim matmuls + serial adds.
    ctx = jnp.swapaxes(ctx.reshape(bt, heads, n, head_dim), 1, 2).reshape(m, hdt)
    out = jnp.dot(ctx.astype(jnp.bfloat16), wo_ref[...],
                  preferred_element_type=jnp.float32) + bo_ref[...]
    out_ref[...] = out.astype(out_ref.dtype)


# ---------------------------------------------------------------------------
# Tiling / VMEM model
# ---------------------------------------------------------------------------
def _estimate_vmem_bytes(bt, n, d, heads, attn_itemsize):
    """Rough per-grid-step VMEM footprint (blocks + live f32 intermediates)."""
    m = bt * n
    hb = bt * heads
    head_dim = d // heads
    x_blk = 2 * m * d * 2                        # double-buffered bf16 input block
    out_blk = 2 * m * d * 4                      # double-buffered f32 output block
    attn_blk = 2 * hb * n * n * attn_itemsize    # double-buffered attn out block
    live = (m * 3 * d * 4                        # qkv (f32)
            + 3 * hb * n * n * 4                 # s / e / p (f32)
            + hb * n * head_dim * 4              # ctx (f32)
            + m * d * 4)                         # out accumulator (f32)
    weights = (d * 3 * d + d * d) * 2 + (3 * d + d) * 4   # single-buffered
    return x_blk + out_blk + attn_blk + live + weights


def _pick_batch_tile(batch, seq, d, heads, attn_itemsize, *,
                     vmem_budget_bytes, min_grid_steps=2):
    """Largest batch chunk whose VMEM estimate fits the budget, then prefer
    >= min_grid_steps grid steps (v7x dual TensorCore + DMA/compute overlap)."""
    def valid(bt):
        # (sublane, lane) rule on the (bt*seq, D) bf16 x-block: second-to-last
        # dim a multiple of 16 (bf16 sublane packing) unless the block spans
        # the full batch*seq extent.
        return batch % bt == 0 and ((bt * seq) % 16 == 0 or bt == batch)

    cands = [bt for bt in range(1, batch + 1) if valid(bt)]
    fitting = [bt for bt in cands
               if _estimate_vmem_bytes(bt, seq, d, heads, attn_itemsize)
               <= vmem_budget_bytes]
    bt = max(fitting) if fitting else min(cands)
    while batch // bt < min_grid_steps:
        smaller = [c for c in cands if c < bt]
        if not smaller:
            break
        bt = max(smaller)
    return bt


# ---------------------------------------------------------------------------
# Wrapper
# ---------------------------------------------------------------------------
def pack_params(params, heads):
    """Hoisted, one-time weight fusion (QKV concat + bf16 cast)."""
    D = params["wq"].shape[0]
    head_dim = D // heads
    hdt = heads * head_dim
    wqkv = jnp.concatenate(
        [params["wq"].reshape(D, hdt), params["wk"].reshape(D, hdt),
         params["wv"].reshape(D, hdt)], axis=1).astype(jnp.bfloat16)       # (D, 3*hdt)
    bqkv = jnp.concatenate(
        [params["bq"].reshape(1, hdt), params["bk"].reshape(1, hdt),
         params["bv"].reshape(1, hdt)], axis=1).astype(jnp.float32)        # (1, 3*hdt)
    wo = params["wo"].reshape(hdt, D).astype(jnp.bfloat16)                 # (hdt, D)
    bo = params["bo"].reshape(1, D).astype(jnp.float32)                    # (1, D)
    return {"wqkv": wqkv, "bqkv": bqkv, "wo": wo, "bo": bo,
            "heads": heads, "head_dim": head_dim, "dim": D}


def self_attention_pallas(x, packed, *, attn_dtype=jnp.bfloat16, return_attn=True):
    """x: (B, N, D) f32.  Returns (out (B,N,D), attn (B,heads,N,N)) or out only."""
    B, N, D = x.shape
    heads = packed["heads"]
    head_dim = packed["head_dim"]
    hdt = heads * head_dim
    inv_scale = 1.0 / (float(head_dim) ** 0.5)
    attn_itemsize = jnp.dtype(attn_dtype).itemsize if return_attn else 0

    # VMEM limit from the actual chip: 3/4 of physical, capped at 96 MiB
    # (v5e/v6e: 128 MiB physical; v7x: only 64 MiB).
    try:
        info = pltpu.get_tpu_info()
        physical_vmem = int(getattr(info, "vmem_capacity_bytes", 0)) or (64 << 20)
    except Exception:
        physical_vmem = 64 << 20                    # v7x-safe assumption
    vmem_limit = min((physical_vmem * 3) // 4, 96 << 20)
    vmem_budget = max(vmem_limit - (8 << 20), vmem_limit // 2)

    bt = _pick_batch_tile(B, N, D, heads, attn_itemsize,
                          vmem_budget_bytes=vmem_budget)
    grid = (B // bt,)

    x2 = x.reshape(B * N, D).astype(jnp.bfloat16)   # fold batch into matmul M

    kernel = functools.partial(_mhsa_kernel, bt=bt, n=N, d=D, heads=heads,
                               head_dim=head_dim, inv_scale=inv_scale)

    out_struct = jax.ShapeDtypeStruct((B * N, D), jnp.float32)
    out_spec = pl.BlockSpec((bt * N, D), lambda g: (g, 0))
    if return_attn:
        # attn written straight in (B, heads, N, N); last two dims are the full
        # array extents so the store is as lane-dense as the shape allows.
        # TODO(synk): for ViT-scale N not a multiple of 128, optionally pad the
        # key dim to 128 (mask padded keys) to avoid masked partial stores.
        out_shape = (out_struct,
                     jax.ShapeDtypeStruct((B, heads, N, N), attn_dtype))
        out_specs = (out_spec,
                     pl.BlockSpec((bt, heads, N, N), lambda g: (g, 0, 0, 0)))
    else:
        out_shape = out_struct
        out_specs = out_spec

    flops = (2 * B * N * D * 3 * hdt                # fused QKV projection
             + 4 * B * heads * N * N * head_dim     # scores + context
             + 2 * B * N * hdt * D)                 # output projection
    bytes_accessed = (B * N * D * 2 + B * N * D * 4
                      + B * heads * N * N * attn_itemsize
                      + (D * 3 * hdt + hdt * D) * 2 + (3 * hdt + D) * 4)
    cost = pl.CostEstimate(flops=int(flops),
                           transcendentals=int(B * heads * N * N),
                           bytes_accessed=int(bytes_accessed))

    def build(single_buffer_weights):
        def wspec(shape):
            idx = lambda g: (0,) * len(shape)
            if single_buffer_weights:
                # Constant index_map -> resident weights; single-buffer them to
                # free VMEM (matters most on v7x's 64 MiB).
                return pl.BlockSpec(shape, idx, pipeline_mode=pl.Buffered(1))
            return pl.BlockSpec(shape, idx)

        return pl.pallas_call(
            kernel,
            out_shape=out_shape,
            grid_spec=pltpu.PrefetchScalarGridSpec(
                num_scalar_prefetch=0,
                grid=grid,
                in_specs=[
                    pl.BlockSpec((bt * N, D), lambda g: (g, 0)),   # x   (bf16)
                    wspec((D, 3 * hdt)),                           # wqkv (bf16)
                    wspec((1, 3 * hdt)),                           # bqkv (f32)
                    wspec((hdt, D)),                               # wo   (bf16)
                    wspec((1, D)),                                 # bo   (f32)
                ],
                out_specs=out_specs,
            ),
            compiler_params=pltpu.CompilerParams(
                dimension_semantics=("parallel",),
                vmem_limit_bytes=int(vmem_limit)),
            cost_estimate=cost,
        )

    args = (x2, packed["wqkv"], packed["bqkv"], packed["wo"], packed["bo"])
    try:
        results = build(single_buffer_weights=True)(*args)
    except Exception:
        # Fallback if this JAX/Mosaic build rejects pl.Buffered(1) on a
        # grid-pipelined BlockSpec: default double-buffered weights.
        results = build(single_buffer_weights=False)(*args)

    if return_attn:
        out2, attn = results
        return out2.reshape(B, N, D).astype(x.dtype), attn
    out2 = results
    return out2.reshape(B, N, D).astype(x.dtype)


# ---------------------------------------------------------------------------
# Pure-JAX reference & init
# ---------------------------------------------------------------------------
def self_attention_ref(x, params, heads):
    """Pure-JAX f32 reference mirroring the PyTorch forward exactly."""
    B, N, D = x.shape
    head_dim = D // heads
    scale = float(head_dim) ** 0.5

    q = jnp.tensordot(x, params["wq"], axes=([2], [0])) + params["bq"]  # (B,N,H,hd)
    k = jnp.tensordot(x, params["wk"], axes=([2], [0])) + params["bk"]
    v = jnp.tensordot(x, params["wv"], axes=([2], [0])) + params["bv"]

    q = q.transpose(0, 2, 1, 3)   # (B,H,N,hd)
    k = k.transpose(0, 2, 1, 3)
    v = v.transpose(0, 2, 1, 3)

    attn = jnp.matmul(q, k.transpose(0, 1, 3, 2)) / scale
    attn = jax.nn.softmax(attn, axis=-1)
    out = jnp.matmul(attn, v)                       # (B,H,N,hd)
    out = out.transpose(0, 2, 1, 3)                 # (B,N,H,hd)
    out = jnp.tensordot(out, params["wo"], axes=([2, 3], [0, 1])) + params["bo"]
    return out, attn


def init_params(key, in_dim, heads, scale=0.1):
    head_dim = in_dim // heads
    kq, kk, kv, ko, b1, b2, b3, b4 = jax.random.split(key, 8)
    return {
        "wq": scale * jax.random.normal(kq, (in_dim, heads, head_dim), jnp.float32),
        "bq": scale * jax.random.normal(b1, (heads, head_dim), jnp.float32),
        "wk": scale * jax.random.normal(kk, (in_dim, heads, head_dim), jnp.float32),
        "bk": scale * jax.random.normal(b2, (heads, head_dim), jnp.float32),
        "wv": scale * jax.random.normal(kv, (in_dim, heads, head_dim), jnp.float32),
        "bv": scale * jax.random.normal(b3, (heads, head_dim), jnp.float32),
        "wo": scale * jax.random.normal(ko, (heads, head_dim, in_dim), jnp.float32),
        "bo": scale * jax.random.normal(b4, (in_dim,), jnp.float32),
    }


if __name__ == "__main__":
    B, N, D, HEADS = 4, 8, 32, 4   # small shapes consistent with the module

    key = jax.random.PRNGKey(0)
    kx, kp = jax.random.split(key)
    x = jax.random.normal(kx, (B, N, D), jnp.float32)
    params = init_params(kp, D, HEADS)
    packed = pack_params(params, HEADS)        # weight fusion done once, off the hot path

    out, attn = self_attention_pallas(x, packed)
    out = jax.block_until_ready(out)
    attn = jax.block_until_ready(attn)

    out_exp, attn_exp = self_attention_ref(x, params, HEADS)
    assert out.shape == (B, N, D) and attn.shape == (B, HEADS, N, N)
    # bf16 MXU operands (f32 accumulation) + bf16 attn storage -> modest tolerances.
    assert jnp.allclose(out, out_exp, atol=2e-2, rtol=2e-2), \
        float(jnp.max(jnp.abs(out - out_exp)))
    attn_f32 = attn.astype(jnp.float32)
    assert jnp.allclose(attn_f32, attn_exp, atol=2e-2, rtol=5e-2), \
        float(jnp.max(jnp.abs(attn_f32 - attn_exp)))

    # Flash-style path that never materializes the O(B*H*N^2) attention slab.
    out_only = jax.block_until_ready(
        self_attention_pallas(x, packed, return_attn=False))
    assert jnp.allclose(out_only, out_exp, atol=2e-2, rtol=2e-2)

    print("KERNEL_OK")
</pallas_src>

<mosaic_0001>
module attributes {stable_mosaic.version = 11 : i64} {
  func.func @_mhsa_kernel(%arg0: i32, %arg1: memref<16x32xbf16, #tpu.memory_space<vmem>>, %arg2: memref<32x96xbf16, #tpu.memory_space<vmem>>, %arg3: memref<1x96xf32, #tpu.memory_space<vmem>>, %arg4: memref<32x32xbf16, #tpu.memory_space<vmem>>, %arg5: memref<1x32xf32, #tpu.memory_space<vmem>>, %arg6: memref<16x32xf32, #tpu.memory_space<vmem>>, %arg7: memref<2x4x8x8xbf16, #tpu.memory_space<vmem>>) attributes {dimension_semantics = [#tpu.dimension_semantics<parallel>], iteration_bounds = array<i64: 2>, scalar_prefetch = 0 : i64, scratch_operands = 0 : i64, tpu.core_type = #tpu.core_type<tc>, window_params = [{transform_indices = @transform_0, window_bounds = array<i64: 16, 32>}, {pipeline_mode = #tpu.pipeline_mode<synchronous>, transform_indices = @transform_1, window_bounds = array<i64: 32, 96>}, {pipeline_mode = #tpu.pipeline_mode<synchronous>, transform_indices = @transform_2, window_bounds = array<i64: 1, 96>}, {pipeline_mode = #tpu.pipeline_mode<synchronous>, transform_indices = @transform_3, window_bounds = array<i64: 32, 32>}, {pipeline_mode = #tpu.pipeline_mode<synchronous>, transform_indices = @transform_4, window_bounds = array<i64: 1, 32>}, {transform_indices = @transform_5, window_bounds = array<i64: 16, 32>}, {transform_indices = @transform_6, window_bounds = array<i64: 2, 4, 8, 8>}]} {
    %c0 = arith.constant 0 : index
    %c0_0 = arith.constant 0 : index
    %0 = vector.load %arg1[%c0, %c0_0] : memref<16x32xbf16, #tpu.memory_space<vmem>>, vector<16x32xbf16>
    %c0_1 = arith.constant 0 : index
    %c0_2 = arith.constant 0 : index
    %1 = vector.load %arg2[%c0_1, %c0_2] : memref<32x96xbf16, #tpu.memory_space<vmem>>, vector<32x96xbf16>
    %cst = arith.constant dense<0.000000e+00> : vector<16x96xf32>
    %2 = tpu.matmul %0, %1, %cst {dimension_numbers = #tpu.dot_dimension_numbers<[1], [0], [0], [1], [0, 0, 1, 1], [], []>} : vector<16x32xbf16>, vector<32x96xbf16>, vector<16x96xf32> -> vector<16x96xf32>
    %c0_3 = arith.constant 0 : index
    %c0_4 = arith.constant 0 : index
    %3 = vector.load %arg3[%c0_3, %c0_4] : memref<1x96xf32, #tpu.memory_space<vmem>>, vector<1x96xf32>
    %4 = vector.broadcast %3 : vector<1x96xf32> to vector<16x96xf32>
    %5 = arith.addf %2, %4 : vector<16x96xf32>
    %6 = vector.extract_strided_slice %5 {offsets = [0, 0], sizes = [16, 32], strides = [1, 1]} : vector<16x96xf32> to vector<16x32xf32>
    %cst_5 = arith.constant 0.353553385 : f32
    %7 = vector.broadcast %cst_5 : f32 to vector<16x32xf32>
    %8 = arith.mulf %6, %7 : vector<16x32xf32>
    %9 = vector.extract_strided_slice %5 {offsets = [0, 32], sizes = [16, 32], strides = [1, 1]} : vector<16x96xf32> to vector<16x32xf32>
    %10 = vector.extract_strided_slice %5 {offsets = [0, 64], sizes = [16, 32], strides = [1, 1]} : vector<16x96xf32> to vector<16x32xf32>
    %11 = vector.shape_cast %8 : vector<16x32xf32> to vector<2x8x4x8xf32>
    %12 = tpu.transpose %11, [0, 2, 1, 3] : vector<2x8x4x8xf32> -> vector<2x4x8x8xf32>
    %13 = vector.shape_cast %12 : vector<2x4x8x8xf32> to vector<8x8x8xf32>
    %14 = arith.truncf %13 : vector<8x8x8xf32> to vector<8x8x8xbf16>
    %15 = vector.shape_cast %9 : vector<16x32xf32> to vector<2x8x4x8xf32>
    %16 = tpu.transpose %15, [0, 2, 1, 3] : vector<2x8x4x8xf32> -> vector<2x4x8x8xf32>
    %17 = vector.shape_cast %16 : vector<2x4x8x8xf32> to vector<8x8x8xf32>
    %18 = arith.truncf %17 : vector<8x8x8xf32> to vector<8x8x8xbf16>
    %19 = vector.shape_cast %10 : vector<16x32xf32> to vector<2x8x4x8xf32>
    %20 = tpu.transpose %19, [0, 2, 1, 3] : vector<2x8x4x8xf32> -> vector<2x4x8x8xf32>
    %21 = vector.shape_cast %20 : vector<2x4x8x8xf32> to vector<8x8x8xf32>
    %22 = arith.truncf %21 : vector<8x8x8xf32> to vector<8x8x8xbf16>
    "tpu.trace_start"() <{level = 10 : i32, message = "bqd,bkd->bqk"}> : () -> ()
    %cst_6 = arith.constant dense<0.000000e+00> : vector<8x8x8xf32>
    %23 = tpu.matmul %14, %18, %cst_6 {dimension_numbers = #tpu.dot_dimension_numbers<[2], [2], [1], [1], [0, 0, 0, 1, 1, 1], [0], [0]>} : vector<8x8x8xbf16>, vector<8x8x8xbf16>, vector<8x8x8xf32> -> vector<8x8x8xf32>
    "tpu.trace_stop"() : () -> ()
    %cst_7 = arith.constant dense<0xFF800000> : vector<8x8xf32>
    %24 = vector.multi_reduction <maximumf>, %23, %cst_7 [2] : vector<8x8x8xf32> to vector<8x8xf32>
    %25 = vector.shape_cast %24 : vector<8x8xf32> to vector<8x8x1xf32>
    %26 = vector.broadcast %25 : vector<8x8x1xf32> to vector<8x8x8xf32>
    %27 = arith.subf %23, %26 : vector<8x8x8xf32>
    %28 = math.exp %27 : vector<8x8x8xf32>
    %cst_8 = arith.constant dense<0.000000e+00> : vector<8x8xf32>
    %29 = vector.multi_reduction <add>, %28, %cst_8 [2] : vector<8x8x8xf32> to vector<8x8xf32>
    %30 = vector.shape_cast %29 : vector<8x8xf32> to vector<8x8x1xf32>
    %cst_9 = arith.constant 1.000000e+00 : f32
    %31 = vector.broadcast %cst_9 : f32 to vector<8x8x1xf32>
    %32 = arith.divf %31, %30 : vector<8x8x1xf32>
    %33 = vector.broadcast %32 : vector<8x8x1xf32> to vector<8x8x8xf32>
    %34 = arith.mulf %28, %33 : vector<8x8x8xf32>
    %35 = vector.shape_cast %34 : vector<8x8x8xf32> to vector<2x4x8x8xf32>
    %36 = arith.truncf %35 : vector<2x4x8x8xf32> to vector<2x4x8x8xbf16>
    %c0_10 = arith.constant 0 : index
    %c0_11 = arith.constant 0 : index
    %c0_12 = arith.constant 0 : index
    %c0_13 = arith.constant 0 : index
    %37 = vector.load %arg7[%c0_10, %c0_11, %c0_12, %c0_13] : memref<2x4x8x8xbf16, #tpu.memory_space<vmem>>, vector<2x4x8x8xbf16>
    tpu.vector_store %arg7[%c0_10, %c0_11, %c0_12, %c0_13], %36 {strides = array<i32>} : memref<2x4x8x8xbf16, #tpu.memory_space<vmem>>, vector<2x4x8x8xbf16>,
    %38 = arith.truncf %34 : vector<8x8x8xf32> to vector<8x8x8xbf16>
    "tpu.trace_start"() <{level = 10 : i32, message = "bqk,bkd->bqd"}> : () -> ()
    %cst_14 = arith.constant dense<0.000000e+00> : vector<8x8x8xf32>
    %39 = tpu.matmul %38, %22, %cst_14 {dimension_numbers = #tpu.dot_dimension_numbers<[2], [1], [1], [2], [0, 0, 0, 1, 1, 2], [0], [0]>} : vector<8x8x8xbf16>, vector<8x8x8xbf16>, vector<8x8x8xf32> -> vector<8x8x8xf32>
    "tpu.trace_stop"() : () -> ()
    %40 = vector.shape_cast %39 : vector<8x8x8xf32> to vector<2x4x8x8xf32>
    %41 = tpu.transpose %40, [0, 2, 1, 3] : vector<2x4x8x8xf32> -> vector<2x8x4x8xf32>
    %42 = vector.shape_cast %41 : vector<2x8x4x8xf32> to vector<16x32xf32>
    %43 = arith.truncf %42 : vector<16x32xf32> to vector<16x32xbf16>
    %c0_15 = arith.constant 0 : index
    %c0_16 = arith.constant 0 : index
    %44 = vector.load %arg4[%c0_15, %c0_16] : memref<32x32xbf16, #tpu.memory_space<vmem>>, vector<32x32xbf16>
    %cst_17 = arith.constant dense<0.000000e+00> : vector<16x32xf32>
    %45 = tpu.matmul %43, %44, %cst_17 {dimension_numbers = #tpu.dot_dimension_numbers<[1], [0], [0], [1], [0, 0, 1, 1], [], []>} : vector<16x32xbf16>, vector<32x32xbf16>, vector<16x32xf32> -> vector<16x32xf32>
    %c0_18 = arith.constant 0 : index
    %c0_19 = arith.constant 0 : index
    %46 = vector.load %arg5[%c0_18, %c0_19] : memref<1x32xf32, #tpu.memory_space<vmem>>, vector<1x32xf32>
    %47 = vector.broadcast %46 : vector<1x32xf32> to vector<16x32xf32>
    %48 = arith.addf %45, %47 : vector<16x32xf32>
    %c0_20 = arith.constant 0 : index
    %c0_21 = arith.constant 0 : index
    %49 = vector.load %arg6[%c0_20, %c0_21] : memref<16x32xf32, #tpu.memory_space<vmem>>, vector<16x32xf32>
    tpu.vector_store %arg6[%c0_20, %c0_21], %48 {strides = array<i32>} : memref<16x32xf32, #tpu.memory_space<vmem>>, vector<16x32xf32>,
    return
  }
  func.func @transform_0(%arg0: i32) -> (i32, i32) {
    %c0_i32 = arith.constant 0 : i32
    %c0_i32_0 = arith.constant 0 : i32
    return %arg0, %c0_i32 : i32, i32
  }
  func.func @transform_1(%arg0: i32) -> (i32, i32) {
    %c0_i32 = arith.constant 0 : i32
    %c0_i32_0 = arith.constant 0 : i32
    %c0_i32_1 = arith.constant 0 : i32
    return %c0_i32, %c0_i32_0 : i32, i32
  }
  func.func @transform_2(%arg0: i32) -> (i32, i32) {
    %c0_i32 = arith.constant 0 : i32
    %c0_i32_0 = arith.constant 0 : i32
    %c0_i32_1 = arith.constant 0 : i32
    return %c0_i32, %c0_i32_0 : i32, i32
  }
  func.func @transform_3(%arg0: i32) -> (i32, i32) {
    %c0_i32 = arith.constant 0 : i32
    %c0_i32_0 = arith.constant 0 : i32
    %c0_i32_1 = arith.constant 0 : i32
    return %c0_i32, %c0_i32_0 : i32, i32
  }
  func.func @transform_4(%arg0: i32) -> (i32, i32) {
    %c0_i32 = arith.constant 0 : i32
    %c0_i32_0 = arith.constant 0 : i32
    %c0_i32_1 = arith.constant 0 : i32
    return %c0_i32, %c0_i32_0 : i32, i32
  }
  func.func @transform_5(%arg0: i32) -> (i32, i32) {
    %c0_i32 = arith.constant 0 : i32
    %c0_i32_0 = arith.constant 0 : i32
    return %arg0, %c0_i32 : i32, i32
  }
  func.func @transform_6(%arg0: i32) -> (i32, i32, i32, i32) {
    %c0_i32 = arith.constant 0 : i32
    %c0_i32_0 = arith.constant 0 : i32
    %c0_i32_1 = arith.constant 0 : i32
    %c0_i32_2 = arith.constant 0 : i32
    return %arg0, %c0_i32, %c0_i32_0, %c0_i32_1 : i32, i32, i32, i32
  }
}

module attributes {stable_mosaic.version = 11 : i64} {
  func.func @_mhsa_kernel(%arg0: i32, %arg1: memref<16x32xbf16, #tpu.memory_space<vmem>>, %arg2: memref<32x96xbf16, #tpu.memory_space<vmem>>, %arg3: memref<1x96xf32, #tpu.memory_space<vmem>>, %arg4: memref<32x32xbf16, #tpu.memory_space<vmem>>, %arg5: memref<1x32xf32, #tpu.memory_space<vmem>>, %arg6: memref<16x32xf32, #tpu.memory_space<vmem>>, %arg7: memref<2x4x8x8xbf16, #tpu.memory_space<vmem>>) attributes {dimension_semantics = [#tpu.dimension_semantics<parallel>], iteration_bounds = array<i64: 2>, scalar_prefetch = 0 : i64, scratch_operands = 0 : i64, tpu.core_type = #tpu.core_type<tc>, window_params = [{transform_indices = @transform_0, window_bounds = array<i64: 16, 32>}, {pipeline_mode = #tpu.pipeline_mode<synchronous>, transform_indices = @transform_1, window_bounds = array<i64: 32, 96>}, {pipeline_mode = #tpu.pipeline_mode<synchronous>, transform_indices = @transform_2, window_bounds = array<i64: 1, 96>}, {pipeline_mode = #tpu.pipeline_mode<synchronous>, transform_indices = @transform_3, window_bounds = array<i64: 32, 32>}, {pipeline_mode = #tpu.pipeline_mode<synchronous>, transform_indices = @transform_4, window_bounds = array<i64: 1, 32>}, {transform_indices = @transform_5, window_bounds = array<i64: 16, 32>}, {transform_indices = @transform_6, window_bounds = array<i64: 2, 4, 8, 8>}]} {
    %c0 = arith.constant 0 : index
    %c0_0 = arith.constant 0 : index
    %0 = vector.load %arg1[%c0, %c0_0] : memref<16x32xbf16, #tpu.memory_space<vmem>>, vector<16x32xbf16>
    %c0_1 = arith.constant 0 : index
    %c0_2 = arith.constant 0 : index
    %1 = vector.load %arg2[%c0_1, %c0_2] : memref<32x96xbf16, #tpu.memory_space<vmem>>, vector<32x96xbf16>
    %cst = arith.constant dense<0.000000e+00> : vector<16x96xf32>
    %2 = tpu.matmul %0, %1, %cst {dimension_numbers = #tpu.dot_dimension_numbers<[1], [0], [0], [1], [0, 0, 1, 1], [], []>} : vector<16x32xbf16>, vector<32x96xbf16>, vector<16x96xf32> -> vector<16x96xf32>
    %c0_3 = arith.constant 0 : index
    %c0_4 = arith.constant 0 : index
    %3 = vector.load %arg3[%c0_3, %c0_4] : memref<1x96xf32, #tpu.memory_space<vmem>>, vector<1x96xf32>
    %4 = vector.broadcast %3 : vector<1x96xf32> to vector<16x96xf32>
    %5 = arith.addf %2, %4 : vector<16x96xf32>
    %6 = vector.extract_strided_slice %5 {offsets = [0, 0], sizes = [16, 32], strides = [1, 1]} : vector<16x96xf32> to vector<16x32xf32>
    %cst_5 = arith.constant 0.353553385 : f32
    %7 = vector.broadcast %cst_5 : f32 to vector<16x32xf32>
    %8 = arith.mulf %6, %7 : vector<16x32xf32>
    %9 = vector.extract_strided_slice %5 {offsets = [0, 32], sizes = [16, 32], strides = [1, 1]} : vector<16x96xf32> to vector<16x32xf32>
    %10 = vector.extract_strided_slice %5 {offsets = [0, 64], sizes = [16, 32], strides = [1, 1]} : vector<16x96xf32> to vector<16x32xf32>
    %11 = vector.shape_cast %8 : vector<16x32xf32> to vector<2x8x4x8xf32>
    %12 = tpu.transpose %11, [0, 2, 1, 3] : vector<2x8x4x8xf32> -> vector<2x4x8x8xf32>
    %13 = vector.shape_cast %12 : vector<2x4x8x8xf32> to vector<8x8x8xf32>
    %14 = arith.truncf %13 : vector<8x8x8xf32> to vector<8x8x8xbf16>
    %15 = vector.shape_cast %9 : vector<16x32xf32> to vector<2x8x4x8xf32>
    %16 = tpu.transpose %15, [0, 2, 1, 3] : vector<2x8x4x8xf32> -> vector<2x4x8x8xf32>
    %17 = vector.shape_cast %16 : vector<2x4x8x8xf32> to vector<8x8x8xf32>
    %18 = arith.truncf %17 : vector<8x8x8xf32> to vector<8x8x8xbf16>
    %19 = vector.shape_cast %10 : vector<16x32xf32> to vector<2x8x4x8xf32>
    %20 = tpu.transpose %19, [0, 2, 1, 3] : vector<2x8x4x8xf32> -> vector<2x4x8x8xf32>
    %21 = vector.shape_cast %20 : vector<2x4x8x8xf32> to vector<8x8x8xf32>
    %22 = arith.truncf %21 : vector<8x8x8xf32> to vector<8x8x8xbf16>
    "tpu.trace_start"() <{level = 10 : i32, message = "bqd,bkd->bqk"}> : () -> ()
    %cst_6 = arith.constant dense<0.000000e+00> : vector<8x8x8xf32>
    %23 = tpu.matmul %14, %18, %cst_6 {dimension_numbers = #tpu.dot_dimension_numbers<[2], [2], [1], [1], [0, 0, 0, 1, 1, 1], [0], [0]>} : vector<8x8x8xbf16>, vector<8x8x8xbf16>, vector<8x8x8xf32> -> vector<8x8x8xf32>
    "tpu.trace_stop"() : () -> ()
    %cst_7 = arith.constant dense<0xFF800000> : vector<8x8xf32>
    %24 = vector.multi_reduction <maximumf>, %23, %cst_7 [2] : vector<8x8x8xf32> to vector<8x8xf32>
    %25 = vector.shape_cast %24 : vector<8x8xf32> to vector<8x8x1xf32>
    %26 = vector.broadcast %25 : vector<8x8x1xf32> to vector<8x8x8xf32>
    %27 = arith.subf %23, %26 : vector<8x8x8xf32>
    %28 = math.exp %27 : vector<8x8x8xf32>
    %cst_8 = arith.constant dense<0.000000e+00> : vector<8x8xf32>
    %29 = vector.multi_reduction <add>, %28, %cst_8 [2] : vector<8x8x8xf32> to vector<8x8xf32>
    %30 = vector.shape_cast %29 : vector<8x8xf32> to vector<8x8x1xf32>
    %cst_9 = arith.constant 1.000000e+00 : f32
    %31 = vector.broadcast %cst_9 : f32 to vector<8x8x1xf32>
    %32 = arith.divf %31, %30 : vector<8x8x1xf32>
    %33 = vector.broadcast %32 : vector<8x8x1xf32> to vector<8x8x8xf32>
    %34 = arith.mulf %28, %33 : vector<8x8x8xf32>
    %35 = vector.shape_cast %34 : vector<8x8x8xf32> to vector<2x4x8x8xf32>
    %36 = arith.truncf %35 : vector<2x4x8x8xf32> to vector<2x4x8x8xbf16>
    %c0_10 = arith.constant 0 : index
    %c0_11 = arith.constant 0 : index
    %c0_12 = arith.constant 0 : index
    %c0_13 = arith.constant 0 : index
    %37 = vector.load %arg7[%c0_10, %c0_11, %c0_12, %c0_13] : memref<2x4x8x8xbf16, #tpu.memory_space<vmem>>, vector<2x4x8x8xbf16>
    tpu.vector_store %arg7[%c0_10, %c0_11, %c0_12, %c0_13], %36 {strides = array<i32>} : memref<2x4x8x8xbf16, #tpu.memory_space<vmem>>, vector<2x4x8x8xbf16>,
    %38 = arith.truncf %34 : vector<8x8x8xf32> to vector<8x8x8xbf16>
    "tpu.trace_start"() <{level = 10 : i32, message = "bqk,bkd->bqd"}> : () -> ()
    %cst_14 = arith.constant dense<0.000000e+00> : vector<8x8x8xf32>
    %39 = tpu.matmul %38, %22, %cst_14 {dimension_numbers = #tpu.dot_dimension_numbers<[2], [1], [1], [2], [0, 0, 0, 1, 1, 2], [0], [0]>} : vector<8x8x8xbf16>, vector<8x8x8xbf16>, vector<8x8x8xf32> -> vector<8x8x8xf32>
    "tpu.trace_stop"() : () -> ()
    %40 = vector.shape_cast %39 : vector<8x8x8xf32> to vector<2x4x8x8xf32>
    %41 = tpu.transpose %40, [0, 2, 1, 3] : vector<2x4x8x8xf32> -> vector<2x8x4x8xf32>
    %42 = vector.shape_cast %41 : vector<2x8x4x8xf32> to vector<16x32xf32>
    %43 = arith.truncf %42 : vector<16x32xf32> to vector<16x32xbf16>
    %c0_15 = arith.constant 0 : index
    %c0_16 = arith.constant 0 : index
    %44 = vector.load %arg4[%c0_15, %c0_16] : memref<32x32xbf16, #tpu.memory_space<vmem>>, vector<32x32xbf16>
    %cst_17 = arith.constant dense<0.000000e+00> : vector<16x32xf32>
    %45 = tpu.matmul %43, %44, %cst_17 {dimension_numbers = #tpu.dot_dimension_numbers<[1], [0], [0], [1], [0, 0, 1, 1], [], []>} : vector<16x32xbf16>, vector<32x32xbf16>, vector<16x32xf32> -> vector<16x32xf32>
    %c0_18 = arith.constant 0 : index
    %c0_19 = arith.constant 0 : index
    %46 = vector.load %arg5[%c0_18, %c0_19] : memref<1x32xf32, #tpu.memory_space<vmem>>, vector<1x32xf32>
    %47 = vector.broadcast %46 : vector<1x32xf32> to vector<16x32xf32>
    %48 = arith.addf %45, %47 : vector<16x32xf32>
    %c0_20 = arith.constant 0 : index
    %c0_21 = arith.constant 0 : index
    %49 = vector.load %arg6[%c0_20, %c0_21] : memref<16x32xf32, #tpu.memory_space<vmem>>, vector<16x32xf32>
    tpu.vector_store %arg6[%c0_20, %c0_21], %48 {strides = array<i32>} : memref<16x32xf32, #tpu.memory_space<vmem>>, vector<16x32xf32>,
    return
  }
  func.func @transform_0(%arg0: i32) -> (i32, i32) {
    %c0_i32 = arith.constant 0 : i32
    %c0_i32_0 = arith.constant 0 : i32
    return %arg0, %c0_i32 : i32, i32
  }
  func.func @transform_1(%arg0: i32) -> (i32, i32) {
    %c0_i32 = arith.constant 0 : i32
    %c0_i32_0 = arith.constant 0 : i32
    %c0_i32_1 = arith.constant 0 : i32
    return %c0_i32, %c0_i32_0 : i32, i32
  }
  func.func @transform_2(%arg0: i32) -> (i32, i32) {
    %c0_i32 = arith.constant 0 : i32
    %c0_i32_0 = arith.constant 0 : i32
    %c0_i32_1 = arith.constant 0 : i32
    return %c0_i32, %c0_i32_0 : i32, i32
  }
  func.func @transform_3(%arg0: i32) -> (i32, i32) {
    %c0_i32 = arith.constant 0 : i32
    %c0_i32_0 = arith.constant 0 : i32
    %c0_i32_1 = arith.constant 0 : i32
    return %c0_i32, %c0_i32_0 : i32, i32
  }
  func.func @transform_4(%arg0: i32) -> (i32, i32) {
    %c0_i32 = arith.constant 0 : i32
    %c0_i32_0 = arith.constant 0 : i32
    %c0_i32_1 = arith.constant 0 : i32
    return %c0_i32, %c0_i32_0 : i32, i32
  }
  func.func @transform_5(%arg0: i32) -> (i32, i32) {
    %c0_i32 = arith.constant 0 : i32
    %c0_i32_0 = arith.constant 0 : i32
    return %arg0, %c0_i32 : i32, i32
  }
  func.func @transform_6(%arg0: i32) -> (i32, i32, i32, i32) {
    %c0_i32 = arith.constant 0 : i32
    %c0_i32_0 = arith.constant 0 : i32
    %c0_i32_1 = arith.constant 0 : i32
    %c0_i32_2 = arith.constant 0 : i32
    return %arg0, %c0_i32, %c0_i32_0, %c0_i32_1 : i32, i32, i32, i32
  }
}

</mosaic_0001>

<llo_original>
// kernel: tpu_custom_call.1
$region0: #{tpu_custom_call.1}
  #allocation0 [shape = 'u32[]', space=smem, size = 0x4, offset = 0x4, fixed_abs, tag = 'smem constant byte address 0x4 - core index']
  #allocation1 [shape = 'u32[144,128]{1,0:T(1,128)}', space=vmem, size = 0x12000, scoped, tag = 'internal scratch']
  %s0 = inlined_call_operand.hbm [shape: bf16[32,32], index: 0, kind: input, shape index: {}]
  %s1 = inlined_call_operand.hbm [shape: bf16[32,96], index: 1, kind: input, shape index: {}]
  %s2 = inlined_call_operand.vmem [shape: f32[1,96], index: 2, kind: input, shape index: {}]
  %s3 = inlined_call_operand.hbm [shape: bf16[32,32], index: 3, kind: input, shape index: {}]
  %s4 = inlined_call_operand.vmem [shape: f32[1,32], index: 4, kind: input, shape index: {}]
  %s5 = inlined_call_operand.hbm [shape: f32[32,32], index: 5, kind: output, shape index: {0}]
  %s6 = inlined_call_operand.hbm [shape: bf16[4,4,8,8], index: 6, kind: output, shape index: {1}]
  %7 = xla_tuple %s5, %s6
  %s8 = sld [smem:[#allocation0]]
  $region73: #{tpu_custom_call.1} parent=0
    _
  %s10 = ssub.s32 1, %s8
  %s11 = scalar_select 0, %s10, %s8
  $region1: #{tpu_custom_call.1} parent=0
    #allocation2 [shape = 'u8[8192]{0}', space=vmem, size = 0x2000, scoped, tag = 'input window, operand 0']
    #allocation3 [shape = 's32[2]{0}', space=sflag, size = 0x8, scoped, tag = 'scoped memory for tpu_custom_call.1']
    #allocation4 [shape = 's32[2]{0}', space=sflag, size = 0x8, scoped, tag = 'scoped memory for tpu_custom_call.1']
    #allocation5 [shape = 'u8[8192]{0}', space=vmem, size = 0x2000, scoped, tag = 'input window, operand 1, single buffered']
    #allocation6 [shape = 's32[1]{0}', space=sflag, size = 0x4, scoped, tag = 'scoped memory for tpu_custom_call.1']
    #allocation7 [shape = 'u8[8192]{0}', space=vmem, size = 0x2000, scoped, tag = 'input window, operand 3, single buffered']
    #allocation8 [shape = 'u8[16384]{0}', space=vmem, size = 0x4000, scoped, tag = 'output window, operand 0']
    #allocation9 [shape = 'u8[32768]{0}', space=vmem, size = 0x8000, scoped, tag = 'output window, operand 1']
    #allocation10 [shape = 's32[2]{0}', space=sflag, size = 0x8, scoped, tag = 'scoped memory for tpu_custom_call.1']
    %12 = vsyncpa [#allocation3], 0
    %s13 = scalar_lea.sflag [#allocation3], 1
    %14 = vsyncpa %s13, 0
    %15 = vsyncpa [#allocation6], 0
    %16 = vsyncpa [#allocation4], 0
    %s17 = scalar_lea.sflag [#allocation4], 1
    %18 = vsyncpa %s17, 0
    %19 = vsyncpa [#allocation10], 0
    %s20 = scalar_lea.sflag [#allocation10], 1
    %21 = vsyncpa %s20, 0
    loop: start=0, step=1, limit=4
    $region2: #{tpu_custom_call.1} parent=1 // loop_pre_header
      _
    $region3: #{tpu_custom_call.1} parent=1 // loop_header
      %s23 = sphi 0, %s27
      %p24 = scmp.ge.s32.totalorder %s23, 4
      %s33 = sphi 0, %s35
      %s36 = sphi 0, %s33
      %s37 = sphi 0, %s36
      %s53 = sphi 0, %s37
      %s57 = sphi 0, %s57
      %s59 = sphi 0, %s57
      %s60 = sphi 0, %s59
      %s74 = sphi 0, %s60
      %s78 = sphi 0, %s78
      %s80 = sphi 0, %s78
      %s81 = sphi 0, %s80
      %s95 = sphi 0, %s81
      %s99 = sphi 0, %s99
      %s101 = sphi 0, %s99
      %s102 = sphi 0, %s101
      %s116 = sphi 0, %s102
      %s120 = sphi 0, %s120
      %s122 = sphi 0, %s120
      %s123 = sphi 0, %s122
      %s137 = sphi 0, %s123
      %s143 = sphi 0, %s145
      %s146 = sphi 0, %s143
      %s147 = sphi 0, %s146
      %s163 = sphi 0, %s147
      %s169 = sphi 0, %s171
      %s172 = sphi 0, %s169
      %s173 = sphi 0, %s172
      %s189 = sphi 0, %s173
    $region4: #{tpu_custom_call.1} parent=1 // loop_header_branch
      %26 = sbr.rel (%p24) target = $region8
    $region5: #{tpu_custom_call.1} parent=1 // loop_body
      %s28 = ssub.s32 %s23, 1
      %s29 = ssub.s32 %s23, 2
      %s30 = sadd.s32 %s23, 1
      %s31 = ssub.s32 %s23, %s30
      %p32 = scmp.eq.s32.totalorder %s31, 0
      %s34 = sadd.s32 %s33, 1
      %s35 = scalar_select %p32, %s33, %s34
      %p38 = pneg %p32
      %p39 = scmp.eq.s32.totalorder %s23, 1
      %p40 = por %p38, %p39
      %p41 = scmp.ne.s32.totalorder %s33, %s36
      %p42 = scmp.eq.s32.totalorder %s23, 0
      %p43 = por %p41, %p42
      %p44 = scmp.ne.s32.totalorder %s33, %s36
      %p45 = scmp.eq.s32.totalorder %s28, 1
      %p46 = por %p44, %p45
      %p47 = scmp.ne.s32.totalorder %s36, %s37
      %p48 = scmp.eq.s32.totalorder %s28, 0
      %p49 = por %p47, %p48
      %p50 = scmp.ne.s32.totalorder %s36, %s37
      %p51 = scmp.eq.s32.totalorder %s29, 1
      %p52 = por %p50, %p51
      %p54 = scmp.ne.s32.totalorder %s37, %s53
      %p55 = scmp.eq.s32.totalorder %s29, 0
      %p56 = por %p54, %p55
      %s58 = sadd.s32 %s57, 1
      %p61 = scmp.eq.s32.totalorder %s23, 1
      %p62 = scmp.ne.s32.totalorder %s57, %s59
      %p63 = scmp.eq.s32.totalorder %s23, 0
      %p64 = por %p62, %p63
      %p65 = scmp.ne.s32.totalorder %s57, %s59
      %p66 = scmp.eq.s32.totalorder %s28, 1
      %p67 = por %p65, %p66
      %p68 = scmp.ne.s32.totalorder %s59, %s60
      %p69 = scmp.eq.s32.totalorder %s28, 0
      %p70 = por %p68, %p69
      %p71 = scmp.ne.s32.totalorder %s59, %s60
      %p72 = scmp.eq.s32.totalorder %s29, 1
      %p73 = por %p71, %p72
      %p75 = scmp.ne.s32.totalorder %s60, %s74
      %p76 = scmp.eq.s32.totalorder %s29, 0
      %p77 = por %p75, %p76
      %s79 = sadd.s32 %s78, 1
      %p82 = scmp.eq.s32.totalorder %s23, 1
      %p83 = scmp.ne.s32.totalorder %s78, %s80
      %p84 = scmp.eq.s32.totalorder %s23, 0
      %p85 = por %p83, %p84
      %p86 = scmp.ne.s32.totalorder %s78, %s80
      %p87 = scmp.eq.s32.totalorder %s28, 1
      %p88 = por %p86, %p87
      %p89 = scmp.ne.s32.totalorder %s80, %s81
      %p90 = scmp.eq.s32.totalorder %s28, 0
      %p91 = por %p89, %p90
      %p92 = scmp.ne.s32.totalorder %s80, %s81
      %p93 = scmp.eq.s32.totalorder %s29, 1
      %p94 = por %p92, %p93
      %p96 = scmp.ne.s32.totalorder %s81, %s95
      %p97 = scmp.eq.s32.totalorder %s29, 0
      %p98 = por %p96, %p97
      %s100 = sadd.s32 %s99, 1
      %p103 = scmp.eq.s32.totalorder %s23, 1
      %p104 = scmp.ne.s32.totalorder %s99, %s101
      %p105 = scmp.eq.s32.totalorder %s23, 0
      %p106 = por %p104, %p105
      %p107 = scmp.ne.s32.totalorder %s99, %s101
      %p108 = scmp.eq.s32.totalorder %s28, 1
      %p109 = por %p107, %p108
      %p110 = scmp.ne.s32.totalorder %s101, %s102
      %p111 = scmp.eq.s32.totalorder %s28, 0
      %p112 = por %p110, %p111
      %p113 = scmp.ne.s32.totalorder %s101, %s102
      %p114 = scmp.eq.s32.totalorder %s29, 1
      %p115 = por %p113, %p114
      %p117 = scmp.ne.s32.totalorder %s102, %s116
      %p118 = scmp.eq.s32.totalorder %s29, 0
      %p119 = por %p117, %p118
      %s121 = sadd.s32 %s120, 1
      %p124 = scmp.eq.s32.totalorder %s23, 1
      %p125 = scmp.ne.s32.totalorder %s120, %s122
      %p126 = scmp.eq.s32.totalorder %s23, 0
      %p127 = por %p125, %p126
      %p128 = scmp.ne.s32.totalorder %s120, %s122
      %p129 = scmp.eq.s32.totalorder %s28, 1
      %p130 = por %p128, %p129
      %p131 = scmp.ne.s32.totalorder %s122, %s123
      %p132 = scmp.eq.s32.totalorder %s28, 0
      %p133 = por %p131, %p132
      %p134 = scmp.ne.s32.totalorder %s122, %s123
      %p135 = scmp.eq.s32.totalorder %s29, 1
      %p136 = por %p134, %p135
      %p138 = scmp.ne.s32.totalorder %s123, %s137
      %p139 = scmp.eq.s32.totalorder %s29, 0
      %p140 = por %p138, %p139
      %s141 = ssub.s32 %s23, %s30
      %p142 = scmp.eq.s32.totalorder %s141, 0
      %s144 = sadd.s32 %s143, 1
      %s145 = scalar_select %p142, %s143, %s144
      %p148 = pneg %p142
      %p149 = scmp.eq.s32.totalorder %s23, 1
      %p150 = por %p148, %p149
      %p151 = scmp.ne.s32.totalorder %s143, %s146
      %p152 = scmp.eq.s32.totalorder %s23, 0
      %p153 = por %p151, %p152
      %p154 = scmp.ne.s32.totalorder %s143, %s146
      %p155 = scmp.eq.s32.totalorder %s28, 1
      %p156 = por %p154, %p155
      %p157 = scmp.ne.s32.totalorder %s146, %s147
      %p158 = scmp.eq.s32.totalorder %s28, 0
      %p159 = por %p157, %p158
      %p160 = scmp.ne.s32.totalorder %s146, %s147
      %p161 = scmp.eq.s32.totalorder %s29, 1
      %p162 = por %p160, %p161
      %p164 = scmp.ne.s32.totalorder %s147, %s163
      %p165 = scmp.eq.s32.totalorder %s29, 0
      %p166 = por %p164, %p165
      %s167 = ssub.s32 %s23, %s30
      %p168 = scmp.eq.s32.totalorder %s167, 0
      %s170 = sadd.s32 %s169, 1
      %s171 = scalar_select %p168, %s169, %s170
      %p174 = pneg %p168
      %p175 = scmp.eq.s32.totalorder %s23, 1
      %p176 = por %p174, %p175
      %p177 = scmp.ne.s32.totalorder %s169, %s172
      %p178 = scmp.eq.s32.totalorder %s23, 0
      %p179 = por %p177, %p178
      %p180 = scmp.ne.s32.totalorder %s169, %s172
      %p181 = scmp.eq.s32.totalorder %s28, 1
      %p182 = por %p180, %p181
      %p183 = scmp.ne.s32.totalorder %s172, %s173
      %p184 = scmp.eq.s32.totalorder %s28, 0
      %p185 = por %p183, %p184
      %p186 = scmp.ne.s32.totalorder %s172, %s173
      %p187 = scmp.eq.s32.totalorder %s29, 1
      %p188 = por %p186, %p187
      %p190 = scmp.ne.s32.totalorder %s173, %s189
      %p191 = scmp.eq.s32.totalorder %s29, 0
      %p192 = por %p190, %p191
      %p193 = scmp.le.s32.totalorder 1, %s23
      %p194 = scmp.lt.s32.totalorder %s23, 3
      %p195 = pnand %p193, %p194
      %p196 = pneg %p195
      // Predicated region
      $region9: #{tpu_custom_call.1} parent=5 // pred_check
        _
      $region10: #{tpu_custom_call.1} parent=5 // pred_check_branch
        %198 = sbr.rel (%p195) target = $region12
      $region11: #{tpu_custom_call.1} parent=5 // pred_region
        %s199 = ssub.s32 %s23, 1
        // Predicated region
        $region13: #{tpu_custom_call.1} parent=11 // pred_check
          %p200 = pneg %p70
        $region14: #{tpu_custom_call.1} parent=11 // pred_check_branch
          %202 = sbr.rel (%p200) target = $region16
        $region15: #{tpu_custom_call.1} parent=11 // pred_region
          %s204 = ssub.s32 256, 256
          %205 = vsyncadd [#allocation6], %s204
          %s206 = sshll.u32 [#allocation5], 4
          %s207 = int_to_ptr.vmem [resolvable:$true] %s206
          %212 = dma.hbm_to_vmem [thread:$0]  %s1, 256, %s207, [#allocation6], 64, 64, 4
        $region16: #{tpu_custom_call.1} parent=11 // pred_fallthru
          _
        // Predicated region
        $region17: #{tpu_custom_call.1} parent=11 // pred_check
          %p213 = pneg %p91
        $region18: #{tpu_custom_call.1} parent=11 // pred_check_branch
          %215 = sbr.rel (%p213) target = $region20
        $region19: #{tpu_custom_call.1} parent=11 // pred_region
          _
        $region20: #{tpu_custom_call.1} parent=11 // pred_fallthru
          _
        // Predicated region
        $region21: #{tpu_custom_call.1} parent=11 // pred_check
          %p216 = pneg %p112
        $region22: #{tpu_custom_call.1} parent=11 // pred_check_branch
          %218 = sbr.rel (%p216) target = $region24
        $region23: #{tpu_custom_call.1} parent=11 // pred_region
          %s220 = ssub.s32 256, 256
          %221 = vsyncadd [#allocation6], %s220
          %s222 = sshll.u32 [#allocation7], 4
          %s223 = int_to_ptr.vmem [resolvable:$true] %s222
          %228 = dma.hbm_to_vmem [thread:$0]  %s3, 256, %s223, [#allocation6], 64, 64, 4
        $region24: #{tpu_custom_call.1} parent=11 // pred_fallthru
          _
        // Predicated region
        $region25: #{tpu_custom_call.1} parent=11 // pred_check
          %p229 = pneg %p133
        $region26: #{tpu_custom_call.1} parent=11 // pred_check_branch
          %231 = sbr.rel (%p229) target = $region28
        $region27: #{tpu_custom_call.1} parent=11 // pred_region
          _
        $region28: #{tpu_custom_call.1} parent=11 // pred_fallthru
          _
      $region12: #{tpu_custom_call.1} parent=5 // pred_fallthru
        _
      %p232 = scmp.lt.s32.totalorder %s23, 2
      // Predicated region
      $region29: #{tpu_custom_call.1} parent=5 // pred_check
        %p233 = pneg %p232
      $region30: #{tpu_custom_call.1} parent=5 // pred_check_branch
        %235 = sbr.rel (%p233) target = $region32
      $region31: #{tpu_custom_call.1} parent=5 // pred_region
        // Predicated region
        $region33: #{tpu_custom_call.1} parent=31 // pred_check
          %p236 = pneg %p43
        $region34: #{tpu_custom_call.1} parent=31 // pred_check_branch
          %238 = sbr.rel (%p236) target = $region36
        $region35: #{tpu_custom_call.1} parent=31 // pred_region
          %s239 = sand.u32 %s33, 1
          %s240 = scalar_lea.sflag [#allocation3], %s239
          %s241 = sand.u32 %s33, 1
          %s242 = smul.addr %s241, 8
          %s243 = scalar_lea.vmem [#allocation2], %s242
          %s244 = smul.u32 2, %s23
          %s246 = ssub.s32 128, 128
          %247 = vsyncadd %s240, %s246
          %s248 = smul.addr %s244, 64
          %s249 = scalar_lea.hbm %s0, %s248
          %s250 = sshll.u32 %s243, 4
          %s251 = int_to_ptr.vmem [resolvable:$true] %s250
          %256 = dma.hbm_to_vmem [thread:$0]  %s249, 128, %s251, %s240, 64, 64, 4
        $region36: #{tpu_custom_call.1} parent=31 // pred_fallthru
          _
      $region32: #{tpu_custom_call.1} parent=5 // pred_fallthru
        _
      %p257 = scmp.le.s32.totalorder 1, %s23
      %p258 = scmp.lt.s32.totalorder %s23, 3
      %p259 = pnand %p257, %p258
      %p260 = pneg %p259
      // Predicated region
      $region37: #{tpu_custom_call.1} parent=5 // pred_check
        _
      $region38: #{tpu_custom_call.1} parent=5 // pred_check_branch
        %262 = sbr.rel (%p259) target = $region40
      $region39: #{tpu_custom_call.1} parent=5 // pred_region
        %s263 = ssub.s32 %s23, 1
        %s264 = sand.u32 %s36, 1
        %s265 = scalar_lea.sflag [#allocation3], %s264
        %s266 = sand.u32 %s36, 1
        %s267 = smul.addr %s266, 8
        %s268 = scalar_lea.vmem [#allocation2], %s267
        // Predicated region
        $region41: #{tpu_custom_call.1} parent=39 // pred_check
          %p269 = pneg %p49
        $region42: #{tpu_custom_call.1} parent=39 // pred_check_branch
          %271 = sbr.rel (%p269) target = $region44
        $region43: #{tpu_custom_call.1} parent=39 // pred_region
          %272 = dma.done %s265, 128
        $region44: #{tpu_custom_call.1} parent=39 // pred_fallthru
          _
        // Predicated region
        $region45: #{tpu_custom_call.1} parent=39 // pred_check
          %p273 = pneg %p70
        $region46: #{tpu_custom_call.1} parent=39 // pred_check_branch
          %275 = sbr.rel (%p273) target = $region48
        $region47: #{tpu_custom_call.1} parent=39 // pred_region
          %276 = dma.done [#allocation6], 256
        $region48: #{tpu_custom_call.1} parent=39 // pred_fallthru
          _
        // Predicated region
        $region49: #{tpu_custom_call.1} parent=39 // pred_check
          %p277 = pneg %p112
        $region50: #{tpu_custom_call.1} parent=39 // pred_check_branch
          %279 = sbr.rel (%p277) target = $region52
        $region51: #{tpu_custom_call.1} parent=39 // pred_region
          %280 = dma.done [#allocation6], 256
        $region52: #{tpu_custom_call.1} parent=39 // pred_fallthru
          _
        %s281 = sand.u32 %s36, 1
        %s282 = scalar_lea.sflag [#allocation3], %s281
        %s283 = sand.u32 %s36, 1
        %s284 = smul.addr %s283, 8
        %s285 = scalar_lea.vmem [#allocation2], %s284
        %p286 = pneg %p49
        %p287 = pneg %p46
        %p288 = pneg %p70
        %p289 = pneg %p67
        %p290 = pneg %p91
        %p291 = pneg %p88
        %p292 = pneg %p112
        %p293 = pneg %p109
        %p294 = pneg %p133
        %p295 = pneg %p130
        %p296 = pneg %p159
        %p297 = pneg %p156
        %s298 = sand.u32 %s146, 1
        %s299 = scalar_lea.sflag [#allocation4], %s298
        %s300 = sand.u32 %s146, 1
        %s301 = smul.addr %s300, 16
        %s302 = scalar_lea.vmem [#allocation8], %s301
        %p303 = pneg %p185
        %p304 = pneg %p182
        %s305 = sand.u32 %s172, 1
        %s306 = scalar_lea.sflag [#allocation10], %s305
        %s307 = sand.u32 %s172, 1
        %s308 = smul.addr %s307, 32
        %s309 = scalar_lea.vmem [#allocation9], %s308
        %s310 = smul.u32 2, %s28
        %s311 = smul.u32 2, %s28
        %s312 = smul.u32 2, %s28
        %v314 = vld [vmem:[%s268] sm:$0xf]
        %v315 = vld [vmem:[%s268 + $0x4] sm:$0xf]
        %v316 = vld [vmem:[#allocation5] sm:$0xf]
        %v317 = vld [vmem:[#allocation5 + $0x4] sm:$0xf]
        %v318 = vld [vmem:[#allocation5 + $0x8] sm:$0xf]
        %v319 = vld [vmem:[#allocation5 + $0xc] sm:$0xf]
        %v320 = vld [vmem:[%s2] sm:$0x1]
        %v322 = vlaneseq
        %v323 = vshrl.u32 %v322, 7
        %v324 = vsub.s32 0, %v323
        %v325 = vrot.slane %v320, %v324
        %v329 = vunpack.c.l.b16 %v314
        %v330 = vunpack.c.l.b16 %v315
        %v331 = vpack.c.b16 %v330, %v329
        %v336 = vunpack.c.l.b16 %v316
        %v337 = vunpack.c.l.b16 %v317
        %v338 = vunpack.c.l.b16 %v318
        %v339 = vunpack.c.l.b16 %v319
        %v340 = vpack.c.b16 %v337, %v336
        %v341 = vpack.c.b16 %v339, %v338
        %vm344 = vcmask 261120
        %v346 = vsel %vm344, %v331, 0
        %348 = vmatprep.subr.bf16.mxu0 0
        %349 = vmatpush1.bf16.msra.mxu0 %v340
        %350 = vmatprep.subr.bf16.mxu0 0
        %351 = vmatpush1.bf16.msra.mxu0 %v341
        %352 = vmatprep.subr.bf16.mxu0 0
        %353 = vmatpush1.bf16.msra.mxu0 0
        %354 = vmatprep.subr.bf16.mxu0 0
        %355 = vmatpush1.bf16.msra.mxu0 0
        %356 = vmatprep.subr.bf16.mxu0 0
        %357 = vmatpush1.bf16.msra.mxu0 0
        %358 = vmatprep.subr.bf16.mxu0 0
        %359 = vmatpush1.bf16.msra.mxu0 0
        %360 = vmatprep.subr.bf16.mxu0 0
        %361 = vmatpush1.bf16.msra.mxu0 0
        %362 = vmatprep.subr.bf16.mxu0 0
        %363 = vmatpush1.bf16.msra.mxu0 0
        %364 = vmatprep.subr.bf16.mxu0 0
        %365 = vmatpush1.bf16.msra.mxu0 0
        %366 = vmatprep.subr.bf16.mxu0 0
        %367 = vmatpush1.bf16.msra.mxu0 0
        %368 = vmatprep.subr.bf16.mxu0 0
        %369 = vmatpush1.bf16.msra.mxu0 0
        %370 = vmatprep.subr.bf16.mxu0 0
        %371 = vmatpush1.bf16.msra.mxu0 0
        %372 = vmatprep.subr.bf16.mxu0 0
        %373 = vmatpush1.bf16.msra.mxu0 0
        %374 = vmatprep.subr.bf16.mxu0 0
        %375 = vmatpush1.bf16.msra.mxu0 0
        %376 = vmatprep.subr.bf16.mxu0 0
        %377 = vmatpush1.bf16.msra.mxu0 0
        %378 = vmatprep.subr.bf16.mxu0 0
        %379 = vmatpush1.bf16.msra.mxu0 0
        %380 = vmatprep.mubr.bf16.mxu0 0
        %381 = vmatmul.mubr.bf16.gmra.mrb[0].mxu0 %v346
        %v382 = vpop.f32.mrb[0].mxu0
        %v383 = vadd.f32 %v325, %v382
        %v384 = vpop.f32.mrb[0].mxu0
        %v385 = vpop.f32.mrb[0].mxu0
        %v386 = vadd.f32 %v325, %v385
        %v387 = vpop.f32.mrb[0].mxu0
        %388 = vdwg.mxu0
        %v389 = vmul.f32 %v383, 0.35355338
        %v390 = vmul.f32 %v386, 0.35355338
        %393 = vrot.lane.b32.xlu0 %v389, 120
        %v394 = vpop.permute.xlu0 %393
        %395 = vrot.lane.b32.xlu0 %v390, 120
        %v396 = vpop.permute.xlu0 %395
        %399 = vrot.lane.b32.xlu0 %v389, 112
        %v400 = vpop.permute.xlu0 %399
        %401 = vrot.lane.b32.xlu0 %v390, 112
        %v402 = vpop.permute.xlu0 %401
        %405 = vrot.lane.b32.xlu0 %v389, 104
        %v406 = vpop.permute.xlu0 %405
        %407 = vrot.lane.b32.xlu0 %v390, 104
        %v408 = vpop.permute.xlu0 %407
        %v411 = vcombine.low %v389, %v400
        %v412 = vcombine.high %v389, %v400
        %v414 = vunpack.c.l.s4 1983009808
        %v415 = vunpack.c.0.s8 %v414
        %v416 = vlaneseq
        %v417 = vshrl.u32 %v416, 7
        %v418 = vsub.s32 %v415, %v417
        %v419 = vrot.slane %v411, %v418
        %v421 = vunpack.c.l.s4 1983009808
        %v422 = vunpack.c.0.s8 %v421
        %v423 = vlaneseq
        %v424 = vshrl.u32 %v423, 7
        %v425 = vsub.s32 %v422, %v424
        %v426 = vrot.slane %v412, %v425
        %v427 = vcombine.low %v394, %v406
        %v428 = vcombine.high %v394, %v406
        %v430 = vunpack.c.l.s4 1983009808
        %v431 = vunpack.c.0.s8 %v430
        %v432 = vlaneseq
        %v433 = vshrl.u32 %v432, 7
        %v434 = vsub.s32 %v431, %v433
        %v435 = vrot.slane %v427, %v434
        %v437 = vunpack.c.l.s4 1983009808
        %v438 = vunpack.c.0.s8 %v437
        %v439 = vlaneseq
        %v440 = vshrl.u32 %v439, 7
        %v441 = vsub.s32 %v438, %v440
        %v442 = vrot.slane %v428, %v441
        %v443 = vcombine.low %v419, %v435
        %v444 = vcombine.high %v419, %v435
        %v446 = vunpack.c.l.s4 1934713408
        %v447 = vunpack.c.0.s8 %v446
        %v448 = vlaneseq
        %v449 = vshrl.u32 %v448, 7
        %v450 = vsub.s32 %v447, %v449
        %v451 = vrot.slane %v443, %v450
        %v453 = vunpack.c.l.s4 1934713408
        %v454 = vunpack.c.0.s8 %v453
        %v455 = vlaneseq
        %v456 = vshrl.u32 %v455, 7
        %v457 = vsub.s32 %v454, %v456
        %v458 = vrot.slane %v444, %v457
        %v459 = vcombine.low %v426, %v442
        %v460 = vcombine.high %v426, %v442
        %v462 = vunpack.c.l.s4 1934713408
        %v463 = vunpack.c.0.s8 %v462
        %v464 = vlaneseq
        %v465 = vshrl.u32 %v464, 7
        %v466 = vsub.s32 %v463, %v465
        %v467 = vrot.slane %v459, %v466
        %v469 = vunpack.c.l.s4 1934713408
        %v470 = vunpack.c.0.s8 %v469
        %v471 = vlaneseq
        %v472 = vshrl.u32 %v471, 7
        %v473 = vsub.s32 %v470, %v472
        %v474 = vrot.slane %v460, %v473
        %v475 = vcombine.high %v451, 0.0
        %v476 = vcombine.high %v458, 0.0
        %v477 = vcombine.high %v467, 0.0
        %v478 = vcombine.high %v474, 0.0
        %v479 = vcombine.low %v390, %v402
        %v480 = vcombine.high %v390, %v402
        %v482 = vunpack.c.l.s4 1983009808
        %v483 = vunpack.c.0.s8 %v482
        %v484 = vlaneseq
        %v485 = vshrl.u32 %v484, 7
        %v486 = vsub.s32 %v483, %v485
        %v487 = vrot.slane %v479, %v486
        %v489 = vunpack.c.l.s4 1983009808
        %v490 = vunpack.c.0.s8 %v489
        %v491 = vlaneseq
        %v492 = vshrl.u32 %v491, 7
        %v493 = vsub.s32 %v490, %v492
        %v494 = vrot.slane %v480, %v493
        %v495 = vcombine.low %v396, %v408
        %v496 = vcombine.high %v396, %v408
        %v498 = vunpack.c.l.s4 1983009808
        %v499 = vunpack.c.0.s8 %v498
        %v500 = vlaneseq
        %v501 = vshrl.u32 %v500, 7
        %v502 = vsub.s32 %v499, %v501
        %v503 = vrot.slane %v495, %v502
        %v505 = vunpack.c.l.s4 1983009808
        %v506 = vunpack.c.0.s8 %v505
        %v507 = vlaneseq
        %v508 = vshrl.u32 %v507, 7
        %v509 = vsub.s32 %v506, %v508
        %v510 = vrot.slane %v496, %v509
        %v511 = vcombine.low %v487, %v503
        %v512 = vcombine.high %v487, %v503
        %v514 = vunpack.c.l.s4 1934713408
        %v515 = vunpack.c.0.s8 %v514
        %v516 = vlaneseq
        %v517 = vshrl.u32 %v516, 7
        %v518 = vsub.s32 %v515, %v517
        %v519 = vrot.slane %v511, %v518
        %v521 = vunpack.c.l.s4 1934713408
        %v522 = vunpack.c.0.s8 %v521
        %v523 = vlaneseq
        %v524 = vshrl.u32 %v523, 7
        %v525 = vsub.s32 %v522, %v524
        %v526 = vrot.slane %v512, %v525
        %v527 = vcombine.low %v494, %v510
        %v528 = vcombine.high %v494, %v510
        %v530 = vunpack.c.l.s4 1934713408
        %v531 = vunpack.c.0.s8 %v530
        %v532 = vlaneseq
        %v533 = vshrl.u32 %v532, 7
        %v534 = vsub.s32 %v531, %v533
        %v535 = vrot.slane %v527, %v534
        %v537 = vunpack.c.l.s4 1934713408
        %v538 = vunpack.c.0.s8 %v537
        %v539 = vlaneseq
        %v540 = vshrl.u32 %v539, 7
        %v541 = vsub.s32 %v538, %v540
        %v542 = vrot.slane %v528, %v541
        %v543 = vcombine.high %v519, 0.0
        %v544 = vcombine.high %v526, 0.0
        %v545 = vcombine.high %v535, 0.0
        %v546 = vcombine.high %v542, 0.0
        %v547 = vcombine.low %v451, %v458
        %v549 = vunpack.c.l.s4 1983009808
        %v550 = vunpack.c.0.s8 %v549
        %v551 = vlaneseq
        %v552 = vshrl.u32 %v551, 7
        %v553 = vsub.s32 %v550, %v552
        %v554 = vrot.slane %v547, %v553
        %v555 = vcombine.low %v475, %v476
        %v557 = vunpack.c.l.s4 1983009808
        %v558 = vunpack.c.0.s8 %v557
        %v559 = vlaneseq
        %v560 = vshrl.u32 %v559, 7
        %v561 = vsub.s32 %v558, %v560
        %v562 = vrot.slane %v555, %v561
        %v563 = vcombine.low %v467, %v474
        %v565 = vunpack.c.l.s4 1983009808
        %v566 = vunpack.c.0.s8 %v565
        %v567 = vlaneseq
        %v568 = vshrl.u32 %v567, 7
        %v569 = vsub.s32 %v566, %v568
        %v570 = vrot.slane %v563, %v569
        %v571 = vcombine.low %v477, %v478
        %v573 = vunpack.c.l.s4 1983009808
        %v574 = vunpack.c.0.s8 %v573
        %v575 = vlaneseq
        %v576 = vshrl.u32 %v575, 7
        %v577 = vsub.s32 %v574, %v576
        %v578 = vrot.slane %v571, %v577
        %v579 = vcombine.low %v554, %v562
        %v580 = vcombine.high %v554, %v562
        %v582 = vunpack.c.l.s4 1934713408
        %v583 = vunpack.c.0.s8 %v582
        %v584 = vlaneseq
        %v585 = vshrl.u32 %v584, 7
        %v586 = vsub.s32 %v583, %v585
        %v587 = vrot.slane %v579, %v586
        %v589 = vunpack.c.l.s4 1934713408
        %v590 = vunpack.c.0.s8 %v589
        %v591 = vlaneseq
        %v592 = vshrl.u32 %v591, 7
        %v593 = vsub.s32 %v590, %v592
        %v594 = vrot.slane %v580, %v593
        %v595 = vcombine.low %v570, %v578
        %v596 = vcombine.high %v570, %v578
        %v598 = vunpack.c.l.s4 1934713408
        %v599 = vunpack.c.0.s8 %v598
        %v600 = vlaneseq
        %v601 = vshrl.u32 %v600, 7
        %v602 = vsub.s32 %v599, %v601
        %v603 = vrot.slane %v595, %v602
        %v605 = vunpack.c.l.s4 1934713408
        %v606 = vunpack.c.0.s8 %v605
        %v607 = vlaneseq
        %v608 = vshrl.u32 %v607, 7
        %v609 = vsub.s32 %v606, %v608
        %v610 = vrot.slane %v596, %v609
        %v611 = vcombine.low %v587, %v603
        %v612 = vcombine.high %v587, %v603
        %v613 = vcombine.low %v594, %v610
        %v614 = vcombine.high %v594, %v610
        %v615 = vcombine.low %v519, %v526
        %v617 = vunpack.c.l.s4 1983009808
        %v618 = vunpack.c.0.s8 %v617
        %v619 = vlaneseq
        %v620 = vshrl.u32 %v619, 7
        %v621 = vsub.s32 %v618, %v620
        %v622 = vrot.slane %v615, %v621
        %v623 = vcombine.low %v543, %v544
        %v625 = vunpack.c.l.s4 1983009808
        %v626 = vunpack.c.0.s8 %v625
        %v627 = vlaneseq
        %v628 = vshrl.u32 %v627, 7
        %v629 = vsub.s32 %v626, %v628
        %v630 = vrot.slane %v623, %v629
        %v631 = vcombine.low %v535, %v542
        %v633 = vunpack.c.l.s4 1983009808
        %v634 = vunpack.c.0.s8 %v633
        %v635 = vlaneseq
        %v636 = vshrl.u32 %v635, 7
        %v637 = vsub.s32 %v634, %v636
        %v638 = vrot.slane %v631, %v637
        %v639 = vcombine.low %v545, %v546
        %v641 = vunpack.c.l.s4 1983009808
        %v642 = vunpack.c.0.s8 %v641
        %v643 = vlaneseq
        %v644 = vshrl.u32 %v643, 7
        %v645 = vsub.s32 %v642, %v644
        %v646 = vrot.slane %v639, %v645
        %v647 = vcombine.low %v622, %v630
        %v648 = vcombine.high %v622, %v630
        %v650 = vunpack.c.l.s4 1934713408
        %v651 = vunpack.c.0.s8 %v650
        %v652 = vlaneseq
        %v653 = vshrl.u32 %v652, 7
        %v654 = vsub.s32 %v651, %v653
        %v655 = vrot.slane %v647, %v654
        %v657 = vunpack.c.l.s4 1934713408
        %v658 = vunpack.c.0.s8 %v657
        %v659 = vlaneseq
        %v660 = vshrl.u32 %v659, 7
        %v661 = vsub.s32 %v658, %v660
        %v662 = vrot.slane %v648, %v661
        %v663 = vcombine.low %v638, %v646
        %v664 = vcombine.high %v638, %v646
        %v666 = vunpack.c.l.s4 1934713408
        %v667 = vunpack.c.0.s8 %v666
        %v668 = vlaneseq
        %v669 = vshrl.u32 %v668, 7
        %v670 = vsub.s32 %v667, %v669
        %v671 = vrot.slane %v663, %v670
        %v673 = vunpack.c.l.s4 1934713408
        %v674 = vunpack.c.0.s8 %v673
        %v675 = vlaneseq
        %v676 = vshrl.u32 %v675, 7
        %v677 = vsub.s32 %v674, %v676
        %v678 = vrot.slane %v664, %v677
        %v679 = vcombine.low %v655, %v671
        %v680 = vcombine.high %v655, %v671
        %v681 = vcombine.low %v662, %v678
        %v682 = vcombine.high %v662, %v678
        %v683 = vpack.c.bf16 %v611, %v611
        %v684 = vpack.c.bf16 %v612, %v612
        %v685 = vpack.c.bf16 %v613, %v613
        %v686 = vpack.c.bf16 %v614, %v614
        %v687 = vpack.c.bf16 %v679, %v679
        %v688 = vpack.c.bf16 %v680, %v680
        %v689 = vpack.c.bf16 %v681, %v681
        %v690 = vpack.c.bf16 %v682, %v682
        %693 = vrot.lane.b32.xlu0 %v383, 120
        %v694 = vpop.permute.xlu0 %693
        %695 = vrot.lane.b32.xlu0 %v386, 120
        %v696 = vpop.permute.xlu0 %695
        %697 = vrot.lane.b32.xlu0 %v383, 112
        %v698 = vpop.permute.xlu0 %697
        %699 = vrot.lane.b32.xlu0 %v386, 112
        %v700 = vpop.permute.xlu0 %699
        %701 = vrot.lane.b32.xlu0 %v383, 104
        %v702 = vpop.permute.xlu0 %701
        %703 = vrot.lane.b32.xlu0 %v386, 104
        %v704 = vpop.permute.xlu0 %703
        %705 = vrot.lane.b32.xlu0 %v383, 96
        %v706 = vpop.permute.xlu0 %705
        %707 = vrot.lane.b32.xlu0 %v386, 96
        %v708 = vpop.permute.xlu0 %707
        %709 = vrot.lane.b32.xlu0 %v694, 96
        %v710 = vpop.permute.xlu0 %709
        %711 = vrot.lane.b32.xlu0 %v696, 96
        %v712 = vpop.permute.xlu0 %711
        %713 = vrot.lane.b32.xlu0 %v698, 96
        %v714 = vpop.permute.xlu0 %713
        %715 = vrot.lane.b32.xlu0 %v700, 96
        %v716 = vpop.permute.xlu0 %715
        %717 = vrot.lane.b32.xlu0 %v702, 96
        %v718 = vpop.permute.xlu0 %717
        %719 = vrot.lane.b32.xlu0 %v704, 96
        %v720 = vpop.permute.xlu0 %719
        %v729 = vcombine.low %v706, %v714
        %v730 = vcombine.high %v706, %v714
        %v732 = vunpack.c.l.s4 1983009808
        %v733 = vunpack.c.0.s8 %v732
        %v734 = vlaneseq
        %v735 = vshrl.u32 %v734, 7
        %v736 = vsub.s32 %v733, %v735
        %v737 = vrot.slane %v729, %v736
        %v739 = vunpack.c.l.s4 1983009808
        %v740 = vunpack.c.0.s8 %v739
        %v741 = vlaneseq
        %v742 = vshrl.u32 %v741, 7
        %v743 = vsub.s32 %v740, %v742
        %v744 = vrot.slane %v730, %v743
        %v745 = vcombine.low %v710, %v718
        %v746 = vcombine.high %v710, %v718
        %v748 = vunpack.c.l.s4 1983009808
        %v749 = vunpack.c.0.s8 %v748
        %v750 = vlaneseq
        %v751 = vshrl.u32 %v750, 7
        %v752 = vsub.s32 %v749, %v751
        %v753 = vrot.slane %v745, %v752
        %v755 = vunpack.c.l.s4 1983009808
        %v756 = vunpack.c.0.s8 %v755
        %v757 = vlaneseq
        %v758 = vshrl.u32 %v757, 7
        %v759 = vsub.s32 %v756, %v758
        %v760 = vrot.slane %v746, %v759
        %v761 = vcombine.low %v737, %v753
        %v762 = vcombine.high %v737, %v753
        %v764 = vunpack.c.l.s4 1934713408
        %v765 = vunpack.c.0.s8 %v764
        %v766 = vlaneseq
        %v767 = vshrl.u32 %v766, 7
        %v768 = vsub.s32 %v765, %v767
        %v769 = vrot.slane %v761, %v768
        %v771 = vunpack.c.l.s4 1934713408
        %v772 = vunpack.c.0.s8 %v771
        %v773 = vlaneseq
        %v774 = vshrl.u32 %v773, 7
        %v775 = vsub.s32 %v772, %v774
        %v776 = vrot.slane %v762, %v775
        %v777 = vcombine.low %v744, %v760
        %v778 = vcombine.high %v744, %v760
        %v780 = vunpack.c.l.s4 1934713408
        %v781 = vunpack.c.0.s8 %v780
        %v782 = vlaneseq
        %v783 = vshrl.u32 %v782, 7
        %v784 = vsub.s32 %v781, %v783
        %v785 = vrot.slane %v777, %v784
        %v787 = vunpack.c.l.s4 1934713408
        %v788 = vunpack.c.0.s8 %v787
        %v789 = vlaneseq
        %v790 = vshrl.u32 %v789, 7
        %v791 = vsub.s32 %v788, %v790
        %v792 = vrot.slane %v778, %v791
        %v793 = vcombine.high %v769, 0.0
        %v794 = vcombine.high %v776, 0.0
        %v795 = vcombine.high %v785, 0.0
        %v796 = vcombine.high %v792, 0.0
        %v797 = vcombine.low %v708, %v716
        %v798 = vcombine.high %v708, %v716
        %v800 = vunpack.c.l.s4 1983009808
        %v801 = vunpack.c.0.s8 %v800
        %v802 = vlaneseq
        %v803 = vshrl.u32 %v802, 7
        %v804 = vsub.s32 %v801, %v803
        %v805 = vrot.slane %v797, %v804
        %v807 = vunpack.c.l.s4 1983009808
        %v808 = vunpack.c.0.s8 %v807
        %v809 = vlaneseq
        %v810 = vshrl.u32 %v809, 7
        %v811 = vsub.s32 %v808, %v810
        %v812 = vrot.slane %v798, %v811
        %v813 = vcombine.low %v712, %v720
        %v814 = vcombine.high %v712, %v720
        %v816 = vunpack.c.l.s4 1983009808
        %v817 = vunpack.c.0.s8 %v816
        %v818 = vlaneseq
        %v819 = vshrl.u32 %v818, 7
        %v820 = vsub.s32 %v817, %v819
        %v821 = vrot.slane %v813, %v820
        %v823 = vunpack.c.l.s4 1983009808
        %v824 = vunpack.c.0.s8 %v823
        %v825 = vlaneseq
        %v826 = vshrl.u32 %v825, 7
        %v827 = vsub.s32 %v824, %v826
        %v828 = vrot.slane %v814, %v827
        %v829 = vcombine.low %v805, %v821
        %v830 = vcombine.high %v805, %v821
        %v832 = vunpack.c.l.s4 1934713408
        %v833 = vunpack.c.0.s8 %v832
        %v834 = vlaneseq
        %v835 = vshrl.u32 %v834, 7
        %v836 = vsub.s32 %v833, %v835
        %v837 = vrot.slane %v829, %v836
        %v839 = vunpack.c.l.s4 1934713408
        %v840 = vunpack.c.0.s8 %v839
        %v841 = vlaneseq
        %v842 = vshrl.u32 %v841, 7
        %v843 = vsub.s32 %v840, %v842
        %v844 = vrot.slane %v830, %v843
        %v845 = vcombine.low %v812, %v828
        %v846 = vcombine.high %v812, %v828
        %v848 = vunpack.c.l.s4 1934713408
        %v849 = vunpack.c.0.s8 %v848
        %v850 = vlaneseq
        %v851 = vshrl.u32 %v850, 7
        %v852 = vsub.s32 %v849, %v851
        %v853 = vrot.slane %v845, %v852
        %v855 = vunpack.c.l.s4 1934713408
        %v856 = vunpack.c.0.s8 %v855
        %v857 = vlaneseq
        %v858 = vshrl.u32 %v857, 7
        %v859 = vsub.s32 %v856, %v858
        %v860 = vrot.slane %v846, %v859
        %v861 = vcombine.high %v837, 0.0
        %v862 = vcombine.high %v844, 0.0
        %v863 = vcombine.high %v853, 0.0
        %v864 = vcombine.high %v860, 0.0
        %v865 = vcombine.low %v769, %v776
        %v867 = vunpack.c.l.s4 1983009808
        %v868 = vunpack.c.0.s8 %v867
        %v869 = vlaneseq
        %v870 = vshrl.u32 %v869, 7
        %v871 = vsub.s32 %v868, %v870
        %v872 = vrot.slane %v865, %v871
        %v873 = vcombine.low %v793, %v794
        %v875 = vunpack.c.l.s4 1983009808
        %v876 = vunpack.c.0.s8 %v875
        %v877 = vlaneseq
        %v878 = vshrl.u32 %v877, 7
        %v879 = vsub.s32 %v876, %v878
        %v880 = vrot.slane %v873, %v879
        %v881 = vcombine.low %v785, %v792
        %v883 = vunpack.c.l.s4 1983009808
        %v884 = vunpack.c.0.s8 %v883
        %v885 = vlaneseq
        %v886 = vshrl.u32 %v885, 7
        %v887 = vsub.s32 %v884, %v886
        %v888 = vrot.slane %v881, %v887
        %v889 = vcombine.low %v795, %v796
        %v891 = vunpack.c.l.s4 1983009808
        %v892 = vunpack.c.0.s8 %v891
        %v893 = vlaneseq
        %v894 = vshrl.u32 %v893, 7
        %v895 = vsub.s32 %v892, %v894
        %v896 = vrot.slane %v889, %v895
        %v897 = vcombine.low %v872, %v880
        %v898 = vcombine.high %v872, %v880
        %v900 = vunpack.c.l.s4 1934713408
        %v901 = vunpack.c.0.s8 %v900
        %v902 = vlaneseq
        %v903 = vshrl.u32 %v902, 7
        %v904 = vsub.s32 %v901, %v903
        %v905 = vrot.slane %v897, %v904
        %v907 = vunpack.c.l.s4 1934713408
        %v908 = vunpack.c.0.s8 %v907
        %v909 = vlaneseq
        %v910 = vshrl.u32 %v909, 7
        %v911 = vsub.s32 %v908, %v910
        %v912 = vrot.slane %v898, %v911
        %v913 = vcombine.low %v888, %v896
        %v914 = vcombine.high %v888, %v896
        %v916 = vunpack.c.l.s4 1934713408
        %v917 = vunpack.c.0.s8 %v916
        %v918 = vlaneseq
        %v919 = vshrl.u32 %v918, 7
        %v920 = vsub.s32 %v917, %v919
        %v921 = vrot.slane %v913, %v920
        %v923 = vunpack.c.l.s4 1934713408
        %v924 = vunpack.c.0.s8 %v923
        %v925 = vlaneseq
        %v926 = vshrl.u32 %v925, 7
        %v927 = vsub.s32 %v924, %v926
        %v928 = vrot.slane %v914, %v927
        %v929 = vcombine.low %v905, %v921
        %v930 = vcombine.high %v905, %v921
        %v931 = vcombine.low %v912, %v928
        %v932 = vcombine.high %v912, %v928
        %v933 = vcombine.low %v837, %v844
        %v935 = vunpack.c.l.s4 1983009808
        %v936 = vunpack.c.0.s8 %v935
        %v937 = vlaneseq
        %v938 = vshrl.u32 %v937, 7
        %v939 = vsub.s32 %v936, %v938
        %v940 = vrot.slane %v933, %v939
        %v941 = vcombine.low %v861, %v862
        %v943 = vunpack.c.l.s4 1983009808
        %v944 = vunpack.c.0.s8 %v943
        %v945 = vlaneseq
        %v946 = vshrl.u32 %v945, 7
        %v947 = vsub.s32 %v944, %v946
        %v948 = vrot.slane %v941, %v947
        %v949 = vcombine.low %v853, %v860
        %v951 = vunpack.c.l.s4 1983009808
        %v952 = vunpack.c.0.s8 %v951
        %v953 = vlaneseq
        %v954 = vshrl.u32 %v953, 7
        %v955 = vsub.s32 %v952, %v954
        %v956 = vrot.slane %v949, %v955
        %v957 = vcombine.low %v863, %v864
        %v959 = vunpack.c.l.s4 1983009808
        %v960 = vunpack.c.0.s8 %v959
        %v961 = vlaneseq
        %v962 = vshrl.u32 %v961, 7
        %v963 = vsub.s32 %v960, %v962
        %v964 = vrot.slane %v957, %v963
        %v965 = vcombine.low %v940, %v948
        %v966 = vcombine.high %v940, %v948
        %v968 = vunpack.c.l.s4 1934713408
        %v969 = vunpack.c.0.s8 %v968
        %v970 = vlaneseq
        %v971 = vshrl.u32 %v970, 7
        %v972 = vsub.s32 %v969, %v971
        %v973 = vrot.slane %v965, %v972
        %v975 = vunpack.c.l.s4 1934713408
        %v976 = vunpack.c.0.s8 %v975
        %v977 = vlaneseq
        %v978 = vshrl.u32 %v977, 7
        %v979 = vsub.s32 %v976, %v978
        %v980 = vrot.slane %v966, %v979
        %v981 = vcombine.low %v956, %v964
        %v982 = vcombine.high %v956, %v964
        %v984 = vunpack.c.l.s4 1934713408
        %v985 = vunpack.c.0.s8 %v984
        %v986 = vlaneseq
        %v987 = vshrl.u32 %v986, 7
        %v988 = vsub.s32 %v985, %v987
        %v989 = vrot.slane %v981, %v988
        %v991 = vunpack.c.l.s4 1934713408
        %v992 = vunpack.c.0.s8 %v991
        %v993 = vlaneseq
        %v994 = vshrl.u32 %v993, 7
        %v995 = vsub.s32 %v992, %v994
        %v996 = vrot.slane %v982, %v995
        %v997 = vcombine.low %v973, %v989
        %v998 = vcombine.high %v973, %v989
        %v999 = vcombine.low %v980, %v996
        %v1000 = vcombine.high %v980, %v996
        %v1001 = vpack.c.bf16 %v929, %v929
        %v1002 = vpack.c.bf16 %v930, %v930
        %v1003 = vpack.c.bf16 %v931, %v931
        %v1004 = vpack.c.bf16 %v932, %v932
        %v1005 = vpack.c.bf16 %v997, %v997
        %v1006 = vpack.c.bf16 %v998, %v998
        %v1007 = vpack.c.bf16 %v999, %v999
        %v1008 = vpack.c.bf16 %v1000, %v1000
        %1009 = vrot.lane.b32.xlu0 %v383, 64
        %v1010 = vpop.permute.xlu0 %1009
        %1011 = vrot.lane.b32.xlu0 %v386, 64
        %v1012 = vpop.permute.xlu0 %1011
        %1013 = vrot.lane.b32.xlu0 %v694, 64
        %v1014 = vpop.permute.xlu0 %1013
        %1015 = vrot.lane.b32.xlu0 %v696, 64
        %v1016 = vpop.permute.xlu0 %1015
        %1017 = vrot.lane.b32.xlu0 %v698, 64
        %v1018 = vpop.permute.xlu0 %1017
        %1019 = vrot.lane.b32.xlu0 %v700, 64
        %v1020 = vpop.permute.xlu0 %1019
        %1021 = vrot.lane.b32.xlu0 %v702, 64
        %v1022 = vpop.permute.xlu0 %1021
        %1023 = vrot.lane.b32.xlu0 %v704, 64
        %v1024 = vpop.permute.xlu0 %1023
        %v1033 = vcombine.low %v1010, %v1018
        %v1034 = vcombine.high %v1010, %v1018
        %v1036 = vunpack.c.l.s4 1983009808
        %v1037 = vunpack.c.0.s8 %v1036
        %v1038 = vlaneseq
        %v1039 = vshrl.u32 %v1038, 7
        %v1040 = vsub.s32 %v1037, %v1039
        %v1041 = vrot.slane %v1033, %v1040
        %v1043 = vunpack.c.l.s4 1983009808
        %v1044 = vunpack.c.0.s8 %v1043
        %v1045 = vlaneseq
        %v1046 = vshrl.u32 %v1045, 7
        %v1047 = vsub.s32 %v1044, %v1046
        %v1048 = vrot.slane %v1034, %v1047
        %v1049 = vcombine.low %v1014, %v1022
        %v1050 = vcombine.high %v1014, %v1022
        %v1052 = vunpack.c.l.s4 1983009808
        %v1053 = vunpack.c.0.s8 %v1052
        %v1054 = vlaneseq
        %v1055 = vshrl.u32 %v1054, 7
        %v1056 = vsub.s32 %v1053, %v1055
        %v1057 = vrot.slane %v1049, %v1056
        %v1059 = vunpack.c.l.s4 1983009808
        %v1060 = vunpack.c.0.s8 %v1059
        %v1061 = vlaneseq
        %v1062 = vshrl.u32 %v1061, 7
        %v1063 = vsub.s32 %v1060, %v1062
        %v1064 = vrot.slane %v1050, %v1063
        %v1065 = vcombine.low %v1041, %v1057
        %v1066 = vcombine.high %v1041, %v1057
        %v1068 = vunpack.c.l.s4 1934713408
        %v1069 = vunpack.c.0.s8 %v1068
        %v1070 = vlaneseq
        %v1071 = vshrl.u32 %v1070, 7
        %v1072 = vsub.s32 %v1069, %v1071
        %v1073 = vrot.slane %v1065, %v1072
        %v1075 = vunpack.c.l.s4 1934713408
        %v1076 = vunpack.c.0.s8 %v1075
        %v1077 = vlaneseq
        %v1078 = vshrl.u32 %v1077, 7
        %v1079 = vsub.s32 %v1076, %v1078
        %v1080 = vrot.slane %v1066, %v1079
        %v1081 = vcombine.low %v1048, %v1064
        %v1082 = vcombine.high %v1048, %v1064
        %v1084 = vunpack.c.l.s4 1934713408
        %v1085 = vunpack.c.0.s8 %v1084
        %v1086 = vlaneseq
        %v1087 = vshrl.u32 %v1086, 7
        %v1088 = vsub.s32 %v1085, %v1087
        %v1089 = vrot.slane %v1081, %v1088
        %v1091 = vunpack.c.l.s4 1934713408
        %v1092 = vunpack.c.0.s8 %v1091
        %v1093 = vlaneseq
        %v1094 = vshrl.u32 %v1093, 7
        %v1095 = vsub.s32 %v1092, %v1094
        %v1096 = vrot.slane %v1082, %v1095
        %v1097 = vcombine.high %v1073, 0.0
        %v1098 = vcombine.high %v1080, 0.0
        %v1099 = vcombine.high %v1089, 0.0
        %v1100 = vcombine.high %v1096, 0.0
        %v1101 = vcombine.low %v1012, %v1020
        %v1102 = vcombine.high %v1012, %v1020
        %v1104 = vunpack.c.l.s4 1983009808
        %v1105 = vunpack.c.0.s8 %v1104
        %v1106 = vlaneseq
        %v1107 = vshrl.u32 %v1106, 7
        %v1108 = vsub.s32 %v1105, %v1107
        %v1109 = vrot.slane %v1101, %v1108
        %v1111 = vunpack.c.l.s4 1983009808
        %v1112 = vunpack.c.0.s8 %v1111
        %v1113 = vlaneseq
        %v1114 = vshrl.u32 %v1113, 7
        %v1115 = vsub.s32 %v1112, %v1114
        %v1116 = vrot.slane %v1102, %v1115
        %v1117 = vcombine.low %v1016, %v1024
        %v1118 = vcombine.high %v1016, %v1024
        %v1120 = vunpack.c.l.s4 1983009808
        %v1121 = vunpack.c.0.s8 %v1120
        %v1122 = vlaneseq
        %v1123 = vshrl.u32 %v1122, 7
        %v1124 = vsub.s32 %v1121, %v1123
        %v1125 = vrot.slane %v1117, %v1124
        %v1127 = vunpack.c.l.s4 1983009808
        %v1128 = vunpack.c.0.s8 %v1127
        %v1129 = vlaneseq
        %v1130 = vshrl.u32 %v1129, 7
        %v1131 = vsub.s32 %v1128, %v1130
        %v1132 = vrot.slane %v1118, %v1131
        %v1133 = vcombine.low %v1109, %v1125
        %v1134 = vcombine.high %v1109, %v1125
        %v1136 = vunpack.c.l.s4 1934713408
        %v1137 = vunpack.c.0.s8 %v1136
        %v1138 = vlaneseq
        %v1139 = vshrl.u32 %v1138, 7
        %v1140 = vsub.s32 %v1137, %v1139
        %v1141 = vrot.slane %v1133, %v1140
        %v1143 = vunpack.c.l.s4 1934713408
        %v1144 = vunpack.c.0.s8 %v1143
        %v1145 = vlaneseq
        %v1146 = vshrl.u32 %v1145, 7
        %v1147 = vsub.s32 %v1144, %v1146
        %v1148 = vrot.slane %v1134, %v1147
        %v1149 = vcombine.low %v1116, %v1132
        %v1150 = vcombine.high %v1116, %v1132
        %v1152 = vunpack.c.l.s4 1934713408
        %v1153 = vunpack.c.0.s8 %v1152
        %v1154 = vlaneseq
        %v1155 = vshrl.u32 %v1154, 7
        %v1156 = vsub.s32 %v1153, %v1155
        %v1157 = vrot.slane %v1149, %v1156
        %v1159 = vunpack.c.l.s4 1934713408
        %v1160 = vunpack.c.0.s8 %v1159
        %v1161 = vlaneseq
        %v1162 = vshrl.u32 %v1161, 7
        %v1163 = vsub.s32 %v1160, %v1162
        %v1164 = vrot.slane %v1150, %v1163
        %v1165 = vcombine.high %v1141, 0.0
        %v1166 = vcombine.high %v1148, 0.0
        %v1167 = vcombine.high %v1157, 0.0
        %v1168 = vcombine.high %v1164, 0.0
        %v1169 = vcombine.low %v1073, %v1080
        %v1171 = vunpack.c.l.s4 1983009808
        %v1172 = vunpack.c.0.s8 %v1171
        %v1173 = vlaneseq
        %v1174 = vshrl.u32 %v1173, 7
        %v1175 = vsub.s32 %v1172, %v1174
        %v1176 = vrot.slane %v1169, %v1175
        %v1177 = vcombine.low %v1097, %v1098
        %v1179 = vunpack.c.l.s4 1983009808
        %v1180 = vunpack.c.0.s8 %v1179
        %v1181 = vlaneseq
        %v1182 = vshrl.u32 %v1181, 7
        %v1183 = vsub.s32 %v1180, %v1182
        %v1184 = vrot.slane %v1177, %v1183
        %v1185 = vcombine.low %v1089, %v1096
        %v1187 = vunpack.c.l.s4 1983009808
        %v1188 = vunpack.c.0.s8 %v1187
        %v1189 = vlaneseq
        %v1190 = vshrl.u32 %v1189, 7
        %v1191 = vsub.s32 %v1188, %v1190
        %v1192 = vrot.slane %v1185, %v1191
        %v1193 = vcombine.low %v1099, %v1100
        %v1195 = vunpack.c.l.s4 1983009808
        %v1196 = vunpack.c.0.s8 %v1195
        %v1197 = vlaneseq
        %v1198 = vshrl.u32 %v1197, 7
        %v1199 = vsub.s32 %v1196, %v1198
        %v1200 = vrot.slane %v1193, %v1199
        %v1201 = vcombine.low %v1176, %v1184
        %v1202 = vcombine.high %v1176, %v1184
        %v1204 = vunpack.c.l.s4 1934713408
        %v1205 = vunpack.c.0.s8 %v1204
        %v1206 = vlaneseq
        %v1207 = vshrl.u32 %v1206, 7
        %v1208 = vsub.s32 %v1205, %v1207
        %v1209 = vrot.slane %v1201, %v1208
        %v1211 = vunpack.c.l.s4 1934713408
        %v1212 = vunpack.c.0.s8 %v1211
        %v1213 = vlaneseq
        %v1214 = vshrl.u32 %v1213, 7
        %v1215 = vsub.s32 %v1212, %v1214
        %v1216 = vrot.slane %v1202, %v1215
        %v1217 = vcombine.low %v1192, %v1200
        %v1218 = vcombine.high %v1192, %v1200
        %v1220 = vunpack.c.l.s4 1934713408
        %v1221 = vunpack.c.0.s8 %v1220
        %v1222 = vlaneseq
        %v1223 = vshrl.u32 %v1222, 7
        %v1224 = vsub.s32 %v1221, %v1223
        %v1225 = vrot.slane %v1217, %v1224
        %v1227 = vunpack.c.l.s4 1934713408
        %v1228 = vunpack.c.0.s8 %v1227
        %v1229 = vlaneseq
        %v1230 = vshrl.u32 %v1229, 7
        %v1231 = vsub.s32 %v1228, %v1230
        %v1232 = vrot.slane %v1218, %v1231
        %v1233 = vcombine.low %v1209, %v1225
        %v1234 = vcombine.high %v1209, %v1225
        %v1235 = vcombine.low %v1216, %v1232
        %v1236 = vcombine.high %v1216, %v1232
        %v1237 = vcombine.low %v1141, %v1148
        %v1239 = vunpack.c.l.s4 1983009808
        %v1240 = vunpack.c.0.s8 %v1239
        %v1241 = vlaneseq
        %v1242 = vshrl.u32 %v1241, 7
        %v1243 = vsub.s32 %v1240, %v1242
        %v1244 = vrot.slane %v1237, %v1243
        %v1245 = vcombine.low %v1165, %v1166
        %v1247 = vunpack.c.l.s4 1983009808
        %v1248 = vunpack.c.0.s8 %v1247
        %v1249 = vlaneseq
        %v1250 = vshrl.u32 %v1249, 7
        %v1251 = vsub.s32 %v1248, %v1250
        %v1252 = vrot.slane %v1245, %v1251
        %v1253 = vcombine.low %v1157, %v1164
        %v1255 = vunpack.c.l.s4 1983009808
        %v1256 = vunpack.c.0.s8 %v1255
        %v1257 = vlaneseq
        %v1258 = vshrl.u32 %v1257, 7
        %v1259 = vsub.s32 %v1256, %v1258
        %v1260 = vrot.slane %v1253, %v1259
        %v1261 = vcombine.low %v1167, %v1168
        %v1263 = vunpack.c.l.s4 1983009808
        %v1264 = vunpack.c.0.s8 %v1263
        %v1265 = vlaneseq
        %v1266 = vshrl.u32 %v1265, 7
        %v1267 = vsub.s32 %v1264, %v1266
        %v1268 = vrot.slane %v1261, %v1267
        %v1269 = vcombine.low %v1244, %v1252
        %v1270 = vcombine.high %v1244, %v1252
        %v1272 = vunpack.c.l.s4 1934713408
        %v1273 = vunpack.c.0.s8 %v1272
        %v1274 = vlaneseq
        %v1275 = vshrl.u32 %v1274, 7
        %v1276 = vsub.s32 %v1273, %v1275
        %v1277 = vrot.slane %v1269, %v1276
        %v1279 = vunpack.c.l.s4 1934713408
        %v1280 = vunpack.c.0.s8 %v1279
        %v1281 = vlaneseq
        %v1282 = vshrl.u32 %v1281, 7
        %v1283 = vsub.s32 %v1280, %v1282
        %v1284 = vrot.slane %v1270, %v1283
        %v1285 = vcombine.low %v1260, %v1268
        %v1286 = vcombine.high %v1260, %v1268
        %v1288 = vunpack.c.l.s4 1934713408
        %v1289 = vunpack.c.0.s8 %v1288
        %v1290 = vlaneseq
        %v1291 = vshrl.u32 %v1290, 7
        %v1292 = vsub.s32 %v1289, %v1291
        %v1293 = vrot.slane %v1285, %v1292
        %v1295 = vunpack.c.l.s4 1934713408
        %v1296 = vunpack.c.0.s8 %v1295
        %v1297 = vlaneseq
        %v1298 = vshrl.u32 %v1297, 7
        %v1299 = vsub.s32 %v1296, %v1298
        %v1300 = vrot.slane %v1286, %v1299
        %v1301 = vcombine.low %v1277, %v1293
        %v1302 = vcombine.high %v1277, %v1293
        %v1303 = vcombine.low %v1284, %v1300
        %v1304 = vcombine.high %v1284, %v1300
        %v1305 = vpack.c.bf16 %v1233, %v1233
        %v1306 = vpack.c.bf16 %v1234, %v1234
        %v1307 = vpack.c.bf16 %v1235, %v1235
        %v1308 = vpack.c.bf16 %v1236, %v1236
        %v1309 = vpack.c.bf16 %v1301, %v1301
        %v1310 = vpack.c.bf16 %v1302, %v1302
        %v1311 = vpack.c.bf16 %v1303, %v1303
        %v1312 = vpack.c.bf16 %v1304, %v1304
        %vm1313 = vcmask 64512
        %v1315 = vsel %vm1313, %v683, 0
        %v1318 = vsel %vm1313, %v1001, 0
        %1320 = vmatprep.subr.bf16.mxu0 0
        %1321 = vmatpush1.bf16.xpose.msra.mxu0 %v1318
        %1322 = vmatprep.subr.bf16.mxu0 0
        %1323 = vmatpush1.bf16.xpose.msra.mxu0 0
        %1324 = vmatprep.subr.bf16.mxu0 0
        %1325 = vmatpush1.bf16.xpose.msra.mxu0 0
        %1326 = vmatprep.subr.bf16.mxu0 0
        %1327 = vmatpush1.bf16.xpose.msra.mxu0 0
        %1328 = vmatprep.subr.bf16.mxu0 0
        %1329 = vmatpush1.bf16.xpose.msra.mxu0 0
        %1330 = vmatprep.subr.bf16.mxu0 0
        %1331 = vmatpush1.bf16.xpose.msra.mxu0 0
        %1332 = vmatprep.subr.bf16.mxu0 0
        %1333 = vmatpush1.bf16.xpose.msra.mxu0 0
        %1334 = vmatprep.subr.bf16.mxu0 0
        %1335 = vmatpush1.bf16.xpose.msra.mxu0 0
        %1336 = vmatprep.subr.bf16.mxu0 0
        %1337 = vmatpush1.bf16.xpose.msra.mxu0 0
        %1338 = vmatprep.subr.bf16.mxu0 0
        %1339 = vmatpush1.bf16.xpose.msra.mxu0 0
        %1340 = vmatprep.subr.bf16.mxu0 0
        %1341 = vmatpush1.bf16.xpose.msra.mxu0 0
        %1342 = vmatprep.subr.bf16.mxu0 0
        %1343 = vmatpush1.bf16.xpose.msra.mxu0 0
        %1344 = vmatprep.subr.bf16.mxu0 0
        %1345 = vmatpush1.bf16.xpose.msra.mxu0 0
        %1346 = vmatprep.subr.bf16.mxu0 0
        %1347 = vmatpush1.bf16.xpose.msra.mxu0 0
        %1348 = vmatprep.subr.bf16.mxu0 0
        %1349 = vmatpush1.bf16.xpose.msra.mxu0 0
        %1350 = vmatprep.subr.bf16.mxu0 0
        %1351 = vmatpush1.bf16.xpose.msra.mxu0 0
        %1352 = vmatprep.mubr.bf16.mxu0 0
        %1353 = vmatmul.mubr.bf16.gmra.mrb[0].mxu0 %v1315
        %v1354 = vpop.f32.mrb[0].mxu0
        %v1355 = vadd.f32 0.0, %v1354
        %v1356 = vpop.f32.mrb[0].mxu0
        %v1357 = vpop.f32.mrb[0].mxu0
        %v1358 = vpop.f32.mrb[0].mxu0
        %1359 = vdwg.mxu0
        %v1361 = vsel %vm1313, %v684, 0
        %v1364 = vsel %vm1313, %v1002, 0
        %1366 = vmatprep.subr.bf16.mxu0 0
        %1367 = vmatpush1.bf16.xpose.msra.mxu0 %v1364
        %1368 = vmatprep.subr.bf16.mxu0 0
        %1369 = vmatpush1.bf16.xpose.msra.mxu0 0
        %1370 = vmatprep.subr.bf16.mxu0 0
        %1371 = vmatpush1.bf16.xpose.msra.mxu0 0
        %1372 = vmatprep.subr.bf16.mxu0 0
        %1373 = vmatpush1.bf16.xpose.msra.mxu0 0
        %1374 = vmatprep.subr.bf16.mxu0 0
        %1375 = vmatpush1.bf16.xpose.msra.mxu0 0
        %1376 = vmatprep.subr.bf16.mxu0 0
        %1377 = vmatpush1.bf16.xpose.msra.mxu0 0
        %1378 = vmatprep.subr.bf16.mxu0 0
        %1379 = vmatpush1.bf16.xpose.msra.mxu0 0
        %1380 = vmatprep.subr.bf16.mxu0 0
        %1381 = vmatpush1.bf16.xpose.msra.mxu0 0
        %1382 = vmatprep.subr.bf16.mxu0 0
        %1383 = vmatpush1.bf16.xpose.msra.mxu0 0
        %1384 = vmatprep.subr.bf16.mxu0 0
        %1385 = vmatpush1.bf16.xpose.msra.mxu0 0
        %1386 = vmatprep.subr.bf16.mxu0 0
        %1387 = vmatpush1.bf16.xpose.msra.mxu0 0
        %1388 = vmatprep.subr.bf16.mxu0 0
        %1389 = vmatpush1.bf16.xpose.msra.mxu0 0
        %1390 = vmatprep.subr.bf16.mxu0 0
        %1391 = vmatpush1.bf16.xpose.msra.mxu0 0
        %1392 = vmatprep.subr.bf16.mxu0 0
        %1393 = vmatpush1.bf16.xpose.msra.mxu0 0
        %1394 = vmatprep.subr.bf16.mxu0 0
        %1395 = vmatpush1.bf16.xpose.msra.mxu0 0
        %1396 = vmatprep.subr.bf16.mxu0 0
        %1397 = vmatpush1.bf16.xpose.msra.mxu0 0
        %1398 = vmatprep.mubr.bf16.mxu0 0
        %1399 = vmatmul.mubr.bf16.gmra.mrb[0].mxu0 %v1361
        %v1400 = vpop.f32.mrb[0].mxu0
        %v1401 = vadd.f32 0.0, %v1400
        %v1402 = vpop.f32.mrb[0].mxu0
        %v1403 = vpop.f32.mrb[0].mxu0
        %v1404 = vpop.f32.mrb[0].mxu0
        %1405 = vdwg.mxu0
        %v1407 = vsel %vm1313, %v685, 0
        %v1410 = vsel %vm1313, %v1003, 0
        %1412 = vmatprep.subr.bf16.mxu0 0
        %1413 = vmatpush1.bf16.xpose.msra.mxu0 %v1410
        %1414 = vmatprep.subr.bf16.mxu0 0
        %1415 = vmatpush1.bf16.xpose.msra.mxu0 0
        %1416 = vmatprep.subr.bf16.mxu0 0
        %1417 = vmatpush1.bf16.xpose.msra.mxu0 0
        %1418 = vmatprep.subr.bf16.mxu0 0
        %1419 = vmatpush1.bf16.xpose.msra.mxu0 0
        %1420 = vmatprep.subr.bf16.mxu0 0
        %1421 = vmatpush1.bf16.xpose.msra.mxu0 0
        %1422 = vmatprep.subr.bf16.mxu0 0
        %1423 = vmatpush1.bf16.xpose.msra.mxu0 0
        %1424 = vmatprep.subr.bf16.mxu0 0
        %1425 = vmatpush1.bf16.xpose.msra.mxu0 0
        %1426 = vmatprep.subr.bf16.mxu0 0
        %1427 = vmatpush1.bf16.xpose.msra.mxu0 0
        %1428 = vmatprep.subr.bf16.mxu0 0
        %1429 = vmatpush1.bf16.xpose.msra.mxu0 0
        %1430 = vmatprep.subr.bf16.mxu0 0
        %1431 = vmatpush1.bf16.xpose.msra.mxu0 0
        %1432 = vmatprep.subr.bf16.mxu0 0
        %1433 = vmatpush1.bf16.xpose.msra.mxu0 0
        %1434 = vmatprep.subr.bf16.mxu0 0
        %1435 = vmatpush1.bf16.xpose.msra.mxu0 0
        %1436 = vmatprep.subr.bf16.mxu0 0
        %1437 = vmatpush1.bf16.xpose.msra.mxu0 0
        %1438 = vmatprep.subr.bf16.mxu0 0
        %1439 = vmatpush1.bf16.xpose.msra.mxu0 0
        %1440 = vmatprep.subr.bf16.mxu0 0
        %1441 = vmatpush1.bf16.xpose.msra.mxu0 0
        %1442 = vmatprep.subr.bf16.mxu0 0
        %1443 = vmatpush1.bf16.xpose.msra.mxu0 0
        %1444 = vmatprep.mubr.bf16.mxu0 0
        %1445 = vmatmul.mubr.bf16.gmra.mrb[0].mxu0 %v1407
        %v1446 = vpop.f32.mrb[0].mxu0
        %v1447 = vadd.f32 0.0, %v1446
        %v1448 = vpop.f32.mrb[0].mxu0
        %v1449 = vpop.f32.mrb[0].mxu0
        %v1450 = vpop.f32.mrb[0].mxu0
        %1451 = vdwg.mxu0
        %v1453 = vsel %vm1313, %v686, 0
        %v1456 = vsel %vm1313, %v1004, 0
        %1458 = vmatprep.subr.bf16.mxu0 0
        %1459 = vmatpush1.bf16.xpose.msra.mxu0 %v1456
        %1460 = vmatprep.subr.bf16.mxu0 0
        %1461 = vmatpush1.bf16.xpose.msra.mxu0 0
        %1462 = vmatprep.subr.bf16.mxu0 0
        %1463 = vmatpush1.bf16.xpose.msra.mxu0 0
        %1464 = vmatprep.subr.bf16.mxu0 0
        %1465 = vmatpush1.bf16.xpose.msra.mxu0 0
        %1466 = vmatprep.subr.bf16.mxu0 0
        %1467 = vmatpush1.bf16.xpose.msra.mxu0 0
        %1468 = vmatprep.subr.bf16.mxu0 0
        %1469 = vmatpush1.bf16.xpose.msra.mxu0 0
        %1470 = vmatprep.subr.bf16.mxu0 0
        %1471 = vmatpush1.bf16.xpose.msra.mxu0 0
        %1472 = vmatprep.subr.bf16.mxu0 0
        %1473 = vmatpush1.bf16.xpose.msra.mxu0 0
        %1474 = vmatprep.subr.bf16.mxu0 0
        %1475 = vmatpush1.bf16.xpose.msra.mxu0 0
        %1476 = vmatprep.subr.bf16.mxu0 0
        %1477 = vmatpush1.bf16.xpose.msra.mxu0 0
        %1478 = vmatprep.subr.bf16.mxu0 0
        %1479 = vmatpush1.bf16.xpose.msra.mxu0 0
        %1480 = vmatprep.subr.bf16.mxu0 0
        %1481 = vmatpush1.bf16.xpose.msra.mxu0 0
        %1482 = vmatprep.subr.bf16.mxu0 0
        %1483 = vmatpush1.bf16.xpose.msra.mxu0 0
        %1484 = vmatprep.subr.bf16.mxu0 0
        %1485 = vmatpush1.bf16.xpose.msra.mxu0 0
        %1486 = vmatprep.subr.bf16.mxu0 0
        %1487 = vmatpush1.bf16.xpose.msra.mxu0 0
        %1488 = vmatprep.subr.bf16.mxu0 0
        %1489 = vmatpush1.bf16.xpose.msra.mxu0 0
        %1490 = vmatprep.mubr.bf16.mxu0 0
        %1491 = vmatmul.mubr.bf16.gmra.mrb[0].mxu0 %v1453
        %v1492 = vpop.f32.mrb[0].mxu0
        %v1493 = vadd.f32 0.0, %v1492
        %v1494 = vpop.f32.mrb[0].mxu0
        %v1495 = vpop.f32.mrb[0].mxu0
        %v1496 = vpop.f32.mrb[0].mxu0
        %1497 = vdwg.mxu0
        %v1499 = vsel %vm1313, %v687, 0
        %v1502 = vsel %vm1313, %v1005, 0
        %1504 = vmatprep.subr.bf16.mxu0 0
        %1505 = vmatpush1.bf16.xpose.msra.mxu0 %v1502
        %1506 = vmatprep.subr.bf16.mxu0 0
        %1507 = vmatpush1.bf16.xpose.msra.mxu0 0
        %1508 = vmatprep.subr.bf16.mxu0 0
        %1509 = vmatpush1.bf16.xpose.msra.mxu0 0
        %1510 = vmatprep.subr.bf16.mxu0 0
        %1511 = vmatpush1.bf16.xpose.msra.mxu0 0
        %1512 = vmatprep.subr.bf16.mxu0 0
        %1513 = vmatpush1.bf16.xpose.msra.mxu0 0
        %1514 = vmatprep.subr.bf16.mxu0 0
        %1515 = vmatpush1.bf16.xpose.msra.mxu0 0
        %1516 = vmatprep.subr.bf16.mxu0 0
        %1517 = vmatpush1.bf16.xpose.msra.mxu0 0
        %1518 = vmatprep.subr.bf16.mxu0 0
        %1519 = vmatpush1.bf16.xpose.msra.mxu0 0
        %1520 = vmatprep.subr.bf16.mxu0 0
        %1521 = vmatpush1.bf16.xpose.msra.mxu0 0
        %1522 = vmatprep.subr.bf16.mxu0 0
        %1523 = vmatpush1.bf16.xpose.msra.mxu0 0
        %1524 = vmatprep.subr.bf16.mxu0 0
        %1525 = vmatpush1.bf16.xpose.msra.mxu0 0
        %1526 = vmatprep.subr.bf16.mxu0 0
        %1527 = vmatpush1.bf16.xpose.msra.mxu0 0
        %1528 = vmatprep.subr.bf16.mxu0 0
        %1529 = vmatpush1.bf16.xpose.msra.mxu0 0
        %1530 = vmatprep.subr.bf16.mxu0 0
        %1531 = vmatpush1.bf16.xpose.msra.mxu0 0
        %1532 = vmatprep.subr.bf16.mxu0 0
        %1533 = vmatpush1.bf16.xpose.msra.mxu0 0
        %1534 = vmatprep.subr.bf16.mxu0 0
        %1535 = vmatpush1.bf16.xpose.msra.mxu0 0
        %1536 = vmatprep.mubr.bf16.mxu0 0
        %1537 = vmatmul.mubr.bf16.gmra.mrb[0].mxu0 %v1499
        %v1538 = vpop.f32.mrb[0].mxu0
        %v1539 = vadd.f32 0.0, %v1538
        %v1540 = vpop.f32.mrb[0].mxu0
        %v1541 = vpop.f32.mrb[0].mxu0
        %v1542 = vpop.f32.mrb[0].mxu0
        %1543 = vdwg.mxu0
        %v1545 = vsel %vm1313, %v688, 0
        %v1548 = vsel %vm1313, %v1006, 0
        %1550 = vmatprep.subr.bf16.mxu0 0
        %1551 = vmatpush1.bf16.xpose.msra.mxu0 %v1548
        %1552 = vmatprep.subr.bf16.mxu0 0
        %1553 = vmatpush1.bf16.xpose.msra.mxu0 0
        %1554 = vmatprep.subr.bf16.mxu0 0
        %1555 = vmatpush1.bf16.xpose.msra.mxu0 0
        %1556 = vmatprep.subr.bf16.mxu0 0
        %1557 = vmatpush1.bf16.xpose.msra.mxu0 0
        %1558 = vmatprep.subr.bf16.mxu0 0
        %1559 = vmatpush1.bf16.xpose.msra.mxu0 0
        %1560 = vmatprep.subr.bf16.mxu0 0
        %1561 = vmatpush1.bf16.xpose.msra.mxu0 0
        %1562 = vmatprep.subr.bf16.mxu0 0
        %1563 = vmatpush1.bf16.xpose.msra.mxu0 0
        %1564 = vmatprep.subr.bf16.mxu0 0
        %1565 = vmatpush1.bf16.xpose.msra.mxu0 0
        %1566 = vmatprep.subr.bf16.mxu0 0
        %1567 = vmatpush1.bf16.xpose.msra.mxu0 0
        %1568 = vmatprep.subr.bf16.mxu0 0
        %1569 = vmatpush1.bf16.xpose.msra.mxu0 0
        %1570 = vmatprep.subr.bf16.mxu0 0
        %1571 = vmatpush1.bf16.xpose.msra.mxu0 0
        %1572 = vmatprep.subr.bf16.mxu0 0
        %1573 = vmatpush1.bf16.xpose.msra.mxu0 0
        %1574 = vmatprep.subr.bf16.mxu0 0
        %1575 = vmatpush1.bf16.xpose.msra.mxu0 0
        %1576 = vmatprep.subr.bf16.mxu0 0
        %1577 = vmatpush1.bf16.xpose.msra.mxu0 0
        %1578 = vmatprep.subr.bf16.mxu0 0
        %1579 = vmatpush1.bf16.xpose.msra.mxu0 0
        %1580 = vmatprep.subr.bf16.mxu0 0
        %1581 = vmatpush1.bf16.xpose.msra.mxu0 0
        %1582 = vmatprep.mubr.bf16.mxu0 0
        %1583 = vmatmul.mubr.bf16.gmra.mrb[0].mxu0 %v1545
        %v1584 = vpop.f32.mrb[0].mxu0
        %v1585 = vadd.f32 0.0, %v1584
        %v1586 = vpop.f32.mrb[0].mxu0
        %v1587 = vpop.f32.mrb[0].mxu0
        %v1588 = vpop.f32.mrb[0].mxu0
        %1589 = vdwg.mxu0
        %v1591 = vsel %vm1313, %v689, 0
        %v1594 = vsel %vm1313, %v1007, 0
        %1596 = vmatprep.subr.bf16.mxu0 0
        %1597 = vmatpush1.bf16.xpose.msra.mxu0 %v1594
        %1598 = vmatprep.subr.bf16.mxu0 0
        %1599 = vmatpush1.bf16.xpose.msra.mxu0 0
        %1600 = vmatprep.subr.bf16.mxu0 0
        %1601 = vmatpush1.bf16.xpose.msra.mxu0 0
        %1602 = vmatprep.subr.bf16.mxu0 0
        %1603 = vmatpush1.bf16.xpose.msra.mxu0 0
        %1604 = vmatprep.subr.bf16.mxu0 0
        %1605 = vmatpush1.bf16.xpose.msra.mxu0 0
        %1606 = vmatprep.subr.bf16.mxu0 0
        %1607 = vmatpush1.bf16.xpose.msra.mxu0 0
        %1608 = vmatprep.subr.bf16.mxu0 0
        %1609 = vmatpush1.bf16.xpose.msra.mxu0 0
        %1610 = vmatprep.subr.bf16.mxu0 0
        %1611 = vmatpush1.bf16.xpose.msra.mxu0 0
        %1612 = vmatprep.subr.bf16.mxu0 0
        %1613 = vmatpush1.bf16.xpose.msra.mxu0 0
        %1614 = vmatprep.subr.bf16.mxu0 0
        %1615 = vmatpush1.bf16.xpose.msra.mxu0 0
        %1616 = vmatprep.subr.bf16.mxu0 0
        %1617 = vmatpush1.bf16.xpose.msra.mxu0 0
        %1618 = vmatprep.subr.bf16.mxu0 0
        %1619 = vmatpush1.bf16.xpose.msra.mxu0 0
        %1620 = vmatprep.subr.bf16.mxu0 0
        %1621 = vmatpush1.bf16.xpose.msra.mxu0 0
        %1622 = vmatprep.subr.bf16.mxu0 0
        %1623 = vmatpush1.bf16.xpose.msra.mxu0 0
        %1624 = vmatprep.subr.bf16.mxu0 0
        %1625 = vmatpush1.bf16.xpose.msra.mxu0 0
        %1626 = vmatprep.subr.bf16.mxu0 0
        %1627 = vmatpush1.bf16.xpose.msra.mxu0 0
        %1628 = vmatprep.mubr.bf16.mxu0 0
        %1629 = vmatmul.mubr.bf16.gmra.mrb[0].mxu0 %v1591
        %v1630 = vpop.f32.mrb[0].mxu0
        %v1631 = vadd.f32 0.0, %v1630
        %v1632 = vpop.f32.mrb[0].mxu0
        %v1633 = vpop.f32.mrb[0].mxu0
        %v1634 = vpop.f32.mrb[0].mxu0
        %1635 = vdwg.mxu0
        %v1637 = vsel %vm1313, %v690, 0
        %v1640 = vsel %vm1313, %v1008, 0
        %1642 = vmatprep.subr.bf16.mxu0 0
        %1643 = vmatpush1.bf16.xpose.msra.mxu0 %v1640
        %1644 = vmatprep.subr.bf16.mxu0 0
        %1645 = vmatpush1.bf16.xpose.msra.mxu0 0
        %1646 = vmatprep.subr.bf16.mxu0 0
        %1647 = vmatpush1.bf16.xpose.msra.mxu0 0
        %1648 = vmatprep.subr.bf16.mxu0 0
        %1649 = vmatpush1.bf16.xpose.msra.mxu0 0
        %1650 = vmatprep.subr.bf16.mxu0 0
        %1651 = vmatpush1.bf16.xpose.msra.mxu0 0
        %1652 = vmatprep.subr.bf16.mxu0 0
        %1653 = vmatpush1.bf16.xpose.msra.mxu0 0
        %1654 = vmatprep.subr.bf16.mxu0 0
        %1655 = vmatpush1.bf16.xpose.msra.mxu0 0
        %1656 = vmatprep.subr.bf16.mxu0 0
        %1657 = vmatpush1.bf16.xpose.msra.mxu0 0
        %1658 = vmatprep.subr.bf16.mxu0 0
        %1659 = vmatpush1.bf16.xpose.msra.mxu0 0
        %1660 = vmatprep.subr.bf16.mxu0 0
        %1661 = vmatpush1.bf16.xpose.msra.mxu0 0
        %1662 = vmatprep.subr.bf16.mxu0 0
        %1663 = vmatpush1.bf16.xpose.msra.mxu0 0
        %1664 = vmatprep.subr.bf16.mxu0 0
        %1665 = vmatpush1.bf16.xpose.msra.mxu0 0
        %1666 = vmatprep.subr.bf16.mxu0 0
        %1667 = vmatpush1.bf16.xpose.msra.mxu0 0
        %1668 = vmatprep.subr.bf16.mxu0 0
        %1669 = vmatpush1.bf16.xpose.msra.mxu0 0
        %1670 = vmatprep.subr.bf16.mxu0 0
        %1671 = vmatpush1.bf16.xpose.msra.mxu0 0
        %1672 = vmatprep.subr.bf16.mxu0 0
        %1673 = vmatpush1.bf16.xpose.msra.mxu0 0
        %1674 = vmatprep.mubr.bf16.mxu0 0
        %1675 = vmatmul.mubr.bf16.gmra.mrb[0].mxu0 %v1637
        %v1676 = vpop.f32.mrb[0].mxu0
        %v1677 = vadd.f32 0.0, %v1676
        %v1678 = vpop.f32.mrb[0].mxu0
        %v1679 = vpop.f32.mrb[0].mxu0
        %v1680 = vpop.f32.mrb[0].mxu0
        %1681 = vdwg.mxu0
        %v1682 = vsel %vm1313, %v1355, -inf
        %1683 = vmax.xlane.f32.xlu0 %v1682
        %v1684 = vpop.xlane.xlu0 %1683
        %v1685 = vsel %vm1313, %v1401, -inf
        %1686 = vmax.xlane.f32.xlu0 %v1685
        %v1687 = vpop.xlane.xlu0 %1686
        %v1688 = vsel %vm1313, %v1447, -inf
        %1689 = vmax.xlane.f32.xlu0 %v1688
        %v1690 = vpop.xlane.xlu0 %1689
        %v1691 = vsel %vm1313, %v1493, -inf
        %1692 = vmax.xlane.f32.xlu0 %v1691
        %v1693 = vpop.xlane.xlu0 %1692
        %v1694 = vsel %vm1313, %v1539, -inf
        %1695 = vmax.xlane.f32.xlu0 %v1694
        %v1696 = vpop.xlane.xlu0 %1695
        %v1697 = vsel %vm1313, %v1585, -inf
        %1698 = vmax.xlane.f32.xlu0 %v1697
        %v1699 = vpop.xlane.xlu0 %1698
        %v1700 = vsel %vm1313, %v1631, -inf
        %1701 = vmax.xlane.f32.xlu0 %v1700
        %v1702 = vpop.xlane.xlu0 %1701
        %v1703 = vsel %vm1313, %v1677, -inf
        %1704 = vmax.xlane.f32.xlu0 %v1703
        %v1705 = vpop.xlane.xlu0 %1704
        %v1706 = vsub.f32 %v1355, %v1684
        %v1707 = vsub.f32 %v1401, %v1687
        %v1708 = vsub.f32 %v1447, %v1690
        %v1709 = vsub.f32 %v1493, %v1693
        %v1710 = vsub.f32 %v1539, %v1696
        %v1711 = vsub.f32 %v1585, %v1699
        %v1712 = vsub.f32 %v1631, %v1702
        %v1713 = vsub.f32 %v1677, %v1705
        %v1714 = vmul.f32 %v1706, 1.442695
        %v1715 = vpow.pop %v1714
        %v1716 = vmul.f32 %v1707, 1.442695
        %v1717 = vpow.pop %v1716
        %v1718 = vmul.f32 %v1708, 1.442695
        %v1719 = vpow.pop %v1718
        %v1720 = vmul.f32 %v1709, 1.442695
        %v1721 = vpow.pop %v1720
        %v1722 = vmul.f32 %v1710, 1.442695
        %v1723 = vpow.pop %v1722
        %v1724 = vmul.f32 %v1711, 1.442695
        %v1725 = vpow.pop %v1724
        %v1726 = vmul.f32 %v1712, 1.442695
        %v1727 = vpow.pop %v1726
        %v1728 = vmul.f32 %v1713, 1.442695
        %v1729 = vpow.pop %v1728
        %v1730 = vsel %vm1313, %v1715, 0.0
        %1731 = vadd.xlane.f32.xlu0 %v1730
        %v1732 = vpop.xlane.xlu0 %1731
        %v1733 = vsel %vm1313, %v1717, 0.0
        %1734 = vadd.xlane.f32.xlu0 %v1733
        %v1735 = vpop.xlane.xlu0 %1734
        %v1736 = vsel %vm1313, %v1719, 0.0
        %1737 = vadd.xlane.f32.xlu0 %v1736
        %v1738 = vpop.xlane.xlu0 %1737
        %v1739 = vsel %vm1313, %v1721, 0.0
        %1740 = vadd.xlane.f32.xlu0 %v1739
        %v1741 = vpop.xlane.xlu0 %1740
        %v1742 = vsel %vm1313, %v1723, 0.0
        %1743 = vadd.xlane.f32.xlu0 %v1742
        %v1744 = vpop.xlane.xlu0 %1743
        %v1745 = vsel %vm1313, %v1725, 0.0
        %1746 = vadd.xlane.f32.xlu0 %v1745
        %v1747 = vpop.xlane.xlu0 %1746
        %v1748 = vsel %vm1313, %v1727, 0.0
        %1749 = vadd.xlane.f32.xlu0 %v1748
        %v1750 = vpop.xlane.xlu0 %1749
        %v1751 = vsel %vm1313, %v1729, 0.0
        %1752 = vadd.xlane.f32.xlu0 %v1751
        %v1753 = vpop.xlane.xlu0 %1752
        %v1754 = vrcp.pop %v1732
        %v1755 = vmul.f32 1.0, %v1754
        %v1756 = vrcp.pop %v1735
        %v1757 = vmul.f32 1.0, %v1756
        %v1758 = vrcp.pop %v1738
        %v1759 = vmul.f32 1.0, %v1758
        %v1760 = vrcp.pop %v1741
        %v1761 = vmul.f32 1.0, %v1760
        %v1762 = vrcp.pop %v1744
        %v1763 = vmul.f32 1.0, %v1762
        %v1764 = vrcp.pop %v1747
        %v1765 = vmul.f32 1.0, %v1764
        %v1766 = vrcp.pop %v1750
        %v1767 = vmul.f32 1.0, %v1766
        %v1768 = vrcp.pop %v1753
        %v1769 = vmul.f32 1.0, %v1768
        %v1770 = vmul.f32 %v1715, %v1755
        %v1771 = vmul.f32 %v1717, %v1757
        %v1772 = vmul.f32 %v1719, %v1759
        %v1773 = vmul.f32 %v1721, %v1761
        %v1774 = vmul.f32 %v1723, %v1763
        %v1775 = vmul.f32 %v1725, %v1765
        %v1776 = vmul.f32 %v1727, %v1767
        %v1777 = vmul.f32 %v1729, %v1769
        %v1778 = vpack.c.bf16 %v1770, %v1770
        %v1779 = vpack.c.bf16 %v1771, %v1771
        %v1780 = vpack.c.bf16 %v1772, %v1772
        %v1781 = vpack.c.bf16 %v1773, %v1773
        %v1782 = vpack.c.bf16 %v1774, %v1774
        %v1783 = vpack.c.bf16 %v1775, %v1775
        %v1784 = vpack.c.bf16 %v1776, %v1776
        %v1785 = vpack.c.bf16 %v1777, %v1777
        %vm1786 = vcmask 60416
        %1787 = vst.msk [vmem:[%s309] sm:$0xf] %vm1786, %v1778
        %1788 = vst.msk [vmem:[%s309 + $0x4] sm:$0xf] %vm1786, %v1779
        %1789 = vst.msk [vmem:[%s309 + $0x8] sm:$0xf] %vm1786, %v1780
        %1790 = vst.msk [vmem:[%s309 + $0xc] sm:$0xf] %vm1786, %v1781
        %1791 = vst.msk [vmem:[%s309 + $0x10] sm:$0xf] %vm1786, %v1782
        %1792 = vst.msk [vmem:[%s309 + $0x14] sm:$0xf] %vm1786, %v1783
        %1793 = vst.msk [vmem:[%s309 + $0x18] sm:$0xf] %vm1786, %v1784
        %1794 = vst.msk [vmem:[%s309 + $0x1c] sm:$0xf] %vm1786, %v1785
        %v1796 = vsel %vm1313, %v1778, 0
        %vm1798 = vcmask 1043456
        %v1800 = vsel %vm1798, %v1305, 0
        %1802 = vmatprep.subr.bf16.mxu0 0
        %1803 = vmatpush1.bf16.msra.mxu0 %v1800
        %1804 = vmatprep.subr.bf16.mxu0 0
        %1805 = vmatpush1.bf16.msra.mxu0 0
        %1806 = vmatprep.subr.bf16.mxu0 0
        %1807 = vmatpush1.bf16.msra.mxu0 0
        %1808 = vmatprep.subr.bf16.mxu0 0
        %1809 = vmatpush1.bf16.msra.mxu0 0
        %1810 = vmatprep.subr.bf16.mxu0 0
        %1811 = vmatpush1.bf16.msra.mxu0 0
        %1812 = vmatprep.subr.bf16.mxu0 0
        %1813 = vmatpush1.bf16.msra.mxu0 0
        %1814 = vmatprep.subr.bf16.mxu0 0
        %1815 = vmatpush1.bf16.msra.mxu0 0
        %1816 = vmatprep.subr.bf16.mxu0 0
        %1817 = vmatpush1.bf16.msra.mxu0 0
        %1818 = vmatprep.subr.bf16.mxu0 0
        %1819 = vmatpush1.bf16.msra.mxu0 0
        %1820 = vmatprep.subr.bf16.mxu0 0
        %1821 = vmatpush1.bf16.msra.mxu0 0
        %1822 = vmatprep.subr.bf16.mxu0 0
        %1823 = vmatpush1.bf16.msra.mxu0 0
        %1824 = vmatprep.subr.bf16.mxu0 0
        %1825 = vmatpush1.bf16.msra.mxu0 0
        %1826 = vmatprep.subr.bf16.mxu0 0
        %1827 = vmatpush1.bf16.msra.mxu0 0
        %1828 = vmatprep.subr.bf16.mxu0 0
        %1829 = vmatpush1.bf16.msra.mxu0 0
        %1830 = vmatprep.subr.bf16.mxu0 0
        %1831 = vmatpush1.bf16.msra.mxu0 0
        %1832 = vmatprep.subr.bf16.mxu0 0
        %1833 = vmatpush1.bf16.msra.mxu0 0
        %1834 = vmatprep.mubr.bf16.mxu0 0
        %1835 = vmatmul.mubr.bf16.gmra.mrb[0].mxu0 %v1796
        %v1836 = vpop.f32.mrb[0].mxu0
        %v1837 = vadd.f32 0.0, %v1836
        %v1838 = vpop.f32.mrb[0].mxu0
        %v1839 = vpop.f32.mrb[0].mxu0
        %v1840 = vpop.f32.mrb[0].mxu0
        %1841 = vdwg.mxu0
        %v1843 = vsel %vm1313, %v1779, 0
        %v1846 = vsel %vm1798, %v1306, 0
        %1848 = vmatprep.subr.bf16.mxu0 0
        %1849 = vmatpush1.bf16.msra.mxu0 %v1846
        %1850 = vmatprep.subr.bf16.mxu0 0
        %1851 = vmatpush1.bf16.msra.mxu0 0
        %1852 = vmatprep.subr.bf16.mxu0 0
        %1853 = vmatpush1.bf16.msra.mxu0 0
        %1854 = vmatprep.subr.bf16.mxu0 0
        %1855 = vmatpush1.bf16.msra.mxu0 0
        %1856 = vmatprep.subr.bf16.mxu0 0
        %1857 = vmatpush1.bf16.msra.mxu0 0
        %1858 = vmatprep.subr.bf16.mxu0 0
        %1859 = vmatpush1.bf16.msra.mxu0 0
        %1860 = vmatprep.subr.bf16.mxu0 0
        %1861 = vmatpush1.bf16.msra.mxu0 0
        %1862 = vmatprep.subr.bf16.mxu0 0
        %1863 = vmatpush1.bf16.msra.mxu0 0
        %1864 = vmatprep.subr.bf16.mxu0 0
        %1865 = vmatpush1.bf16.msra.mxu0 0
        %1866 = vmatprep.subr.bf16.mxu0 0
        %1867 = vmatpush1.bf16.msra.mxu0 0
        %1868 = vmatprep.subr.bf16.mxu0 0
        %1869 = vmatpush1.bf16.msra.mxu0 0
        %1870 = vmatprep.subr.bf16.mxu0 0
        %1871 = vmatpush1.bf16.msra.mxu0 0
        %1872 = vmatprep.subr.bf16.mxu0 0
        %1873 = vmatpush1.bf16.msra.mxu0 0
        %1874 = vmatprep.subr.bf16.mxu0 0
        %1875 = vmatpush1.bf16.msra.mxu0 0
        %1876 = vmatprep.subr.bf16.mxu0 0
        %1877 = vmatpush1.bf16.msra.mxu0 0
        %1878 = vmatprep.subr.bf16.mxu0 0
        %1879 = vmatpush1.bf16.msra.mxu0 0
        %1880 = vmatprep.mubr.bf16.mxu0 0
        %1881 = vmatmul.mubr.bf16.gmra.mrb[0].mxu0 %v1843
        %v1882 = vpop.f32.mrb[0].mxu0
        %v1883 = vadd.f32 0.0, %v1882
        %v1884 = vpop.f32.mrb[0].mxu0
        %v1885 = vpop.f32.mrb[0].mxu0
        %v1886 = vpop.f32.mrb[0].mxu0
        %1887 = vdwg.mxu0
        %v1889 = vsel %vm1313, %v1780, 0
        %v1892 = vsel %vm1798, %v1307, 0
        %1894 = vmatprep.subr.bf16.mxu0 0
        %1895 = vmatpush1.bf16.msra.mxu0 %v1892
        %1896 = vmatprep.subr.bf16.mxu0 0
        %1897 = vmatpush1.bf16.msra.mxu0 0
        %1898 = vmatprep.subr.bf16.mxu0 0
        %1899 = vmatpush1.bf16.msra.mxu0 0
        %1900 = vmatprep.subr.bf16.mxu0 0
        %1901 = vmatpush1.bf16.msra.mxu0 0
        %1902 = vmatprep.subr.bf16.mxu0 0
        %1903 = vmatpush1.bf16.msra.mxu0 0
        %1904 = vmatprep.subr.bf16.mxu0 0
        %1905 = vmatpush1.bf16.msra.mxu0 0
        %1906 = vmatprep.subr.bf16.mxu0 0
        %1907 = vmatpush1.bf16.msra.mxu0 0
        %1908 = vmatprep.subr.bf16.mxu0 0
        %1909 = vmatpush1.bf16.msra.mxu0 0
        %1910 = vmatprep.subr.bf16.mxu0 0
        %1911 = vmatpush1.bf16.msra.mxu0 0
        %1912 = vmatprep.subr.bf16.mxu0 0
        %1913 = vmatpush1.bf16.msra.mxu0 0
        %1914 = vmatprep.subr.bf16.mxu0 0
        %1915 = vmatpush1.bf16.msra.mxu0 0
        %1916 = vmatprep.subr.bf16.mxu0 0
        %1917 = vmatpush1.bf16.msra.mxu0 0
        %1918 = vmatprep.subr.bf16.mxu0 0
        %1919 = vmatpush1.bf16.msra.mxu0 0
        %1920 = vmatprep.subr.bf16.mxu0 0
        %1921 = vmatpush1.bf16.msra.mxu0 0
        %1922 = vmatprep.subr.bf16.mxu0 0
        %1923 = vmatpush1.bf16.msra.mxu0 0
        %1924 = vmatprep.subr.bf16.mxu0 0
        %1925 = vmatpush1.bf16.msra.mxu0 0
        %1926 = vmatprep.mubr.bf16.mxu0 0
        %1927 = vmatmul.mubr.bf16.gmra.mrb[0].mxu0 %v1889
        %v1928 = vpop.f32.mrb[0].mxu0
        %v1929 = vadd.f32 0.0, %v1928
        %v1930 = vpop.f32.mrb[0].mxu0
        %v1931 = vpop.f32.mrb[0].mxu0
        %v1932 = vpop.f32.mrb[0].mxu0
        %1933 = vdwg.mxu0
        %v1935 = vsel %vm1313, %v1781, 0
        %v1938 = vsel %vm1798, %v1308, 0
        %1940 = vmatprep.subr.bf16.mxu0 0
        %1941 = vmatpush1.bf16.msra.mxu0 %v1938
        %1942 = vmatprep.subr.bf16.mxu0 0
        %1943 = vmatpush1.bf16.msra.mxu0 0
        %1944 = vmatprep.subr.bf16.mxu0 0
        %1945 = vmatpush1.bf16.msra.mxu0 0
        %1946 = vmatprep.subr.bf16.mxu0 0
        %1947 = vmatpush1.bf16.msra.mxu0 0
        %1948 = vmatprep.subr.bf16.mxu0 0
        %1949 = vmatpush1.bf16.msra.mxu0 0
        %1950 = vmatprep.subr.bf16.mxu0 0
        %1951 = vmatpush1.bf16.msra.mxu0 0
        %1952 = vmatprep.subr.bf16.mxu0 0
        %1953 = vmatpush1.bf16.msra.mxu0 0
        %1954 = vmatprep.subr.bf16.mxu0 0
        %1955 = vmatpush1.bf16.msra.mxu0 0
        %1956 = vmatprep.subr.bf16.mxu0 0
        %1957 = vmatpush1.bf16.msra.mxu0 0
        %1958 = vmatprep.subr.bf16.mxu0 0
        %1959 = vmatpush1.bf16.msra.mxu0 0
        %1960 = vmatprep.subr.bf16.mxu0 0
        %1961 = vmatpush1.bf16.msra.mxu0 0
        %1962 = vmatprep.subr.bf16.mxu0 0
        %1963 = vmatpush1.bf16.msra.mxu0 0
        %1964 = vmatprep.subr.bf16.mxu0 0
        %1965 = vmatpush1.bf16.msra.mxu0 0
        %1966 = vmatprep.subr.bf16.mxu0 0
        %1967 = vmatpush1.bf16.msra.mxu0 0
        %1968 = vmatprep.subr.bf16.mxu0 0
        %1969 = vmatpush1.bf16.msra.mxu0 0
        %1970 = vmatprep.subr.bf16.mxu0 0
        %1971 = vmatpush1.bf16.msra.mxu0 0
        %1972 = vmatprep.mubr.bf16.mxu0 0
        %1973 = vmatmul.mubr.bf16.gmra.mrb[0].mxu0 %v1935
        %v1974 = vpop.f32.mrb[0].mxu0
        %v1975 = vadd.f32 0.0, %v1974
        %v1976 = vpop.f32.mrb[0].mxu0
        %v1977 = vpop.f32.mrb[0].mxu0
        %v1978 = vpop.f32.mrb[0].mxu0
        %1979 = vdwg.mxu0
        %v1981 = vsel %vm1313, %v1782, 0
        %v1984 = vsel %vm1798, %v1309, 0
        %1986 = vmatprep.subr.bf16.mxu0 0
        %1987 = vmatpush1.bf16.msra.mxu0 %v1984
        %1988 = vmatprep.subr.bf16.mxu0 0
        %1989 = vmatpush1.bf16.msra.mxu0 0
        %1990 = vmatprep.subr.bf16.mxu0 0
        %1991 = vmatpush1.bf16.msra.mxu0 0
        %1992 = vmatprep.subr.bf16.mxu0 0
        %1993 = vmatpush1.bf16.msra.mxu0 0
        %1994 = vmatprep.subr.bf16.mxu0 0
        %1995 = vmatpush1.bf16.msra.mxu0 0
        %1996 = vmatprep.subr.bf16.mxu0 0
        %1997 = vmatpush1.bf16.msra.mxu0 0
        %1998 = vmatprep.subr.bf16.mxu0 0
        %1999 = vmatpush1.bf16.msra.mxu0 0
        %2000 = vmatprep.subr.bf16.mxu0 0
        %2001 = vmatpush1.bf16.msra.mxu0 0
        %2002 = vmatprep.subr.bf16.mxu0 0
        %2003 = vmatpush1.bf16.msra.mxu0 0
        %2004 = vmatprep.subr.bf16.mxu0 0
        %2005 = vmatpush1.bf16.msra.mxu0 0
        %2006 = vmatprep.subr.bf16.mxu0 0
        %2007 = vmatpush1.bf16.msra.mxu0 0
        %2008 = vmatprep.subr.bf16.mxu0 0
        %2009 = vmatpush1.bf16.msra.mxu0 0
        %2010 = vmatprep.subr.bf16.mxu0 0
        %2011 = vmatpush1.bf16.msra.mxu0 0
        %2012 = vmatprep.subr.bf16.mxu0 0
        %2013 = vmatpush1.bf16.msra.mxu0 0
        %2014 = vmatprep.subr.bf16.mxu0 0
        %2015 = vmatpush1.bf16.msra.mxu0 0
        %2016 = vmatprep.subr.bf16.mxu0 0
        %2017 = vmatpush1.bf16.msra.mxu0 0
        %2018 = vmatprep.mubr.bf16.mxu0 0
        %2019 = vmatmul.mubr.bf16.gmra.mrb[0].mxu0 %v1981
        %v2020 = vpop.f32.mrb[0].mxu0
        %v2021 = vadd.f32 0.0, %v2020
        %v2022 = vpop.f32.mrb[0].mxu0
        %v2023 = vpop.f32.mrb[0].mxu0
        %v2024 = vpop.f32.mrb[0].mxu0
        %2025 = vdwg.mxu0
        %v2027 = vsel %vm1313, %v1783, 0
        %v2030 = vsel %vm1798, %v1310, 0
        %2032 = vmatprep.subr.bf16.mxu0 0
        %2033 = vmatpush1.bf16.msra.mxu0 %v2030
        %2034 = vmatprep.subr.bf16.mxu0 0
        %2035 = vmatpush1.bf16.msra.mxu0 0
        %2036 = vmatprep.subr.bf16.mxu0 0
        %2037 = vmatpush1.bf16.msra.mxu0 0
        %2038 = vmatprep.subr.bf16.mxu0 0
        %2039 = vmatpush1.bf16.msra.mxu0 0
        %2040 = vmatprep.subr.bf16.mxu0 0
        %2041 = vmatpush1.bf16.msra.mxu0 0
        %2042 = vmatprep.subr.bf16.mxu0 0
        %2043 = vmatpush1.bf16.msra.mxu0 0
        %2044 = vmatprep.subr.bf16.mxu0 0
        %2045 = vmatpush1.bf16.msra.mxu0 0
        %2046 = vmatprep.subr.bf16.mxu0 0
        %2047 = vmatpush1.bf16.msra.mxu0 0
        %2048 = vmatprep.subr.bf16.mxu0 0
        %2049 = vmatpush1.bf16.msra.mxu0 0
        %2050 = vmatprep.subr.bf16.mxu0 0
        %2051 = vmatpush1.bf16.msra.mxu0 0
        %2052 = vmatprep.subr.bf16.mxu0 0
        %2053 = vmatpush1.bf16.msra.mxu0 0
        %2054 = vmatprep.subr.bf16.mxu0 0
        %2055 = vmatpush1.bf16.msra.mxu0 0
        %2056 = vmatprep.subr.bf16.mxu0 0
        %2057 = vmatpush1.bf16.msra.mxu0 0
        %2058 = vmatprep.subr.bf16.mxu0 0
        %2059 = vmatpush1.bf16.msra.mxu0 0
        %2060 = vmatprep.subr.bf16.mxu0 0
        %2061 = vmatpush1.bf16.msra.mxu0 0
        %2062 = vmatprep.subr.bf16.mxu0 0
        %2063 = vmatpush1.bf16.msra.mxu0 0
        %2064 = vmatprep.mubr.bf16.mxu0 0
        %2065 = vmatmul.mubr.bf16.gmra.mrb[0].mxu0 %v2027
        %v2066 = vpop.f32.mrb[0].mxu0
        %v2067 = vadd.f32 0.0, %v2066
        %v2068 = vpop.f32.mrb[0].mxu0
        %v2069 = vpop.f32.mrb[0].mxu0
        %v2070 = vpop.f32.mrb[0].mxu0
        %2071 = vdwg.mxu0
        %v2073 = vsel %vm1313, %v1784, 0
        %v2076 = vsel %vm1798, %v1311, 0
        %2078 = vmatprep.subr.bf16.mxu0 0
        %2079 = vmatpush1.bf16.msra.mxu0 %v2076
        %2080 = vmatprep.subr.bf16.mxu0 0
        %2081 = vmatpush1.bf16.msra.mxu0 0
        %2082 = vmatprep.subr.bf16.mxu0 0
        %2083 = vmatpush1.bf16.msra.mxu0 0
        %2084 = vmatprep.subr.bf16.mxu0 0
        %2085 = vmatpush1.bf16.msra.mxu0 0
        %2086 = vmatprep.subr.bf16.mxu0 0
        %2087 = vmatpush1.bf16.msra.mxu0 0
        %2088 = vmatprep.subr.bf16.mxu0 0
        %2089 = vmatpush1.bf16.msra.mxu0 0
        %2090 = vmatprep.subr.bf16.mxu0 0
        %2091 = vmatpush1.bf16.msra.mxu0 0
        %2092 = vmatprep.subr.bf16.mxu0 0
        %2093 = vmatpush1.bf16.msra.mxu0 0
        %2094 = vmatprep.subr.bf16.mxu0 0
        %2095 = vmatpush1.bf16.msra.mxu0 0
        %2096 = vmatprep.subr.bf16.mxu0 0
        %2097 = vmatpush1.bf16.msra.mxu0 0
        %2098 = vmatprep.subr.bf16.mxu0 0
        %2099 = vmatpush1.bf16.msra.mxu0 0
        %2100 = vmatprep.subr.bf16.mxu0 0
        %2101 = vmatpush1.bf16.msra.mxu0 0
        %2102 = vmatprep.subr.bf16.mxu0 0
        %2103 = vmatpush1.bf16.msra.mxu0 0
        %2104 = vmatprep.subr.bf16.mxu0 0
        %2105 = vmatpush1.bf16.msra.mxu0 0
        %2106 = vmatprep.subr.bf16.mxu0 0
        %2107 = vmatpush1.bf16.msra.mxu0 0
        %2108 = vmatprep.subr.bf16.mxu0 0
        %2109 = vmatpush1.bf16.msra.mxu0 0
        %2110 = vmatprep.mubr.bf16.mxu0 0
        %2111 = vmatmul.mubr.bf16.gmra.mrb[0].mxu0 %v2073
        %v2112 = vpop.f32.mrb[0].mxu0
        %v2113 = vadd.f32 0.0, %v2112
        %v2114 = vpop.f32.mrb[0].mxu0
        %v2115 = vpop.f32.mrb[0].mxu0
        %v2116 = vpop.f32.mrb[0].mxu0
        %2117 = vdwg.mxu0
        %v2119 = vsel %vm1313, %v1785, 0
        %v2122 = vsel %vm1798, %v1312, 0
        %2124 = vmatprep.subr.bf16.mxu0 0
        %2125 = vmatpush1.bf16.msra.mxu0 %v2122
        %2126 = vmatprep.subr.bf16.mxu0 0
        %2127 = vmatpush1.bf16.msra.mxu0 0
        %2128 = vmatprep.subr.bf16.mxu0 0
        %2129 = vmatpush1.bf16.msra.mxu0 0
        %2130 = vmatprep.subr.bf16.mxu0 0
        %2131 = vmatpush1.bf16.msra.mxu0 0
        %2132 = vmatprep.subr.bf16.mxu0 0
        %2133 = vmatpush1.bf16.msra.mxu0 0
        %2134 = vmatprep.subr.bf16.mxu0 0
        %2135 = vmatpush1.bf16.msra.mxu0 0
        %2136 = vmatprep.subr.bf16.mxu0 0
        %2137 = vmatpush1.bf16.msra.mxu0 0
        %2138 = vmatprep.subr.bf16.mxu0 0
        %2139 = vmatpush1.bf16.msra.mxu0 0
        %2140 = vmatprep.subr.bf16.mxu0 0
        %2141 = vmatpush1.bf16.msra.mxu0 0
        %2142 = vmatprep.subr.bf16.mxu0 0
        %2143 = vmatpush1.bf16.msra.mxu0 0
        %2144 = vmatprep.subr.bf16.mxu0 0
        %2145 = vmatpush1.bf16.msra.mxu0 0
        %2146 = vmatprep.subr.bf16.mxu0 0
        %2147 = vmatpush1.bf16.msra.mxu0 0
        %2148 = vmatprep.subr.bf16.mxu0 0
        %2149 = vmatpush1.bf16.msra.mxu0 0
        %2150 = vmatprep.subr.bf16.mxu0 0
        %2151 = vmatpush1.bf16.msra.mxu0 0
        %2152 = vmatprep.subr.bf16.mxu0 0
        %2153 = vmatpush1.bf16.msra.mxu0 0
        %2154 = vmatprep.subr.bf16.mxu0 0
        %2155 = vmatpush1.bf16.msra.mxu0 0
        %2156 = vmatprep.mubr.bf16.mxu0 0
        %2157 = vmatmul.mubr.bf16.gmra.mrb[0].mxu0 %v2119
        %v2158 = vpop.f32.mrb[0].mxu0
        %v2159 = vadd.f32 0.0, %v2158
        %v2160 = vpop.f32.mrb[0].mxu0
        %v2161 = vpop.f32.mrb[0].mxu0
        %v2162 = vpop.f32.mrb[0].mxu0
        %2163 = vdwg.mxu0
        %v2164 = vcombine.low %v1837, %v1929
        %v2165 = vcombine.high %v1837, %v1929
        %v2167 = vunpack.c.l.s4 1983009808
        %v2168 = vunpack.c.0.s8 %v2167
        %v2169 = vlaneseq
        %v2170 = vshrl.u32 %v2169, 7
        %v2171 = vsub.s32 %v2168, %v2170
        %v2172 = vrot.slane %v2164, %v2171
        %v2174 = vunpack.c.l.s4 1983009808
        %v2175 = vunpack.c.0.s8 %v2174
        %v2176 = vlaneseq
        %v2177 = vshrl.u32 %v2176, 7
        %v2178 = vsub.s32 %v2175, %v2177
        %v2179 = vrot.slane %v2165, %v2178
        %v2180 = vcombine.low %v1883, %v1975
        %v2181 = vcombine.high %v1883, %v1975
        %v2183 = vunpack.c.l.s4 1983009808
        %v2184 = vunpack.c.0.s8 %v2183
        %v2185 = vlaneseq
        %v2186 = vshrl.u32 %v2185, 7
        %v2187 = vsub.s32 %v2184, %v2186
        %v2188 = vrot.slane %v2180, %v2187
        %v2190 = vunpack.c.l.s4 1983009808
        %v2191 = vunpack.c.0.s8 %v2190
        %v2192 = vlaneseq
        %v2193 = vshrl.u32 %v2192, 7
        %v2194 = vsub.s32 %v2191, %v2193
        %v2195 = vrot.slane %v2181, %v2194
        %v2196 = vcombine.low %v2172, %v2188
        %v2197 = vcombine.high %v2172, %v2188
        %v2199 = vunpack.c.l.s4 1934713408
        %v2200 = vunpack.c.0.s8 %v2199
        %v2201 = vlaneseq
        %v2202 = vshrl.u32 %v2201, 7
        %v2203 = vsub.s32 %v2200, %v2202
        %v2204 = vrot.slane %v2196, %v2203
        %v2206 = vunpack.c.l.s4 1934713408
        %v2207 = vunpack.c.0.s8 %v2206
        %v2208 = vlaneseq
        %v2209 = vshrl.u32 %v2208, 7
        %v2210 = vsub.s32 %v2207, %v2209
        %v2211 = vrot.slane %v2197, %v2210
        %v2212 = vcombine.low %v2179, %v2195
        %v2213 = vcombine.high %v2179, %v2195
        %v2215 = vunpack.c.l.s4 1934713408
        %v2216 = vunpack.c.0.s8 %v2215
        %v2217 = vlaneseq
        %v2218 = vshrl.u32 %v2217, 7
        %v2219 = vsub.s32 %v2216, %v2218
        %v2220 = vrot.slane %v2212, %v2219
        %v2222 = vunpack.c.l.s4 1934713408
        %v2223 = vunpack.c.0.s8 %v2222
        %v2224 = vlaneseq
        %v2225 = vshrl.u32 %v2224, 7
        %v2226 = vsub.s32 %v2223, %v2225
        %v2227 = vrot.slane %v2213, %v2226
        %v2228 = vcombine.high %v2204, 0.0
        %v2229 = vcombine.high %v2211, 0.0
        %v2230 = vcombine.high %v2220, 0.0
        %v2231 = vcombine.high %v2227, 0.0
        %v2232 = vcombine.low %v2021, %v2113
        %v2233 = vcombine.high %v2021, %v2113
        %v2235 = vunpack.c.l.s4 1983009808
        %v2236 = vunpack.c.0.s8 %v2235
        %v2237 = vlaneseq
        %v2238 = vshrl.u32 %v2237, 7
        %v2239 = vsub.s32 %v2236, %v2238
        %v2240 = vrot.slane %v2232, %v2239
        %v2242 = vunpack.c.l.s4 1983009808
        %v2243 = vunpack.c.0.s8 %v2242
        %v2244 = vlaneseq
        %v2245 = vshrl.u32 %v2244, 7
        %v2246 = vsub.s32 %v2243, %v2245
        %v2247 = vrot.slane %v2233, %v2246
        %v2248 = vcombine.low %v2067, %v2159
        %v2249 = vcombine.high %v2067, %v2159
        %v2251 = vunpack.c.l.s4 1983009808
        %v2252 = vunpack.c.0.s8 %v2251
        %v2253 = vlaneseq
        %v2254 = vshrl.u32 %v2253, 7
        %v2255 = vsub.s32 %v2252, %v2254
        %v2256 = vrot.slane %v2248, %v2255
        %v2258 = vunpack.c.l.s4 1983009808
        %v2259 = vunpack.c.0.s8 %v2258
        %v2260 = vlaneseq
        %v2261 = vshrl.u32 %v2260, 7
        %v2262 = vsub.s32 %v2259, %v2261
        %v2263 = vrot.slane %v2249, %v2262
        %v2264 = vcombine.low %v2240, %v2256
        %v2265 = vcombine.high %v2240, %v2256
        %v2267 = vunpack.c.l.s4 1934713408
        %v2268 = vunpack.c.0.s8 %v2267
        %v2269 = vlaneseq
        %v2270 = vshrl.u32 %v2269, 7
        %v2271 = vsub.s32 %v2268, %v2270
        %v2272 = vrot.slane %v2264, %v2271
        %v2274 = vunpack.c.l.s4 1934713408
        %v2275 = vunpack.c.0.s8 %v2274
        %v2276 = vlaneseq
        %v2277 = vshrl.u32 %v2276, 7
        %v2278 = vsub.s32 %v2275, %v2277
        %v2279 = vrot.slane %v2265, %v2278
        %v2280 = vcombine.low %v2247, %v2263
        %v2281 = vcombine.high %v2247, %v2263
        %v2283 = vunpack.c.l.s4 1934713408
        %v2284 = vunpack.c.0.s8 %v2283
        %v2285 = vlaneseq
        %v2286 = vshrl.u32 %v2285, 7
        %v2287 = vsub.s32 %v2284, %v2286
        %v2288 = vrot.slane %v2280, %v2287
        %v2290 = vunpack.c.l.s4 1934713408
        %v2291 = vunpack.c.0.s8 %v2290
        %v2292 = vlaneseq
        %v2293 = vshrl.u32 %v2292, 7
        %v2294 = vsub.s32 %v2291, %v2293
        %v2295 = vrot.slane %v2281, %v2294
        %v2296 = vcombine.high %v2272, 0.0
        %v2297 = vcombine.high %v2279, 0.0
        %v2298 = vcombine.high %v2288, 0.0
        %v2299 = vcombine.high %v2295, 0.0
        %v2300 = vcombine.low %v2204, %v2211
        %v2302 = vunpack.c.l.s4 1983009808
        %v2303 = vunpack.c.0.s8 %v2302
        %v2304 = vlaneseq
        %v2305 = vshrl.u32 %v2304, 7
        %v2306 = vsub.s32 %v2303, %v2305
        %v2307 = vrot.slane %v2300, %v2306
        %v2308 = vcombine.low %v2228, %v2229
        %v2310 = vunpack.c.l.s4 1983009808
        %v2311 = vunpack.c.0.s8 %v2310
        %v2312 = vlaneseq
        %v2313 = vshrl.u32 %v2312, 7
        %v2314 = vsub.s32 %v2311, %v2313
        %v2315 = vrot.slane %v2308, %v2314
        %v2316 = vcombine.low %v2220, %v2227
        %v2318 = vunpack.c.l.s4 1983009808
        %v2319 = vunpack.c.0.s8 %v2318
        %v2320 = vlaneseq
        %v2321 = vshrl.u32 %v2320, 7
        %v2322 = vsub.s32 %v2319, %v2321
        %v2323 = vrot.slane %v2316, %v2322
        %v2324 = vcombine.low %v2230, %v2231
        %v2326 = vunpack.c.l.s4 1983009808
        %v2327 = vunpack.c.0.s8 %v2326
        %v2328 = vlaneseq
        %v2329 = vshrl.u32 %v2328, 7
        %v2330 = vsub.s32 %v2327, %v2329
        %v2331 = vrot.slane %v2324, %v2330
        %v2332 = vcombine.low %v2307, %v2315
        %v2333 = vcombine.high %v2307, %v2315
        %v2335 = vunpack.c.l.s4 1934713408
        %v2336 = vunpack.c.0.s8 %v2335
        %v2337 = vlaneseq
        %v2338 = vshrl.u32 %v2337, 7
        %v2339 = vsub.s32 %v2336, %v2338
        %v2340 = vrot.slane %v2332, %v2339
        %v2342 = vunpack.c.l.s4 1934713408
        %v2343 = vunpack.c.0.s8 %v2342
        %v2344 = vlaneseq
        %v2345 = vshrl.u32 %v2344, 7
        %v2346 = vsub.s32 %v2343, %v2345
        %v2347 = vrot.slane %v2333, %v2346
        %v2348 = vcombine.low %v2323, %v2331
        %v2349 = vcombine.high %v2323, %v2331
        %v2351 = vunpack.c.l.s4 1934713408
        %v2352 = vunpack.c.0.s8 %v2351
        %v2353 = vlaneseq
        %v2354 = vshrl.u32 %v2353, 7
        %v2355 = vsub.s32 %v2352, %v2354
        %v2356 = vrot.slane %v2348, %v2355
        %v2358 = vunpack.c.l.s4 1934713408
        %v2359 = vunpack.c.0.s8 %v2358
        %v2360 = vlaneseq
        %v2361 = vshrl.u32 %v2360, 7
        %v2362 = vsub.s32 %v2359, %v2361
        %v2363 = vrot.slane %v2349, %v2362
        %v2364 = vcombine.low %v2340, %v2356
        %v2365 = vcombine.high %v2340, %v2356
        %v2366 = vcombine.low %v2347, %v2363
        %v2367 = vcombine.high %v2347, %v2363
        %v2368 = vcombine.low %v2272, %v2279
        %v2370 = vunpack.c.l.s4 1983009808
        %v2371 = vunpack.c.0.s8 %v2370
        %v2372 = vlaneseq
        %v2373 = vshrl.u32 %v2372, 7
        %v2374 = vsub.s32 %v2371, %v2373
        %v2375 = vrot.slane %v2368, %v2374
        %v2376 = vcombine.low %v2296, %v2297
        %v2378 = vunpack.c.l.s4 1983009808
        %v2379 = vunpack.c.0.s8 %v2378
        %v2380 = vlaneseq
        %v2381 = vshrl.u32 %v2380, 7
        %v2382 = vsub.s32 %v2379, %v2381
        %v2383 = vrot.slane %v2376, %v2382
        %v2384 = vcombine.low %v2288, %v2295
        %v2386 = vunpack.c.l.s4 1983009808
        %v2387 = vunpack.c.0.s8 %v2386
        %v2388 = vlaneseq
        %v2389 = vshrl.u32 %v2388, 7
        %v2390 = vsub.s32 %v2387, %v2389
        %v2391 = vrot.slane %v2384, %v2390
        %v2392 = vcombine.low %v2298, %v2299
        %v2394 = vunpack.c.l.s4 1983009808
        %v2395 = vunpack.c.0.s8 %v2394
        %v2396 = vlaneseq
        %v2397 = vshrl.u32 %v2396, 7
        %v2398 = vsub.s32 %v2395, %v2397
        %v2399 = vrot.slane %v2392, %v2398
        %v2400 = vcombine.low %v2375, %v2383
        %v2401 = vcombine.high %v2375, %v2383
        %v2403 = vunpack.c.l.s4 1934713408
        %v2404 = vunpack.c.0.s8 %v2403
        %v2405 = vlaneseq
        %v2406 = vshrl.u32 %v2405, 7
        %v2407 = vsub.s32 %v2404, %v2406
        %v2408 = vrot.slane %v2400, %v2407
        %v2410 = vunpack.c.l.s4 1934713408
        %v2411 = vunpack.c.0.s8 %v2410
        %v2412 = vlaneseq
        %v2413 = vshrl.u32 %v2412, 7
        %v2414 = vsub.s32 %v2411, %v2413
        %v2415 = vrot.slane %v2401, %v2414
        %v2416 = vcombine.low %v2391, %v2399
        %v2417 = vcombine.high %v2391, %v2399
        %v2419 = vunpack.c.l.s4 1934713408
        %v2420 = vunpack.c.0.s8 %v2419
        %v2421 = vlaneseq
        %v2422 = vshrl.u32 %v2421, 7
        %v2423 = vsub.s32 %v2420, %v2422
        %v2424 = vrot.slane %v2416, %v2423
        %v2426 = vunpack.c.l.s4 1934713408
        %v2427 = vunpack.c.0.s8 %v2426
        %v2428 = vlaneseq
        %v2429 = vshrl.u32 %v2428, 7
        %v2430 = vsub.s32 %v2427, %v2429
        %v2431 = vrot.slane %v2417, %v2430
        %v2432 = vcombine.low %v2408, %v2424
        %v2433 = vcombine.high %v2408, %v2424
        %v2434 = vcombine.low %v2415, %v2431
        %v2435 = vcombine.high %v2415, %v2431
        %2438 = vrot.lane.b32.xlu0 %v2365, 8
        %v2439 = vpop.permute.xlu0 %2438
        %2440 = vrot.lane.b32.xlu0 %v2433, 8
        %v2441 = vpop.permute.xlu0 %2440
        %2446 = vrot.lane.b32.xlu0 %v2366, 16
        %v2447 = vpop.permute.xlu0 %2446
        %2448 = vrot.lane.b32.xlu0 %v2434, 16
        %v2449 = vpop.permute.xlu0 %2448
        %2454 = vrot.lane.b32.xlu0 %v2367, 24
        %v2455 = vpop.permute.xlu0 %2454
        %2456 = vrot.lane.b32.xlu0 %v2435, 24
        %v2457 = vpop.permute.xlu0 %2456
        %v2460 = vsel %vm1313, %v2364, %v2439
        %v2461 = vsel %vm1313, %v2432, %v2441
        %vm2462 = vcmask 130048
        %v2463 = vsel %vm2462, %v2460, %v2447
        %v2464 = vsel %vm2462, %v2461, %v2449
        %vm2465 = vcmask 195584
        %v2466 = vsel %vm2465, %v2463, %v2455
        %v2467 = vsel %vm2465, %v2464, %v2457
        %v2468 = vpack.c.bf16 %v2467, %v2466
        %v2469 = vld [vmem:[#allocation7] sm:$0xf]
        %v2470 = vld [vmem:[#allocation7 + $0x4] sm:$0xf]
        %v2471 = vld [vmem:[#allocation7 + $0x8] sm:$0xf]
        %v2472 = vld [vmem:[#allocation7 + $0xc] sm:$0xf]
        %v2473 = vld [vmem:[%s4] sm:$0x1]
        %v2475 = vlaneseq
        %v2476 = vshrl.u32 %v2475, 7
        %v2477 = vsub.s32 0, %v2476
        %v2478 = vrot.slane %v2473, %v2477
        %v2484 = vunpack.c.l.b16 %v2469
        %v2485 = vunpack.c.l.b16 %v2470
        %v2486 = vunpack.c.l.b16 %v2471
        %v2487 = vunpack.c.l.b16 %v2472
        %v2488 = vpack.c.b16 %v2485, %v2484
        %v2489 = vpack.c.b16 %v2487, %v2486
        %v2493 = vsel %vm344, %v2468, 0
        %2495 = vmatprep.subr.bf16.mxu0 0
        %2496 = vmatpush1.bf16.msra.mxu0 %v2488
        %2497 = vmatprep.subr.bf16.mxu0 0
        %2498 = vmatpush1.bf16.msra.mxu0 %v2489
        %2499 = vmatprep.subr.bf16.mxu0 0
        %2500 = vmatpush1.bf16.msra.mxu0 0
        %2501 = vmatprep.subr.bf16.mxu0 0
        %2502 = vmatpush1.bf16.msra.mxu0 0
        %2503 = vmatprep.subr.bf16.mxu0 0
        %2504 = vmatpush1.bf16.msra.mxu0 0
        %2505 = vmatprep.subr.bf16.mxu0 0
        %2506 = vmatpush1.bf16.msra.mxu0 0
        %2507 = vmatprep.subr.bf16.mxu0 0
        %2508 = vmatpush1.bf16.msra.mxu0 0
        %2509 = vmatprep.subr.bf16.mxu0 0
        %2510 = vmatpush1.bf16.msra.mxu0 0
        %2511 = vmatprep.subr.bf16.mxu0 0
        %2512 = vmatpush1.bf16.msra.mxu0 0
        %2513 = vmatprep.subr.bf16.mxu0 0
        %2514 = vmatpush1.bf16.msra.mxu0 0
        %2515 = vmatprep.subr.bf16.mxu0 0
        %2516 = vmatpush1.bf16.msra.mxu0 0
        %2517 = vmatprep.subr.bf16.mxu0 0
        %2518 = vmatpush1.bf16.msra.mxu0 0
        %2519 = vmatprep.subr.bf16.mxu0 0
        %2520 = vmatpush1.bf16.msra.mxu0 0
        %2521 = vmatprep.subr.bf16.mxu0 0
        %2522 = vmatpush1.bf16.msra.mxu0 0
        %2523 = vmatprep.subr.bf16.mxu0 0
        %2524 = vmatpush1.bf16.msra.mxu0 0
        %2525 = vmatprep.subr.bf16.mxu0 0
        %2526 = vmatpush1.bf16.msra.mxu0 0
        %2527 = vmatprep.mubr.bf16.mxu0 0
        %2528 = vmatmul.mubr.bf16.gmra.mrb[0].mxu0 %v2493
        %v2529 = vpop.f32.mrb[0].mxu0
        %v2530 = vadd.f32 %v2478, %v2529
        %v2531 = vpop.f32.mrb[0].mxu0
        %v2532 = vpop.f32.mrb[0].mxu0
        %v2533 = vadd.f32 %v2478, %v2532
        %v2534 = vpop.f32.mrb[0].mxu0
        %2535 = vdwg.mxu0
        %2536 = vst.msk [vmem:[%s302] sm:$0xff] %vm344, %v2530
        %2537 = vst.msk [vmem:[%s302 + $0x8] sm:$0xff] %vm344, %v2533
        %s2538 = sand.u32 %s146, 1
        %s2539 = scalar_lea.sflag [#allocation4], %s2538
        %s2540 = sand.u32 %s146, 1
        %s2541 = smul.addr %s2540, 16
        %s2542 = scalar_lea.vmem [#allocation8], %s2541
        %s2543 = sand.u32 %s172, 1
        %s2544 = scalar_lea.sflag [#allocation10], %s2543
        %s2545 = sand.u32 %s172, 1
        %s2546 = smul.addr %s2545, 32
        %s2547 = scalar_lea.vmem [#allocation9], %s2546
        // Predicated region
        $region53: #{tpu_custom_call.1} parent=39 // pred_check
          %p2548 = pneg %p156
        $region54: #{tpu_custom_call.1} parent=39 // pred_check_branch
          %2550 = sbr.rel (%p2548) target = $region56
        $region55: #{tpu_custom_call.1} parent=39 // pred_region
          %s2551 = smul.u32 2, %s28
          %s2553 = ssub.s32 256, 256
          %2554 = vsyncadd %s2539, %s2553
          %s2555 = smul.addr %s2551, 128
          %s2556 = scalar_lea.hbm %s5, %s2555
          %s2557 = sshll.u32 %s2542, 4
          %s2558 = int_to_ptr.vmem [resolvable:$true] %s2557
          %2563 = dma.vmem_to_hbm [thread:$0]  %s2558, 256, %s2556, %s2539, 128, 128, 8
        $region56: #{tpu_custom_call.1} parent=39 // pred_fallthru
          _
        // Predicated region
        $region57: #{tpu_custom_call.1} parent=39 // pred_check
          %p2564 = pneg %p182
        $region58: #{tpu_custom_call.1} parent=39 // pred_check_branch
          %2566 = sbr.rel (%p2564) target = $region60
        $region59: #{tpu_custom_call.1} parent=39 // pred_region
          %s2567 = smul.u32 2, %s28
          %s2569 = ssub.s32 512, 512
          %2570 = vsyncadd %s2544, %s2569
          %s2571 = smul.addr %s2567, 4
          %s2572 = smul.addr %s2571, 64
          %s2573 = scalar_lea.hbm %s6, %s2572
          %s2574 = sshll.u32 %s2547, 4
          %s2575 = int_to_ptr.vmem [resolvable:$true] %s2574
          %2580 = dma.vmem_to_hbm [thread:$0]  %s2575, 512, %s2573, %s2544, 64, 64, 4
        $region60: #{tpu_custom_call.1} parent=39 // pred_fallthru
          _
      $region40: #{tpu_custom_call.1} parent=5 // pred_fallthru
        _
      %p2581 = scmp.le.s32.totalorder 2, %s23
      // Predicated region
      $region61: #{tpu_custom_call.1} parent=5 // pred_check
        %p2582 = pneg %p2581
      $region62: #{tpu_custom_call.1} parent=5 // pred_check_branch
        %2584 = sbr.rel (%p2582) target = $region64
      $region63: #{tpu_custom_call.1} parent=5 // pred_region
        %s2585 = ssub.s32 %s23, 2
        // Predicated region
        $region65: #{tpu_custom_call.1} parent=63 // pred_check
          %p2586 = pneg %p162
        $region66: #{tpu_custom_call.1} parent=63 // pred_check_branch
          %2588 = sbr.rel (%p2586) target = $region68
        $region67: #{tpu_custom_call.1} parent=63 // pred_region
          %s2589 = sand.u32 %s147, 1
          %s2590 = scalar_lea.sflag [#allocation4], %s2589
          %s2591 = sand.u32 %s147, 1
          %s2592 = smul.addr %s2591, 16
          %s2593 = scalar_lea.vmem [#allocation8], %s2592
          %2594 = dma.done %s2590, 256
        $region68: #{tpu_custom_call.1} parent=63 // pred_fallthru
          _
        // Predicated region
        $region69: #{tpu_custom_call.1} parent=63 // pred_check
          %p2595 = pneg %p188
        $region70: #{tpu_custom_call.1} parent=63 // pred_check_branch
          %2597 = sbr.rel (%p2595) target = $region72
        $region71: #{tpu_custom_call.1} parent=63 // pred_region
          %s2598 = sand.u32 %s173, 1
          %s2599 = scalar_lea.sflag [#allocation10], %s2598
          %s2600 = sand.u32 %s173, 1
          %s2601 = smul.addr %s2600, 32
          %s2602 = scalar_lea.vmem [#allocation9], %s2601
          %2603 = dma.done %s2599, 512
        $region72: #{tpu_custom_call.1} parent=63 // pred_fallthru
          _
      $region64: #{tpu_custom_call.1} parent=5 // pred_fallthru
        _
    $region6: #{tpu_custom_call.1} parent=1 // loop_footer
      %s27 = sadd.s32 1, %s23
    $region7: #{tpu_custom_call.1} parent=1 // loop_footer_branch
      %22 = sbr.rel target = $region3
    $region8: #{tpu_custom_call.1} parent=1 // loop_exit
      _
    %2604 = vsyncpa [#allocation3], 1
    %s2605 = scalar_lea.sflag [#allocation3], 1
    %2606 = vsyncpa %s2605, 1
    %2607 = vsyncpa [#allocation6], 1
    %2608 = vsyncpa [#allocation4], 1
    %s2609 = scalar_lea.sflag [#allocation4], 1
    %2610 = vsyncpa %s2609, 1
    %2611 = vsyncpa [#allocation10], 1
    %s2612 = scalar_lea.sflag [#allocation10], 1
    %2613 = vsyncpa %s2612, 1

// kernel: tpu_custom_call.1
$region0: #{tpu_custom_call.1}
  #allocation0 [shape = 'u32[]', space=smem, size = 0x4, offset = 0x4, fixed_abs, tag = 'smem constant byte address 0x4 - core index']
  #allocation1 [shape = 'u32[144,128]{1,0:T(1,128)}', space=vmem, size = 0x12000, scoped, tag = 'internal scratch']
  %s0 = inlined_call_operand.hbm [shape: bf16[32,32], index: 0, kind: input, shape index: {}]
  %s1 = inlined_call_operand.hbm [shape: bf16[32,96], index: 1, kind: input, shape index: {}]
  %s2 = inlined_call_operand.vmem [shape: f32[1,96], index: 2, kind: input, shape index: {}]
  %s3 = inlined_call_operand.hbm [shape: bf16[32,32], index: 3, kind: input, shape index: {}]
  %s4 = inlined_call_operand.vmem [shape: f32[1,32], index: 4, kind: input, shape index: {}]
  %s5 = inlined_call_operand.hbm [shape: f32[32,32], index: 5, kind: output, shape index: {0}]
  %s6 = inlined_call_operand.hbm [shape: bf16[4,4,8,8], index: 6, kind: output, shape index: {1}]
  %7 = xla_tuple %s5, %s6
  %s8 = sld [smem:[#allocation0]]
  $region73: #{tpu_custom_call.1} parent=0
    _
  %s10 = ssub.s32 1, %s8
  %s11 = scalar_select 0, %s10, %s8
  $region1: #{tpu_custom_call.1} parent=0
    #allocation2 [shape = 'u8[8192]{0}', space=vmem, size = 0x2000, scoped, tag = 'input window, operand 0']
    #allocation3 [shape = 's32[2]{0}', space=sflag, size = 0x8, scoped, tag = 'scoped memory for tpu_custom_call.1']
    #allocation4 [shape = 's32[2]{0}', space=sflag, size = 0x8, scoped, tag = 'scoped memory for tpu_custom_call.1']
    #allocation5 [shape = 'u8[8192]{0}', space=vmem, size = 0x2000, scoped, tag = 'input window, operand 1, single buffered']
    #allocation6 [shape = 's32[1]{0}', space=sflag, size = 0x4, scoped, tag = 'scoped memory for tpu_custom_call.1']
    #allocation7 [shape = 'u8[8192]{0}', space=vmem, size = 0x2000, scoped, tag = 'input window, operand 3, single buffered']
    #allocation8 [shape = 'u8[16384]{0}', space=vmem, size = 0x4000, scoped, tag = 'output window, operand 0']
    #allocation9 [shape = 'u8[32768]{0}', space=vmem, size = 0x8000, scoped, tag = 'output window, operand 1']
    #allocation10 [shape = 's32[2]{0}', space=sflag, size = 0x8, scoped, tag = 'scoped memory for tpu_custom_call.1']
    %12 = vsyncpa [#allocation3], 0
    %s13 = scalar_lea.sflag [#allocation3], 1
    %14 = vsyncpa %s13, 0
    %15 = vsyncpa [#allocation6], 0
    %16 = vsyncpa [#allocation4], 0
    %s17 = scalar_lea.sflag [#allocation4], 1
    %18 = vsyncpa %s17, 0
    %19 = vsyncpa [#allocation10], 0
    %s20 = scalar_lea.sflag [#allocation10], 1
    %21 = vsyncpa %s20, 0
    loop: start=0, step=1, limit=4
    $region2: #{tpu_custom_call.1} parent=1 // loop_pre_header
      _
    $region3: #{tpu_custom_call.1} parent=1 // loop_header
      %s23 = sphi 0, %s27
      %p24 = scmp.ge.s32.totalorder %s23, 4
      %s33 = sphi 0, %s35
      %s36 = sphi 0, %s33
      %s37 = sphi 0, %s36
      %s53 = sphi 0, %s37
      %s57 = sphi 0, %s57
      %s59 = sphi 0, %s57
      %s60 = sphi 0, %s59
      %s74 = sphi 0, %s60
      %s78 = sphi 0, %s78
      %s80 = sphi 0, %s78
      %s81 = sphi 0, %s80
      %s95 = sphi 0, %s81
      %s99 = sphi 0, %s99
      %s101 = sphi 0, %s99
      %s102 = sphi 0, %s101
      %s116 = sphi 0, %s102
      %s120 = sphi 0, %s120
      %s122 = sphi 0, %s120
      %s123 = sphi 0, %s122
      %s137 = sphi 0, %s123
      %s143 = sphi 0, %s145
      %s146 = sphi 0, %s143
      %s147 = sphi 0, %s146
      %s163 = sphi 0, %s147
      %s169 = sphi 0, %s171
      %s172 = sphi 0, %s169
      %s173 = sphi 0, %s172
      %s189 = sphi 0, %s173
    $region4: #{tpu_custom_call.1} parent=1 // loop_header_branch
      %26 = sbr.rel (%p24) target = $region8
    $region5: #{tpu_custom_call.1} parent=1 // loop_body
      %s28 = ssub.s32 %s23, 1
      %s29 = ssub.s32 %s23, 2
      %s30 = sadd.s32 %s23, 1
      %s31 = ssub.s32 %s23, %s30
      %p32 = scmp.eq.s32.totalorder %s31, 0
      %s34 = sadd.s32 %s33, 1
      %s35 = scalar_select %p32, %s33, %s34
      %p38 = pneg %p32
      %p39 = scmp.eq.s32.totalorder %s23, 1
      %p40 = por %p38, %p39
      %p41 = scmp.ne.s32.totalorder %s33, %s36
      %p42 = scmp.eq.s32.totalorder %s23, 0
      %p43 = por %p41, %p42
      %p44 = scmp.ne.s32.totalorder %s33, %s36
      %p45 = scmp.eq.s32.totalorder %s28, 1
      %p46 = por %p44, %p45
      %p47 = scmp.ne.s32.totalorder %s36, %s37
      %p48 = scmp.eq.s32.totalorder %s28, 0
      %p49 = por %p47, %p48
      %p50 = scmp.ne.s32.totalorder %s36, %s37
      %p51 = scmp.eq.s32.totalorder %s29, 1
      %p52 = por %p50, %p51
      %p54 = scmp.ne.s32.totalorder %s37, %s53
      %p55 = scmp.eq.s32.totalorder %s29, 0
      %p56 = por %p54, %p55
      %s58 = sadd.s32 %s57, 1
      %p61 = scmp.eq.s32.totalorder %s23, 1
      %p62 = scmp.ne.s32.totalorder %s57, %s59
      %p63 = scmp.eq.s32.totalorder %s23, 0
      %p64 = por %p62, %p63
      %p65 = scmp.ne.s32.totalorder %s57, %s59
      %p66 = scmp.eq.s32.totalorder %s28, 1
      %p67 = por %p65, %p66
      %p68 = scmp.ne.s32.totalorder %s59, %s60
      %p69 = scmp.eq.s32.totalorder %s28, 0
      %p70 = por %p68, %p69
      %p71 = scmp.ne.s32.totalorder %s59, %s60
      %p72 = scmp.eq.s32.totalorder %s29, 1
      %p73 = por %p71, %p72
      %p75 = scmp.ne.s32.totalorder %s60, %s74
      %p76 = scmp.eq.s32.totalorder %s29, 0
      %p77 = por %p75, %p76
      %s79 = sadd.s32 %s78, 1
      %p82 = scmp.eq.s32.totalorder %s23, 1
      %p83 = scmp.ne.s32.totalorder %s78, %s80
      %p84 = scmp.eq.s32.totalorder %s23, 0
      %p85 = por %p83, %p84
      %p86 = scmp.ne.s32.totalorder %s78, %s80
      %p87 = scmp.eq.s32.totalorder %s28, 1
      %p88 = por %p86, %p87
      %p89 = scmp.ne.s32.totalorder %s80, %s81
      %p90 = scmp.eq.s32.totalorder %s28, 0
      %p91 = por %p89, %p90
      %p92 = scmp.ne.s32.totalorder %s80, %s81
      %p93 = scmp.eq.s32.totalorder %s29, 1
      %p94 = por %p92, %p93
      %p96 = scmp.ne.s32.totalorder %s81, %s95
      %p97 = scmp.eq.s32.totalorder %s29, 0
      %p98 = por %p96, %p97
      %s100 = sadd.s32 %s99, 1
      %p103 = scmp.eq.s32.totalorder %s23, 1
      %p104 = scmp.ne.s32.totalorder %s99, %s101
      %p105 = scmp.eq.s32.totalorder %s23, 0
      %p106 = por %p104, %p105
      %p107 = scmp.ne.s32.totalorder %s99, %s101
      %p108 = scmp.eq.s32.totalorder %s28, 1
      %p109 = por %p107, %p108
      %p110 = scmp.ne.s32.totalorder %s101, %s102
      %p111 = scmp.eq.s32.totalorder %s28, 0
      %p112 = por %p110, %p111
      %p113 = scmp.ne.s32.totalorder %s101, %s102
      %p114 = scmp.eq.s32.totalorder %s29, 1
      %p115 = por %p113, %p114
      %p117 = scmp.ne.s32.totalorder %s102, %s116
      %p118 = scmp.eq.s32.totalorder %s29, 0
      %p119 = por %p117, %p118
      %s121 = sadd.s32 %s120, 1
      %p124 = scmp.eq.s32.totalorder %s23, 1
      %p125 = scmp.ne.s32.totalorder %s120, %s122
      %p126 = scmp.eq.s32.totalorder %s23, 0
      %p127 = por %p125, %p126
      %p128 = scmp.ne.s32.totalorder %s120, %s122
      %p129 = scmp.eq.s32.totalorder %s28, 1
      %p130 = por %p128, %p129
      %p131 = scmp.ne.s32.totalorder %s122, %s123
      %p132 = scmp.eq.s32.totalorder %s28, 0
      %p133 = por %p131, %p132
      %p134 = scmp.ne.s32.totalorder %s122, %s123
      %p135 = scmp.eq.s32.totalorder %s29, 1
      %p136 = por %p134, %p135
      %p138 = scmp.ne.s32.totalorder %s123, %s137
      %p139 = scmp.eq.s32.totalorder %s29, 0
      %p140 = por %p138, %p139
      %s141 = ssub.s32 %s23, %s30
      %p142 = scmp.eq.s32.totalorder %s141, 0
      %s144 = sadd.s32 %s143, 1
      %s145 = scalar_select %p142, %s143, %s144
      %p148 = pneg %p142
      %p149 = scmp.eq.s32.totalorder %s23, 1
      %p150 = por %p148, %p149
      %p151 = scmp.ne.s32.totalorder %s143, %s146
      %p152 = scmp.eq.s32.totalorder %s23, 0
      %p153 = por %p151, %p152
      %p154 = scmp.ne.s32.totalorder %s143, %s146
      %p155 = scmp.eq.s32.totalorder %s28, 1
      %p156 = por %p154, %p155
      %p157 = scmp.ne.s32.totalorder %s146, %s147
      %p158 = scmp.eq.s32.totalorder %s28, 0
      %p159 = por %p157, %p158
      %p160 = scmp.ne.s32.totalorder %s146, %s147
      %p161 = scmp.eq.s32.totalorder %s29, 1
      %p162 = por %p160, %p161
      %p164 = scmp.ne.s32.totalorder %s147, %s163
      %p165 = scmp.eq.s32.totalorder %s29, 0
      %p166 = por %p164, %p165
      %s167 = ssub.s32 %s23, %s30
      %p168 = scmp.eq.s32.totalorder %s167, 0
      %s170 = sadd.s32 %s169, 1
      %s171 = scalar_select %p168, %s169, %s170
      %p174 = pneg %p168
      %p175 = scmp.eq.s32.totalorder %s23, 1
      %p176 = por %p174, %p175
      %p177 = scmp.ne.s32.totalorder %s169, %s172
      %p178 = scmp.eq.s32.totalorder %s23, 0
      %p179 = por %p177, %p178
      %p180 = scmp.ne.s32.totalorder %s169, %s172
      %p181 = scmp.eq.s32.totalorder %s28, 1
      %p182 = por %p180, %p181
      %p183 = scmp.ne.s32.totalorder %s172, %s173
      %p184 = scmp.eq.s32.totalorder %s28, 0
      %p185 = por %p183, %p184
      %p186 = scmp.ne.s32.totalorder %s172, %s173
      %p187 = scmp.eq.s32.totalorder %s29, 1
      %p188 = por %p186, %p187
      %p190 = scmp.ne.s32.totalorder %s173, %s189
      %p191 = scmp.eq.s32.totalorder %s29, 0
      %p192 = por %p190, %p191
      %p193 = scmp.le.s32.totalorder 1, %s23
      %p194 = scmp.lt.s32.totalorder %s23, 3
      %p195 = pnand %p193, %p194
      %p196 = pneg %p195
      // Predicated region
      $region9: #{tpu_custom_call.1} parent=5 // pred_check
        _
      $region10: #{tpu_custom_call.1} parent=5 // pred_check_branch
        %198 = sbr.rel (%p195) target = $region12
      $region11: #{tpu_custom_call.1} parent=5 // pred_region
        %s199 = ssub.s32 %s23, 1
        // Predicated region
        $region13: #{tpu_custom_call.1} parent=11 // pred_check
          %p200 = pneg %p70
        $region14: #{tpu_custom_call.1} parent=11 // pred_check_branch
          %202 = sbr.rel (%p200) target = $region16
        $region15: #{tpu_custom_call.1} parent=11 // pred_region
          %s204 = ssub.s32 256, 256
          %205 = vsyncadd [#allocation6], %s204
          %s206 = sshll.u32 [#allocation5], 4
          %s207 = int_to_ptr.vmem [resolvable:$true] %s206
          %212 = dma.hbm_to_vmem [thread:$0]  %s1, 256, %s207, [#allocation6], 64, 64, 4
        $region16: #{tpu_custom_call.1} parent=11 // pred_fallthru
          _
        // Predicated region
        $region17: #{tpu_custom_call.1} parent=11 // pred_check
          %p213 = pneg %p91
        $region18: #{tpu_custom_call.1} parent=11 // pred_check_branch
          %215 = sbr.rel (%p213) target = $region20
        $region19: #{tpu_custom_call.1} parent=11 // pred_region
          _
        $region20: #{tpu_custom_call.1} parent=11 // pred_fallthru
          _
        // Predicated region
        $region21: #{tpu_custom_call.1} parent=11 // pred_check
          %p216 = pneg %p112
        $region22: #{tpu_custom_call.1} parent=11 // pred_check_branch
          %218 = sbr.rel (%p216) target = $region24
        $region23: #{tpu_custom_call.1} parent=11 // pred_region
          %s220 = ssub.s32 256, 256
          %221 = vsyncadd [#allocation6], %s220
          %s222 = sshll.u32 [#allocation7], 4
          %s223 = int_to_ptr.vmem [resolvable:$true] %s222
          %228 = dma.hbm_to_vmem [thread:$0]  %s3, 256, %s223, [#allocation6], 64, 64, 4
        $region24: #{tpu_custom_call.1} parent=11 // pred_fallthru
          _
        // Predicated region
        $region25: #{tpu_custom_call.1} parent=11 // pred_check
          %p229 = pneg %p133
        $region26: #{tpu_custom_call.1} parent=11 // pred_check_branch
          %231 = sbr.rel (%p229) target = $region28
        $region27: #{tpu_custom_call.1} parent=11 // pred_region
          _
        $region28: #{tpu_custom_call.1} parent=11 // pred_fallthru
          _
      $region12: #{tpu_custom_call.1} parent=5 // pred_fallthru
        _
      %p232 = scmp.lt.s32.totalorder %s23, 2
      // Predicated region
      $region29: #{tpu_custom_call.1} parent=5 // pred_check
        %p233 = pneg %p232
      $region30: #{tpu_custom_call.1} parent=5 // pred_check_branch
        %235 = sbr.rel (%p233) target = $region32
      $region31: #{tpu_custom_call.1} parent=5 // pred_region
        // Predicated region
        $region33: #{tpu_custom_call.1} parent=31 // pred_check
          %p236 = pneg %p43
        $region34: #{tpu_custom_call.1} parent=31 // pred_check_branch
          %238 = sbr.rel (%p236) target = $region36
        $region35: #{tpu_custom_call.1} parent=31 // pred_region
          %s239 = sand.u32 %s33, 1
          %s240 = scalar_lea.sflag [#allocation3], %s239
          %s241 = sand.u32 %s33, 1
          %s242 = smul.addr %s241, 8
          %s243 = scalar_lea.vmem [#allocation2], %s242
          %s244 = smul.u32 2, %s23
          %s246 = ssub.s32 128, 128
          %247 = vsyncadd %s240, %s246
          %s248 = smul.addr %s244, 64
          %s249 = scalar_lea.hbm %s0, %s248
          %s250 = sshll.u32 %s243, 4
          %s251 = int_to_ptr.vmem [resolvable:$true] %s250
          %256 = dma.hbm_to_vmem [thread:$0]  %s249, 128, %s251, %s240, 64, 64, 4
        $region36: #{tpu_custom_call.1} parent=31 // pred_fallthru
          _
      $region32: #{tpu_custom_call.1} parent=5 // pred_fallthru
        _
      %p257 = scmp.le.s32.totalorder 1, %s23
      %p258 = scmp.lt.s32.totalorder %s23, 3
      %p259 = pnand %p257, %p258
      %p260 = pneg %p259
      // Predicated region
      $region37: #{tpu_custom_call.1} parent=5 // pred_check
        _
      $region38: #{tpu_custom_call.1} parent=5 // pred_check_branch
        %262 = sbr.rel (%p259) target = $region40
      $region39: #{tpu_custom_call.1} parent=5 // pred_region
        %s263 = ssub.s32 %s23, 1
        %s264 = sand.u32 %s36, 1
        %s265 = scalar_lea.sflag [#allocation3], %s264
        %s266 = sand.u32 %s36, 1
        %s267 = smul.addr %s266, 8
        %s268 = scalar_lea.vmem [#allocation2], %s267
        // Predicated region
        $region41: #{tpu_custom_call.1} parent=39 // pred_check
          %p269 = pneg %p49
        $region42: #{tpu_custom_call.1} parent=39 // pred_check_branch
          %271 = sbr.rel (%p269) target = $region44
        $region43: #{tpu_custom_call.1} parent=39 // pred_region
          %272 = dma.done %s265, 128
        $region44: #{tpu_custom_call.1} parent=39 // pred_fallthru
          _
        // Predicated region
        $region45: #{tpu_custom_call.1} parent=39 // pred_check
          %p273 = pneg %p70
        $region46: #{tpu_custom_call.1} parent=39 // pred_check_branch
          %275 = sbr.rel (%p273) target = $region48
        $region47: #{tpu_custom_call.1} parent=39 // pred_region
          %276 = dma.done [#allocation6], 256
        $region48: #{tpu_custom_call.1} parent=39 // pred_fallthru
          _
        // Predicated region
        $region49: #{tpu_custom_call.1} parent=39 // pred_check
          %p277 = pneg %p112
        $region50: #{tpu_custom_call.1} parent=39 // pred_check_branch
          %279 = sbr.rel (%p277) target = $region52
        $region51: #{tpu_custom_call.1} parent=39 // pred_region
          %280 = dma.done [#allocation6], 256
        $region52: #{tpu_custom_call.1} parent=39 // pred_fallthru
          _
        %s281 = sand.u32 %s36, 1
        %s282 = scalar_lea.sflag [#allocation3], %s281
        %s283 = sand.u32 %s36, 1
        %s284 = smul.addr %s283, 8
        %s285 = scalar_lea.vmem [#allocation2], %s284
        %p286 = pneg %p49
        %p287 = pneg %p46
        %p288 = pneg %p70
        %p289 = pneg %p67
        %p290 = pneg %p91
        %p291 = pneg %p88
        %p292 = pneg %p112
        %p293 = pneg %p109
        %p294 = pneg %p133
        %p295 = pneg %p130
        %p296 = pneg %p159
        %p297 = pneg %p156
        %s298 = sand.u32 %s146, 1
        %s299 = scalar_lea.sflag [#allocation4], %s298
        %s300 = sand.u32 %s146, 1
        %s301 = smul.addr %s300, 16
        %s302 = scalar_lea.vmem [#allocation8], %s301
        %p303 = pneg %p185
        %p304 = pneg %p182
        %s305 = sand.u32 %s172, 1
        %s306 = scalar_lea.sflag [#allocation10], %s305
        %s307 = sand.u32 %s172, 1
        %s308 = smul.addr %s307, 32
        %s309 = scalar_lea.vmem [#allocation9], %s308
        %s310 = smul.u32 2, %s28
        %s311 = smul.u32 2, %s28
        %s312 = smul.u32 2, %s28
        %v314 = vld [vmem:[%s268] sm:$0xf]
        %v315 = vld [vmem:[%s268 + $0x4] sm:$0xf]
        %v316 = vld [vmem:[#allocation5] sm:$0xf]
        %v317 = vld [vmem:[#allocation5 + $0x4] sm:$0xf]
        %v318 = vld [vmem:[#allocation5 + $0x8] sm:$0xf]
        %v319 = vld [vmem:[#allocation5 + $0xc] sm:$0xf]
        %v320 = vld [vmem:[%s2] sm:$0x1]
        %v322 = vlaneseq
        %v323 = vshrl.u32 %v322, 7
        %v324 = vsub.s32 0, %v323
        %v325 = vrot.slane %v320, %v324
        %v329 = vunpack.c.l.b16 %v314
        %v330 = vunpack.c.l.b16 %v315
        %v331 = vpack.c.b16 %v330, %v329
        %v336 = vunpack.c.l.b16 %v316
        %v337 = vunpack.c.l.b16 %v317
        %v338 = vunpack.c.l.b16 %v318
        %v339 = vunpack.c.l.b16 %v319
        %v340 = vpack.c.b16 %v337, %v336
        %v341 = vpack.c.b16 %v339, %v338
        %vm344 = vcmask 261120
        %v346 = vsel %vm344, %v331, 0
        %348 = vmatprep.subr.bf16.mxu0 0
        %349 = vmatpush1.bf16.msra.mxu0 %v340
        %350 = vmatprep.subr.bf16.mxu0 0
        %351 = vmatpush1.bf16.msra.mxu0 %v341
        %352 = vmatprep.subr.bf16.mxu0 0
        %353 = vmatpush1.bf16.msra.mxu0 0
        %354 = vmatprep.subr.bf16.mxu0 0
        %355 = vmatpush1.bf16.msra.mxu0 0
        %356 = vmatprep.subr.bf16.mxu0 0
        %357 = vmatpush1.bf16.msra.mxu0 0
        %358 = vmatprep.subr.bf16.mxu0 0
        %359 = vmatpush1.bf16.msra.mxu0 0
        %360 = vmatprep.subr.bf16.mxu0 0
        %361 = vmatpush1.bf16.msra.mxu0 0
        %362 = vmatprep.subr.bf16.mxu0 0
        %363 = vmatpush1.bf16.msra.mxu0 0
        %364 = vmatprep.subr.bf16.mxu0 0
        %365 = vmatpush1.bf16.msra.mxu0 0
        %366 = vmatprep.subr.bf16.mxu0 0
        %367 = vmatpush1.bf16.msra.mxu0 0
        %368 = vmatprep.subr.bf16.mxu0 0
        %369 = vmatpush1.bf16.msra.mxu0 0
        %370 = vmatprep.subr.bf16.mxu0 0
        %371 = vmatpush1.bf16.msra.mxu0 0
        %372 = vmatprep.subr.bf16.mxu0 0
        %373 = vmatpush1.bf16.msra.mxu0 0
        %374 = vmatprep.subr.bf16.mxu0 0
        %375 = vmatpush1.bf16.msra.mxu0 0
        %376 = vmatprep.subr.bf16.mxu0 0
        %377 = vmatpush1.bf16.msra.mxu0 0
        %378 = vmatprep.subr.bf16.mxu0 0
        %379 = vmatpush1.bf16.msra.mxu0 0
        %380 = vmatprep.mubr.bf16.mxu0 0
        %381 = vmatmul.mubr.bf16.gmra.mrb[0].mxu0 %v346
        %v382 = vpop.f32.mrb[0].mxu0
        %v383 = vadd.f32 %v325, %v382
        %v384 = vpop.f32.mrb[0].mxu0
        %v385 = vpop.f32.mrb[0].mxu0
        %v386 = vadd.f32 %v325, %v385
        %v387 = vpop.f32.mrb[0].mxu0
        %388 = vdwg.mxu0
        %v389 = vmul.f32 %v383, 0.35355338
        %v390 = vmul.f32 %v386, 0.35355338
        %393 = vrot.lane.b32.xlu0 %v389, 120
        %v394 = vpop.permute.xlu0 %393
        %395 = vrot.lane.b32.xlu0 %v390, 120
        %v396 = vpop.permute.xlu0 %395
        %399 = vrot.lane.b32.xlu0 %v389, 112
        %v400 = vpop.permute.xlu0 %399
        %401 = vrot.lane.b32.xlu0 %v390, 112
        %v402 = vpop.permute.xlu0 %401
        %405 = vrot.lane.b32.xlu0 %v389, 104
        %v406 = vpop.permute.xlu0 %405
        %407 = vrot.lane.b32.xlu0 %v390, 104
        %v408 = vpop.permute.xlu0 %407
        %v411 = vcombine.low %v389, %v400
        %v412 = vcombine.high %v389, %v400
        %v414 = vunpack.c.l.s4 1983009808
        %v415 = vunpack.c.0.s8 %v414
        %v416 = vlaneseq
        %v417 = vshrl.u32 %v416, 7
        %v418 = vsub.s32 %v415, %v417
        %v419 = vrot.slane %v411, %v418
        %v421 = vunpack.c.l.s4 1983009808
        %v422 = vunpack.c.0.s8 %v421
        %v423 = vlaneseq
        %v424 = vshrl.u32 %v423, 7
        %v425 = vsub.s32 %v422, %v424
        %v426 = vrot.slane %v412, %v425
        %v427 = vcombine.low %v394, %v406
        %v428 = vcombine.high %v394, %v406
        %v430 = vunpack.c.l.s4 1983009808
        %v431 = vunpack.c.0.s8 %v430
        %v432 = vlaneseq
        %v433 = vshrl.u32 %v432, 7
        %v434 = vsub.s32 %v431, %v433
        %v435 = vrot.slane %v427, %v434
        %v437 = vunpack.c.l.s4 1983009808
        %v438 = vunpack.c.0.s8 %v437
        %v439 = vlaneseq
        %v440 = vshrl.u32 %v439, 7
        %v441 = vsub.s32 %v438, %v440
        %v442 = vrot.slane %v428, %v441
        %v443 = vcombine.low %v419, %v435
        %v444 = vcombine.high %v419, %v435
        %v446 = vunpack.c.l.s4 1934713408
        %v447 = vunpack.c.0.s8 %v446
        %v448 = vlaneseq
        %v449 = vshrl.u32 %v448, 7
        %v450 = vsub.s32 %v447, %v449
        %v451 = vrot.slane %v443, %v450
        %v453 = vunpack.c.l.s4 1934713408
        %v454 = vunpack.c.0.s8 %v453
        %v455 = vlaneseq
        %v456 = vshrl.u32 %v455, 7
        %v457 = vsub.s32 %v454, %v456
        %v458 = vrot.slane %v444, %v457
        %v459 = vcombine.low %v426, %v442
        %v460 = vcombine.high %v426, %v442
        %v462 = vunpack.c.l.s4 1934713408
        %v463 = vunpack.c.0.s8 %v462
        %v464 = vlaneseq
        %v465 = vshrl.u32 %v464, 7
        %v466 = vsub.s32 %v463, %v465
        %v467 = vrot.slane %v459, %v466
        %v469 = vunpack.c.l.s4 1934713408
        %v470 = vunpack.c.0.s8 %v469
        %v471 = vlaneseq
        %v472 = vshrl.u32 %v471, 7
        %v473 = vsub.s32 %v470, %v472
        %v474 = vrot.slane %v460, %v473
        %v475 = vcombine.high %v451, 0.0
        %v476 = vcombine.high %v458, 0.0
        %v477 = vcombine.high %v467, 0.0
        %v478 = vcombine.high %v474, 0.0
        %v479 = vcombine.low %v390, %v402
        %v480 = vcombine.high %v390, %v402
        %v482 = vunpack.c.l.s4 1983009808
        %v483 = vunpack.c.0.s8 %v482
        %v484 = vlaneseq
        %v485 = vshrl.u32 %v484, 7
        %v486 = vsub.s32 %v483, %v485
        %v487 = vrot.slane %v479, %v486
        %v489 = vunpack.c.l.s4 1983009808
        %v490 = vunpack.c.0.s8 %v489
        %v491 = vlaneseq
        %v492 = vshrl.u32 %v491, 7
        %v493 = vsub.s32 %v490, %v492
        %v494 = vrot.slane %v480, %v493
        %v495 = vcombine.low %v396, %v408
        %v496 = vcombine.high %v396, %v408
        %v498 = vunpack.c.l.s4 1983009808
        %v499 = vunpack.c.0.s8 %v498
        %v500 = vlaneseq
        %v501 = vshrl.u32 %v500, 7
        %v502 = vsub.s32 %v499, %v501
        %v503 = vrot.slane %v495, %v502
        %v505 = vunpack.c.l.s4 1983009808
        %v506 = vunpack.c.0.s8 %v505
        %v507 = vlaneseq
        %v508 = vshrl.u32 %v507, 7
        %v509 = vsub.s32 %v506, %v508
        %v510 = vrot.slane %v496, %v509
        %v511 = vcombine.low %v487, %v503
        %v512 = vcombine.high %v487, %v503
        %v514 = vunpack.c.l.s4 1934713408
        %v515 = vunpack.c.0.s8 %v514
        %v516 = vlaneseq
        %v517 = vshrl.u32 %v516, 7
        %v518 = vsub.s32 %v515, %v517
        %v519 = vrot.slane %v511, %v518
        %v521 = vunpack.c.l.s4 1934713408
        %v522 = vunpack.c.0.s8 %v521
        %v523 = vlaneseq
        %v524 = vshrl.u32 %v523, 7
        %v525 = vsub.s32 %v522, %v524
        %v526 = vrot.slane %v512, %v525
        %v527 = vcombine.low %v494, %v510
        %v528 = vcombine.high %v494, %v510
        %v530 = vunpack.c.l.s4 1934713408
        %v531 = vunpack.c.0.s8 %v530
        %v532 = vlaneseq
        %v533 = vshrl.u32 %v532, 7
        %v534 = vsub.s32 %v531, %v533
        %v535 = vrot.slane %v527, %v534
        %v537 = vunpack.c.l.s4 1934713408
        %v538 = vunpack.c.0.s8 %v537
        %v539 = vlaneseq
        %v540 = vshrl.u32 %v539, 7
        %v541 = vsub.s32 %v538, %v540
        %v542 = vrot.slane %v528, %v541
        %v543 = vcombine.high %v519, 0.0
        %v544 = vcombine.high %v526, 0.0
        %v545 = vcombine.high %v535, 0.0
        %v546 = vcombine.high %v542, 0.0
        %v547 = vcombine.low %v451, %v458
        %v549 = vunpack.c.l.s4 1983009808
        %v550 = vunpack.c.0.s8 %v549
        %v551 = vlaneseq
        %v552 = vshrl.u32 %v551, 7
        %v553 = vsub.s32 %v550, %v552
        %v554 = vrot.slane %v547, %v553
        %v555 = vcombine.low %v475, %v476
        %v557 = vunpack.c.l.s4 1983009808
        %v558 = vunpack.c.0.s8 %v557
        %v559 = vlaneseq
        %v560 = vshrl.u32 %v559, 7
        %v561 = vsub.s32 %v558, %v560
        %v562 = vrot.slane %v555, %v561
        %v563 = vcombine.low %v467, %v474
        %v565 = vunpack.c.l.s4 1983009808
        %v566 = vunpack.c.0.s8 %v565
        %v567 = vlaneseq
        %v568 = vshrl.u32 %v567, 7
        %v569 = vsub.s32 %v566, %v568
        %v570 = vrot.slane %v563, %v569
        %v571 = vcombine.low %v477, %v478
        %v573 = vunpack.c.l.s4 1983009808
        %v574 = vunpack.c.0.s8 %v573
        %v575 = vlaneseq
        %v576 = vshrl.u32 %v575, 7
        %v577 = vsub.s32 %v574, %v576
        %v578 = vrot.slane %v571, %v577
        %v579 = vcombine.low %v554, %v562
        %v580 = vcombine.high %v554, %v562
        %v582 = vunpack.c.l.s4 1934713408
        %v583 = vunpack.c.0.s8 %v582
        %v584 = vlaneseq
        %v585 = vshrl.u32 %v584, 7
        %v586 = vsub.s32 %v583, %v585
        %v587 = vrot.slane %v579, %v586
        %v589 = vunpack.c.l.s4 1934713408
        %v590 = vunpack.c.0.s8 %v589
        %v591 = vlaneseq
        %v592 = vshrl.u32 %v591, 7
        %v593 = vsub.s32 %v590, %v592
        %v594 = vrot.slane %v580, %v593
        %v595 = vcombine.low %v570, %v578
        %v596 = vcombine.high %v570, %v578
        %v598 = vunpack.c.l.s4 1934713408
        %v599 = vunpack.c.0.s8 %v598
        %v600 = vlaneseq
        %v601 = vshrl.u32 %v600, 7
        %v602 = vsub.s32 %v599, %v601
        %v603 = vrot.slane %v595, %v602
        %v605 = vunpack.c.l.s4 1934713408
        %v606 = vunpack.c.0.s8 %v605
        %v607 = vlaneseq
        %v608 = vshrl.u32 %v607, 7
        %v609 = vsub.s32 %v606, %v608
        %v610 = vrot.slane %v596, %v609
        %v611 = vcombine.low %v587, %v603
        %v612 = vcombine.high %v587, %v603
        %v613 = vcombine.low %v594, %v610
        %v614 = vcombine.high %v594, %v610
        %v615 = vcombine.low %v519, %v526
        %v617 = vunpack.c.l.s4 1983009808
        %v618 = vunpack.c.0.s8 %v617
        %v619 = vlaneseq
        %v620 = vshrl.u32 %v619, 7
        %v621 = vsub.s32 %v618, %v620
        %v622 = vrot.slane %v615, %v621
        %v623 = vcombine.low %v543, %v544
        %v625 = vunpack.c.l.s4 1983009808
        %v626 = vunpack.c.0.s8 %v625
        %v627 = vlaneseq
        %v628 = vshrl.u32 %v627, 7
        %v629 = vsub.s32 %v626, %v628
        %v630 = vrot.slane %v623, %v629
        %v631 = vcombine.low %v535, %v542
        %v633 = vunpack.c.l.s4 1983009808
        %v634 = vunpack.c.0.s8 %v633
        %v635 = vlaneseq
        %v636 = vshrl.u32 %v635, 7
        %v637 = vsub.s32 %v634, %v636
        %v638 = vrot.slane %v631, %v637
        %v639 = vcombine.low %v545, %v546
        %v641 = vunpack.c.l.s4 1983009808
        %v642 = vunpack.c.0.s8 %v641
        %v643 = vlaneseq
        %v644 = vshrl.u32 %v643, 7
        %v645 = vsub.s32 %v642, %v644
        %v646 = vrot.slane %v639, %v645
        %v647 = vcombine.low %v622, %v630
        %v648 = vcombine.high %v622, %v630
        %v650 = vunpack.c.l.s4 1934713408
        %v651 = vunpack.c.0.s8 %v650
        %v652 = vlaneseq
        %v653 = vshrl.u32 %v652, 7
        %v654 = vsub.s32 %v651, %v653
        %v655 = vrot.slane %v647, %v654
        %v657 = vunpack.c.l.s4 1934713408
        %v658 = vunpack.c.0.s8 %v657
        %v659 = vlaneseq
        %v660 = vshrl.u32 %v659, 7
        %v661 = vsub.s32 %v658, %v660
        %v662 = vrot.slane %v648, %v661
        %v663 = vcombine.low %v638, %v646
        %v664 = vcombine.high %v638, %v646
        %v666 = vunpack.c.l.s4 1934713408
        %v667 = vunpack.c.0.s8 %v666
        %v668 = vlaneseq
        %v669 = vshrl.u32 %v668, 7
        %v670 = vsub.s32 %v667, %v669
        %v671 = vrot.slane %v663, %v670
        %v673 = vunpack.c.l.s4 1934713408
        %v674 = vunpack.c.0.s8 %v673
        %v675 = vlaneseq
        %v676 = vshrl.u32 %v675, 7
        %v677 = vsub.s32 %v674, %v676
        %v678 = vrot.slane %v664, %v677
        %v679 = vcombine.low %v655, %v671
        %v680 = vcombine.high %v655, %v671
        %v681 = vcombine.low %v662, %v678
        %v682 = vcombine.high %v662, %v678
        %v683 = vpack.c.bf16 %v611, %v611
        %v684 = vpack.c.bf16 %v612, %v612
        %v685 = vpack.c.bf16 %v613, %v613
        %v686 = vpack.c.bf16 %v614, %v614
        %v687 = vpack.c.bf16 %v679, %v679
        %v688 = vpack.c.bf16 %v680, %v680
        %v689 = vpack.c.bf16 %v681, %v681
        %v690 = vpack.c.bf16 %v682, %v682
        %693 = vrot.lane.b32.xlu0 %v383, 120
        %v694 = vpop.permute.xlu0 %693
        %695 = vrot.lane.b32.xlu0 %v386, 120
        %v696 = vpop.permute.xlu0 %695
        %697 = vrot.lane.b32.xlu0 %v383, 112
        %v698 = vpop.permute.xlu0 %697
        %699 = vrot.lane.b32.xlu0 %v386, 112
        %v700 = vpop.permute.xlu0 %699
        %701 = vrot.lane.b32.xlu0 %v383, 104
        %v702 = vpop.permute.xlu0 %701
        %703 = vrot.lane.b32.xlu0 %v386, 104
        %v704 = vpop.permute.xlu0 %703
        %705 = vrot.lane.b32.xlu0 %v383, 96
        %v706 = vpop.permute.xlu0 %705
        %707 = vrot.lane.b32.xlu0 %v386, 96
        %v708 = vpop.permute.xlu0 %707
        %709 = vrot.lane.b32.xlu0 %v694, 96
        %v710 = vpop.permute.xlu0 %709
        %711 = vrot.lane.b32.xlu0 %v696, 96
        %v712 = vpop.permute.xlu0 %711
        %713 = vrot.lane.b32.xlu0 %v698, 96
        %v714 = vpop.permute.xlu0 %713
        %715 = vrot.lane.b32.xlu0 %v700, 96
        %v716 = vpop.permute.xlu0 %715
        %717 = vrot.lane.b32.xlu0 %v702, 96
        %v718 = vpop.permute.xlu0 %717
        %719 = vrot.lane.b32.xlu0 %v704, 96
        %v720 = vpop.permute.xlu0 %719
        %v729 = vcombine.low %v706, %v714
        %v730 = vcombine.high %v706, %v714
        %v732 = vunpack.c.l.s4 1983009808
        %v733 = vunpack.c.0.s8 %v732
        %v734 = vlaneseq
        %v735 = vshrl.u32 %v734, 7
        %v736 = vsub.s32 %v733, %v735
        %v737 = vrot.slane %v729, %v736
        %v739 = vunpack.c.l.s4 1983009808
        %v740 = vunpack.c.0.s8 %v739
        %v741 = vlaneseq
        %v742 = vshrl.u32 %v741, 7
        %v743 = vsub.s32 %v740, %v742
        %v744 = vrot.slane %v730, %v743
        %v745 = vcombine.low %v710, %v718
        %v746 = vcombine.high %v710, %v718
        %v748 = vunpack.c.l.s4 1983009808
        %v749 = vunpack.c.0.s8 %v748
        %v750 = vlaneseq
        %v751 = vshrl.u32 %v750, 7
        %v752 = vsub.s32 %v749, %v751
        %v753 = vrot.slane %v745, %v752
        %v755 = vunpack.c.l.s4 1983009808
        %v756 = vunpack.c.0.s8 %v755
        %v757 = vlaneseq
        %v758 = vshrl.u32 %v757, 7
        %v759 = vsub.s32 %v756, %v758
        %v760 = vrot.slane %v746, %v759
        %v761 = vcombine.low %v737, %v753
        %v762 = vcombine.high %v737, %v753
        %v764 = vunpack.c.l.s4 1934713408
        %v765 = vunpack.c.0.s8 %v764
        %v766 = vlaneseq
        %v767 = vshrl.u32 %v766, 7
        %v768 = vsub.s32 %v765, %v767
        %v769 = vrot.slane %v761, %v768
        %v771 = vunpack.c.l.s4 1934713408
        %v772 = vunpack.c.0.s8 %v771
        %v773 = vlaneseq
        %v774 = vshrl.u32 %v773, 7
        %v775 = vsub.s32 %v772, %v774
        %v776 = vrot.slane %v762, %v775
        %v777 = vcombine.low %v744, %v760
        %v778 = vcombine.high %v744, %v760
        %v780 = vunpack.c.l.s4 1934713408
        %v781 = vunpack.c.0.s8 %v780
        %v782 = vlaneseq
        %v783 = vshrl.u32 %v782, 7
        %v784 = vsub.s32 %v781, %v783
        %v785 = vrot.slane %v777, %v784
        %v787 = vunpack.c.l.s4 1934713408
        %v788 = vunpack.c.0.s8 %v787
        %v789 = vlaneseq
        %v790 = vshrl.u32 %v789, 7
        %v791 = vsub.s32 %v788, %v790
        %v792 = vrot.slane %v778, %v791
        %v793 = vcombine.high %v769, 0.0
        %v794 = vcombine.high %v776, 0.0
        %v795 = vcombine.high %v785, 0.0
        %v796 = vcombine.high %v792, 0.0
        %v797 = vcombine.low %v708, %v716
        %v798 = vcombine.high %v708, %v716
        %v800 = vunpack.c.l.s4 1983009808
        %v801 = vunpack.c.0.s8 %v800
        %v802 = vlaneseq
        %v803 = vshrl.u32 %v802, 7
        %v804 = vsub.s32 %v801, %v803
        %v805 = vrot.slane %v797, %v804
        %v807 = vunpack.c.l.s4 1983009808
        %v808 = vunpack.c.0.s8 %v807
        %v809 = vlaneseq
        %v810 = vshrl.u32 %v809, 7
        %v811 = vsub.s32 %v808, %v810
        %v812 = vrot.slane %v798, %v811
        %v813 = vcombine.low %v712, %v720
        %v814 = vcombine.high %v712, %v720
        %v816 = vunpack.c.l.s4 1983009808
        %v817 = vunpack.c.0.s8 %v816
        %v818 = vlaneseq
        %v819 = vshrl.u32 %v818, 7
        %v820 = vsub.s32 %v817, %v819
        %v821 = vrot.slane %v813, %v820
        %v823 = vunpack.c.l.s4 1983009808
        %v824 = vunpack.c.0.s8 %v823
        %v825 = vlaneseq
        %v826 = vshrl.u32 %v825, 7
        %v827 = vsub.s32 %v824, %v826
        %v828 = vrot.slane %v814, %v827
        %v829 = vcombine.low %v805, %v821
        %v830 = vcombine.high %v805, %v821
        %v832 = vunpack.c.l.s4 1934713408
        %v833 = vunpack.c.0.s8 %v832
        %v834 = vlaneseq
        %v835 = vshrl.u32 %v834, 7
        %v836 = vsub.s32 %v833, %v835
        %v837 = vrot.slane %v829, %v836
        %v839 = vunpack.c.l.s4 1934713408
        %v840 = vunpack.c.0.s8 %v839
        %v841 = vlaneseq
        %v842 = vshrl.u32 %v841, 7
        %v843 = vsub.s32 %v840, %v842
        %v844 = vrot.slane %v830, %v843
        %v845 = vcombine.low %v812, %v828
        %v846 = vcombine.high %v812, %v828
        %v848 = vunpack.c.l.s4 1934713408
        %v849 = vunpack.c.0.s8 %v848
        %v850 = vlaneseq
        %v851 = vshrl.u32 %v850, 7
        %v852 = vsub.s32 %v849, %v851
        %v853 = vrot.slane %v845, %v852
        %v855 = vunpack.c.l.s4 1934713408
        %v856 = vunpack.c.0.s8 %v855
        %v857 = vlaneseq
        %v858 = vshrl.u32 %v857, 7
        %v859 = vsub.s32 %v856, %v858
        %v860 = vrot.slane %v846, %v859
        %v861 = vcombine.high %v837, 0.0
        %v862 = vcombine.high %v844, 0.0
        %v863 = vcombine.high %v853, 0.0
        %v864 = vcombine.high %v860, 0.0
        %v865 = vcombine.low %v769, %v776
        %v867 = vunpack.c.l.s4 1983009808
        %v868 = vunpack.c.0.s8 %v867
        %v869 = vlaneseq
        %v870 = vshrl.u32 %v869, 7
        %v871 = vsub.s32 %v868, %v870
        %v872 = vrot.slane %v865, %v871
        %v873 = vcombine.low %v793, %v794
        %v875 = vunpack.c.l.s4 1983009808
        %v876 = vunpack.c.0.s8 %v875
        %v877 = vlaneseq
        %v878 = vshrl.u32 %v877, 7
        %v879 = vsub.s32 %v876, %v878
        %v880 = vrot.slane %v873, %v879
        %v881 = vcombine.low %v785, %v792
        %v883 = vunpack.c.l.s4 1983009808
        %v884 = vunpack.c.0.s8 %v883
        %v885 = vlaneseq
        %v886 = vshrl.u32 %v885, 7
        %v887 = vsub.s32 %v884, %v886
        %v888 = vrot.slane %v881, %v887
        %v889 = vcombine.low %v795, %v796
        %v891 = vunpack.c.l.s4 1983009808
        %v892 = vunpack.c.0.s8 %v891
        %v893 = vlaneseq
        %v894 = vshrl.u32 %v893, 7
        %v895 = vsub.s32 %v892, %v894
        %v896 = vrot.slane %v889, %v895
        %v897 = vcombine.low %v872, %v880
        %v898 = vcombine.high %v872, %v880
        %v900 = vunpack.c.l.s4 1934713408
        %v901 = vunpack.c.0.s8 %v900
        %v902 = vlaneseq
        %v903 = vshrl.u32 %v902, 7
        %v904 = vsub.s32 %v901, %v903
        %v905 = vrot.slane %v897, %v904
        %v907 = vunpack.c.l.s4 1934713408
        %v908 = vunpack.c.0.s8 %v907
        %v909 = vlaneseq
        %v910 = vshrl.u32 %v909, 7
        %v911 = vsub.s32 %v908, %v910
        %v912 = vrot.slane %v898, %v911
        %v913 = vcombine.low %v888, %v896
        %v914 = vcombine.high %v888, %v896
        %v916 = vunpack.c.l.s4 1934713408
        %v917 = vunpack.c.0.s8 %v916
        %v918 = vlaneseq
        %v919 = vshrl.u32 %v918, 7
        %v920 = vsub.s32 %v917, %v919
        %v921 = vrot.slane %v913, %v920
        %v923 = vunpack.c.l.s4 1934713408
        %v924 = vunpack.c.0.s8 %v923
        %v925 = vlaneseq
        %v926 = vshrl.u32 %v925, 7
        %v927 = vsub.s32 %v924, %v926
        %v928 = vrot.slane %v914, %v927
        %v929 = vcombine.low %v905, %v921
        %v930 = vcombine.high %v905, %v921
        %v931 = vcombine.low %v912, %v928
        %v932 = vcombine.high %v912, %v928
        %v933 = vcombine.low %v837, %v844
        %v935 = vunpack.c.l.s4 1983009808
        %v936 = vunpack.c.0.s8 %v935
        %v937 = vlaneseq
        %v938 = vshrl.u32 %v937, 7
        %v939 = vsub.s32 %v936, %v938
        %v940 = vrot.slane %v933, %v939
        %v941 = vcombine.low %v861, %v862
        %v943 = vunpack.c.l.s4 1983009808
        %v944 = vunpack.c.0.s8 %v943
        %v945 = vlaneseq
        %v946 = vshrl.u32 %v945, 7
        %v947 = vsub.s32 %v944, %v946
        %v948 = vrot.slane %v941, %v947
        %v949 = vcombine.low %v853, %v860
        %v951 = vunpack.c.l.s4 1983009808
        %v952 = vunpack.c.0.s8 %v951
        %v953 = vlaneseq
        %v954 = vshrl.u32 %v953, 7
        %v955 = vsub.s32 %v952, %v954
        %v956 = vrot.slane %v949, %v955
        %v957 = vcombine.low %v863, %v864
        %v959 = vunpack.c.l.s4 1983009808
        %v960 = vunpack.c.0.s8 %v959
        %v961 = vlaneseq
        %v962 = vshrl.u32 %v961, 7
        %v963 = vsub.s32 %v960, %v962
        %v964 = vrot.slane %v957, %v963
        %v965 = vcombine.low %v940, %v948
        %v966 = vcombine.high %v940, %v948
        %v968 = vunpack.c.l.s4 1934713408
        %v969 = vunpack.c.0.s8 %v968
        %v970 = vlaneseq
        %v971 = vshrl.u32 %v970, 7
        %v972 = vsub.s32 %v969, %v971
        %v973 = vrot.slane %v965, %v972
        %v975 = vunpack.c.l.s4 1934713408
        %v976 = vunpack.c.0.s8 %v975
        %v977 = vlaneseq
        %v978 = vshrl.u32 %v977, 7
        %v979 = vsub.s32 %v976, %v978
        %v980 = vrot.slane %v966, %v979
        %v981 = vcombine.low %v956, %v964
        %v982 = vcombine.high %v956, %v964
        %v984 = vunpack.c.l.s4 1934713408
        %v985 = vunpack.c.0.s8 %v984
        %v986 = vlaneseq
        %v987 = vshrl.u32 %v986, 7
        %v988 = vsub.s32 %v985, %v987
        %v989 = vrot.slane %v981, %v988
        %v991 = vunpack.c.l.s4 1934713408
        %v992 = vunpack.c.0.s8 %v991
        %v993 = vlaneseq
        %v994 = vshrl.u32 %v993, 7
        %v995 = vsub.s32 %v992, %v994
        %v996 = vrot.slane %v982, %v995
        %v997 = vcombine.low %v973, %v989
        %v998 = vcombine.high %v973, %v989
        %v999 = vcombine.low %v980, %v996
        %v1000 = vcombine.high %v980, %v996
        %v1001 = vpack.c.bf16 %v929, %v929
        %v1002 = vpack.c.bf16 %v930, %v930
        %v1003 = vpack.c.bf16 %v931, %v931
        %v1004 = vpack.c.bf16 %v932, %v932
        %v1005 = vpack.c.bf16 %v997, %v997
        %v1006 = vpack.c.bf16 %v998, %v998
        %v1007 = vpack.c.bf16 %v999, %v999
        %v1008 = vpack.c.bf16 %v1000, %v1000
        %1009 = vrot.lane.b32.xlu0 %v383, 64
        %v1010 = vpop.permute.xlu0 %1009
        %1011 = vrot.lane.b32.xlu0 %v386, 64
        %v1012 = vpop.permute.xlu0 %1011
        %1013 = vrot.lane.b32.xlu0 %v694, 64
        %v1014 = vpop.permute.xlu0 %1013
        %1015 = vrot.lane.b32.xlu0 %v696, 64
        %v1016 = vpop.permute.xlu0 %1015
        %1017 = vrot.lane.b32.xlu0 %v698, 64
        %v1018 = vpop.permute.xlu0 %1017
        %1019 = vrot.lane.b32.xlu0 %v700, 64
        %v1020 = vpop.permute.xlu0 %1019
        %1021 = vrot.lane.b32.xlu0 %v702, 64
        %v1022 = vpop.permute.xlu0 %1021
        %1023 = vrot.lane.b32.xlu0 %v704, 64
        %v1024 = vpop.permute.xlu0 %1023
        %v1033 = vcombine.low %v1010, %v1018
        %v1034 = vcombine.high %v1010, %v1018
        %v1036 = vunpack.c.l.s4 1983009808
        %v1037 = vunpack.c.0.s8 %v1036
        %v1038 = vlaneseq
        %v1039 = vshrl.u32 %v1038, 7
        %v1040 = vsub.s32 %v1037, %v1039
        %v1041 = vrot.slane %v1033, %v1040
        %v1043 = vunpack.c.l.s4 1983009808
        %v1044 = vunpack.c.0.s8 %v1043
        %v1045 = vlaneseq
        %v1046 = vshrl.u32 %v1045, 7
        %v1047 = vsub.s32 %v1044, %v1046
        %v1048 = vrot.slane %v1034, %v1047
        %v1049 = vcombine.low %v1014, %v1022
        %v1050 = vcombine.high %v1014, %v1022
        %v1052 = vunpack.c.l.s4 1983009808
        %v1053 = vunpack.c.0.s8 %v1052
        %v1054 = vlaneseq
        %v1055 = vshrl.u32 %v1054, 7
        %v1056 = vsub.s32 %v1053, %v1055
        %v1057 = vrot.slane %v1049, %v1056
        %v1059 = vunpack.c.l.s4 1983009808
        %v1060 = vunpack.c.0.s8 %v1059
        %v1061 = vlaneseq
        %v1062 = vshrl.u32 %v1061, 7
        %v1063 = vsub.s32 %v1060, %v1062
        %v1064 = vrot.slane %v1050, %v1063
        %v1065 = vcombine.low %v1041, %v1057
        %v1066 = vcombine.high %v1041, %v1057
        %v1068 = vunpack.c.l.s4 1934713408
        %v1069 = vunpack.c.0.s8 %v1068
        %v1070 = vlaneseq
        %v1071 = vshrl.u32 %v1070, 7
        %v1072 = vsub.s32 %v1069, %v1071
        %v1073 = vrot.slane %v1065, %v1072
        %v1075 = vunpack.c.l.s4 1934713408
        %v1076 = vunpack.c.0.s8 %v1075
        %v1077 = vlaneseq
        %v1078 = vshrl.u32 %v1077, 7
        %v1079 = vsub.s32 %v1076, %v1078
        %v1080 = vrot.slane %v1066, %v1079
        %v1081 = vcombine.low %v1048, %v1064
        %v1082 = vcombine.high %v1048, %v1064
        %v1084 = vunpack.c.l.s4 1934713408
        %v1085 = vunpack.c.0.s8 %v1084
        %v1086 = vlaneseq
        %v1087 = vshrl.u32 %v1086, 7
        %v1088 = vsub.s32 %v1085, %v1087
        %v1089 = vrot.slane %v1081, %v1088
        %v1091 = vunpack.c.l.s4 1934713408
        %v1092 = vunpack.c.0.s8 %v1091
        %v1093 = vlaneseq
        %v1094 = vshrl.u32 %v1093, 7
        %v1095 = vsub.s32 %v1092, %v1094
        %v1096 = vrot.slane %v1082, %v1095
        %v1097 = vcombine.high %v1073, 0.0
        %v1098 = vcombine.high %v1080, 0.0
        %v1099 = vcombine.high %v1089, 0.0
        %v1100 = vcombine.high %v1096, 0.0
        %v1101 = vcombine.low %v1012, %v1020
        %v1102 = vcombine.high %v1012, %v1020
        %v1104 = vunpack.c.l.s4 1983009808
        %v1105 = vunpack.c.0.s8 %v1104
        %v1106 = vlaneseq
        %v1107 = vshrl.u32 %v1106, 7
        %v1108 = vsub.s32 %v1105, %v1107
        %v1109 = vrot.slane %v1101, %v1108
        %v1111 = vunpack.c.l.s4 1983009808
        %v1112 = vunpack.c.0.s8 %v1111
        %v1113 = vlaneseq
        %v1114 = vshrl.u32 %v1113, 7
        %v1115 = vsub.s32 %v1112, %v1114
        %v1116 = vrot.slane %v1102, %v1115
        %v1117 = vcombine.low %v1016, %v1024
        %v1118 = vcombine.high %v1016, %v1024
        %v1120 = vunpack.c.l.s4 1983009808
        %v1121 = vunpack.c.0.s8 %v1120
        %v1122 = vlaneseq
        %v1123 = vshrl.u32 %v1122, 7
        %v1124 = vsub.s32 %v1121, %v1123
        %v1125 = vrot.slane %v1117, %v1124
        %v1127 = vunpack.c.l.s4 1983009808
        %v1128 = vunpack.c.0.s8 %v1127
        %v1129 = vlaneseq
        %v1130 = vshrl.u32 %v1129, 7
        %v1131 = vsub.s32 %v1128, %v1130
        %v1132 = vrot.slane %v1118, %v1131
        %v1133 = vcombine.low %v1109, %v1125
        %v1134 = vcombine.high %v1109, %v1125
        %v1136 = vunpack.c.l.s4 1934713408
        %v1137 = vunpack.c.0.s8 %v1136
        %v1138 = vlaneseq
        %v1139 = vshrl.u32 %v1138, 7
        %v1140 = vsub.s32 %v1137, %v1139
        %v1141 = vrot.slane %v1133, %v1140
        %v1143 = vunpack.c.l.s4 1934713408
        %v1144 = vunpack.c.0.s8 %v1143
        %v1145 = vlaneseq
        %v1146 = vshrl.u32 %v1145, 7
        %v1147 = vsub.s32 %v1144, %v1146
        %v1148 = vrot.slane %v1134, %v1147
        %v1149 = vcombine.low %v1116, %v1132
        %v1150 = vcombine.high %v1116, %v1132
        %v1152 = vunpack.c.l.s4 1934713408
        %v1153 = vunpack.c.0.s8 %v1152
        %v1154 = vlaneseq
        %v1155 = vshrl.u32 %v1154, 7
        %v1156 = vsub.s32 %v1153, %v1155
        %v1157 = vrot.slane %v1149, %v1156
        %v1159 = vunpack.c.l.s4 1934713408
        %v1160 = vunpack.c.0.s8 %v1159
        %v1161 = vlaneseq
        %v1162 = vshrl.u32 %v1161, 7
        %v1163 = vsub.s32 %v1160, %v1162
        %v1164 = vrot.slane %v1150, %v1163
        %v1165 = vcombine.high %v1141, 0.0
        %v1166 = vcombine.high %v1148, 0.0
        %v1167 = vcombine.high %v1157, 0.0
        %v1168 = vcombine.high %v1164, 0.0
        %v1169 = vcombine.low %v1073, %v1080
        %v1171 = vunpack.c.l.s4 1983009808
        %v1172 = vunpack.c.0.s8 %v1171
        %v1173 = vlaneseq
        %v1174 = vshrl.u32 %v1173, 7
        %v1175 = vsub.s32 %v1172, %v1174
        %v1176 = vrot.slane %v1169, %v1175
        %v1177 = vcombine.low %v1097, %v1098
        %v1179 = vunpack.c.l.s4 1983009808
        %v1180 = vunpack.c.0.s8 %v1179
        %v1181 = vlaneseq
        %v1182 = vshrl.u32 %v1181, 7
        %v1183 = vsub.s32 %v1180, %v1182
        %v1184 = vrot.slane %v1177, %v1183
        %v1185 = vcombine.low %v1089, %v1096
        %v1187 = vunpack.c.l.s4 1983009808
        %v1188 = vunpack.c.0.s8 %v1187
        %v1189 = vlaneseq
        %v1190 = vshrl.u32 %v1189, 7
        %v1191 = vsub.s32 %v1188, %v1190
        %v1192 = vrot.slane %v1185, %v1191
        %v1193 = vcombine.low %v1099, %v1100
        %v1195 = vunpack.c.l.s4 1983009808
        %v1196 = vunpack.c.0.s8 %v1195
        %v1197 = vlaneseq
        %v1198 = vshrl.u32 %v1197, 7
        %v1199 = vsub.s32 %v1196, %v1198
        %v1200 = vrot.slane %v1193, %v1199
        %v1201 = vcombine.low %v1176, %v1184
        %v1202 = vcombine.high %v1176, %v1184
        %v1204 = vunpack.c.l.s4 1934713408
        %v1205 = vunpack.c.0.s8 %v1204
        %v1206 = vlaneseq
        %v1207 = vshrl.u32 %v1206, 7
        %v1208 = vsub.s32 %v1205, %v1207
        %v1209 = vrot.slane %v1201, %v1208
        %v1211 = vunpack.c.l.s4 1934713408
        %v1212 = vunpack.c.0.s8 %v1211
        %v1213 = vlaneseq
        %v1214 = vshrl.u32 %v1213, 7
        %v1215 = vsub.s32 %v1212, %v1214
        %v1216 = vrot.slane %v1202, %v1215
        %v1217 = vcombine.low %v1192, %v1200
        %v1218 = vcombine.high %v1192, %v1200
        %v1220 = vunpack.c.l.s4 1934713408
        %v1221 = vunpack.c.0.s8 %v1220
        %v1222 = vlaneseq
        %v1223 = vshrl.u32 %v1222, 7
        %v1224 = vsub.s32 %v1221, %v1223
        %v1225 = vrot.slane %v1217, %v1224
        %v1227 = vunpack.c.l.s4 1934713408
        %v1228 = vunpack.c.0.s8 %v1227
        %v1229 = vlaneseq
        %v1230 = vshrl.u32 %v1229, 7
        %v1231 = vsub.s32 %v1228, %v1230
        %v1232 = vrot.slane %v1218, %v1231
        %v1233 = vcombine.low %v1209, %v1225
        %v1234 = vcombine.high %v1209, %v1225
        %v1235 = vcombine.low %v1216, %v1232
        %v1236 = vcombine.high %v1216, %v1232
        %v1237 = vcombine.low %v1141, %v1148
        %v1239 = vunpack.c.l.s4 1983009808
        %v1240 = vunpack.c.0.s8 %v1239
        %v1241 = vlaneseq
        %v1242 = vshrl.u32 %v1241, 7
        %v1243 = vsub.s32 %v1240, %v1242
        %v1244 = vrot.slane %v1237, %v1243
        %v1245 = vcombine.low %v1165, %v1166
        %v1247 = vunpack.c.l.s4 1983009808
        %v1248 = vunpack.c.0.s8 %v1247
        %v1249 = vlaneseq
        %v1250 = vshrl.u32 %v1249, 7
        %v1251 = vsub.s32 %v1248, %v1250
        %v1252 = vrot.slane %v1245, %v1251
        %v1253 = vcombine.low %v1157, %v1164
        %v1255 = vunpack.c.l.s4 1983009808
        %v1256 = vunpack.c.0.s8 %v1255
        %v1257 = vlaneseq
        %v1258 = vshrl.u32 %v1257, 7
        %v1259 = vsub.s32 %v1256, %v1258
        %v1260 = vrot.slane %v1253, %v1259
        %v1261 = vcombine.low %v1167, %v1168
        %v1263 = vunpack.c.l.s4 1983009808
        %v1264 = vunpack.c.0.s8 %v1263
        %v1265 = vlaneseq
        %v1266 = vshrl.u32 %v1265, 7
        %v1267 = vsub.s32 %v1264, %v1266
        %v1268 = vrot.slane %v1261, %v1267
        %v1269 = vcombine.low %v1244, %v1252
        %v1270 = vcombine.high %v1244, %v1252
        %v1272 = vunpack.c.l.s4 1934713408
        %v1273 = vunpack.c.0.s8 %v1272
        %v1274 = vlaneseq
        %v1275 = vshrl.u32 %v1274, 7
        %v1276 = vsub.s32 %v1273, %v1275
        %v1277 = vrot.slane %v1269, %v1276
        %v1279 = vunpack.c.l.s4 1934713408
        %v1280 = vunpack.c.0.s8 %v1279
        %v1281 = vlaneseq
        %v1282 = vshrl.u32 %v1281, 7
        %v1283 = vsub.s32 %v1280, %v1282
        %v1284 = vrot.slane %v1270, %v1283
        %v1285 = vcombine.low %v1260, %v1268
        %v1286 = vcombine.high %v1260, %v1268
        %v1288 = vunpack.c.l.s4 1934713408
        %v1289 = vunpack.c.0.s8 %v1288
        %v1290 = vlaneseq
        %v1291 = vshrl.u32 %v1290, 7
        %v1292 = vsub.s32 %v1289, %v1291
        %v1293 = vrot.slane %v1285, %v1292
        %v1295 = vunpack.c.l.s4 1934713408
        %v1296 = vunpack.c.0.s8 %v1295
        %v1297 = vlaneseq
        %v1298 = vshrl.u32 %v1297, 7
        %v1299 = vsub.s32 %v1296, %v1298
        %v1300 = vrot.slane %v1286, %v1299
        %v1301 = vcombine.low %v1277, %v1293
        %v1302 = vcombine.high %v1277, %v1293
        %v1303 = vcombine.low %v1284, %v1300
        %v1304 = vcombine.high %v1284, %v1300
        %v1305 = vpack.c.bf16 %v1233, %v1233
        %v1306 = vpack.c.bf16 %v1234, %v1234
        %v1307 = vpack.c.bf16 %v1235, %v1235
        %v1308 = vpack.c.bf16 %v1236, %v1236
        %v1309 = vpack.c.bf16 %v1301, %v1301
        %v1310 = vpack.c.bf16 %v1302, %v1302
        %v1311 = vpack.c.bf16 %v1303, %v1303
        %v1312 = vpack.c.bf16 %v1304, %v1304
        %vm1313 = vcmask 64512
        %v1315 = vsel %vm1313, %v683, 0
        %v1318 = vsel %vm1313, %v1001, 0
        %1320 = vmatprep.subr.bf16.mxu0 0
        %1321 = vmatpush1.bf16.xpose.msra.mxu0 %v1318
        %1322 = vmatprep.subr.bf16.mxu0 0
        %1323 = vmatpush1.bf16.xpose.msra.mxu0 0
        %1324 = vmatprep.subr.bf16.mxu0 0
        %1325 = vmatpush1.bf16.xpose.msra.mxu0 0
        %1326 = vmatprep.subr.bf16.mxu0 0
        %1327 = vmatpush1.bf16.xpose.msra.mxu0 0
        %1328 = vmatprep.subr.bf16.mxu0 0
        %1329 = vmatpush1.bf16.xpose.msra.mxu0 0
        %1330 = vmatprep.subr.bf16.mxu0 0
        %1331 = vmatpush1.bf16.xpose.msra.mxu0 0
        %1332 = vmatprep.subr.bf16.mxu0 0
        %1333 = vmatpush1.bf16.xpose.msra.mxu0 0
        %1334 = vmatprep.subr.bf16.mxu0 0
        %1335 = vmatpush1.bf16.xpose.msra.mxu0 0
        %1336 = vmatprep.subr.bf16.mxu0 0
        %1337 = vmatpush1.bf16.xpose.msra.mxu0 0
        %1338 = vmatprep.subr.bf16.mxu0 0
        %1339 = vmatpush1.bf16.xpose.msra.mxu0 0
        %1340 = vmatprep.subr.bf16.mxu0 0
        %1341 = vmatpush1.bf16.xpose.msra.mxu0 0
        %1342 = vmatprep.subr.bf16.mxu0 0
        %1343 = vmatpush1.bf16.xpose.msra.mxu0 0
        %1344 = vmatprep.subr.bf16.mxu0 0
        %1345 = vmatpush1.bf16.xpose.msra.mxu0 0
        %1346 = vmatprep.subr.bf16.mxu0 0
        %1347 = vmatpush1.bf16.xpose.msra.mxu0 0
        %1348 = vmatprep.subr.bf16.mxu0 0
        %1349 = vmatpush1.bf16.xpose.msra.mxu0 0
        %1350 = vmatprep.subr.bf16.mxu0 0
        %1351 = vmatpush1.bf16.xpose.msra.mxu0 0
        %1352 = vmatprep.mubr.bf16.mxu0 0
        %1353 = vmatmul.mubr.bf16.gmra.mrb[0].mxu0 %v1315
        %v1354 = vpop.f32.mrb[0].mxu0
        %v1355 = vadd.f32 0.0, %v1354
        %v1356 = vpop.f32.mrb[0].mxu0
        %v1357 = vpop.f32.mrb[0].mxu0
        %v1358 = vpop.f32.mrb[0].mxu0
        %1359 = vdwg.mxu0
        %v1361 = vsel %vm1313, %v684, 0
        %v1364 = vsel %vm1313, %v1002, 0
        %1366 = vmatprep.subr.bf16.mxu0 0
        %1367 = vmatpush1.bf16.xpose.msra.mxu0 %v1364
        %1368 = vmatprep.subr.bf16.mxu0 0
        %1369 = vmatpush1.bf16.xpose.msra.mxu0 0
        %1370 = vmatprep.subr.bf16.mxu0 0
        %1371 = vmatpush1.bf16.xpose.msra.mxu0 0
        %1372 = vmatprep.subr.bf16.mxu0 0
        %1373 = vmatpush1.bf16.xpose.msra.mxu0 0
        %1374 = vmatprep.subr.bf16.mxu0 0
        %1375 = vmatpush1.bf16.xpose.msra.mxu0 0
        %1376 = vmatprep.subr.bf16.mxu0 0
        %1377 = vmatpush1.bf16.xpose.msra.mxu0 0
        %1378 = vmatprep.subr.bf16.mxu0 0
        %1379 = vmatpush1.bf16.xpose.msra.mxu0 0
        %1380 = vmatprep.subr.bf16.mxu0 0
        %1381 = vmatpush1.bf16.xpose.msra.mxu0 0
        %1382 = vmatprep.subr.bf16.mxu0 0
        %1383 = vmatpush1.bf16.xpose.msra.mxu0 0
        %1384 = vmatprep.subr.bf16.mxu0 0
        %1385 = vmatpush1.bf16.xpose.msra.mxu0 0
        %1386 = vmatprep.subr.bf16.mxu0 0
        %1387 = vmatpush1.bf16.xpose.msra.mxu0 0
        %1388 = vmatprep.subr.bf16.mxu0 0
        %1389 = vmatpush1.bf16.xpose.msra.mxu0 0
        %1390 = vmatprep.subr.bf16.mxu0 0
        %1391 = vmatpush1.bf16.xpose.msra.mxu0 0
        %1392 = vmatprep.subr.bf16.mxu0 0
        %1393 = vmatpush1.bf16.xpose.msra.mxu0 0
        %1394 = vmatprep.subr.bf16.mxu0 0
        %1395 = vmatpush1.bf16.xpose.msra.mxu0 0
        %1396 = vmatprep.subr.bf16.mxu0 0
        %1397 = vmatpush1.bf16.xpose.msra.mxu0 0
        %1398 = vmatprep.mubr.bf16.mxu0 0
        %1399 = vmatmul.mubr.bf16.gmra.mrb[0].mxu0 %v1361
        %v1400 = vpop.f32.mrb[0].mxu0
        %v1401 = vadd.f32 0.0, %v1400
        %v1402 = vpop.f32.mrb[0].mxu0
        %v1403 = vpop.f32.mrb[0].mxu0
        %v1404 = vpop.f32.mrb[0].mxu0
        %1405 = vdwg.mxu0
        %v1407 = vsel %vm1313, %v685, 0
        %v1410 = vsel %vm1313, %v1003, 0
        %1412 = vmatprep.subr.bf16.mxu0 0
        %1413 = vmatpush1.bf16.xpose.msra.mxu0 %v1410
        %1414 = vmatprep.subr.bf16.mxu0 0
        %1415 = vmatpush1.bf16.xpose.msra.mxu0 0
        %1416 = vmatprep.subr.bf16.mxu0 0
        %1417 = vmatpush1.bf16.xpose.msra.mxu0 0
        %1418 = vmatprep.subr.bf16.mxu0 0
        %1419 = vmatpush1.bf16.xpose.msra.mxu0 0
        %1420 = vmatprep.subr.bf16.mxu0 0
        %1421 = vmatpush1.bf16.xpose.msra.mxu0 0
        %1422 = vmatprep.subr.bf16.mxu0 0
        %1423 = vmatpush1.bf16.xpose.msra.mxu0 0
        %1424 = vmatprep.subr.bf16.mxu0 0
        %1425 = vmatpush1.bf16.xpose.msra.mxu0 0
        %1426 = vmatprep.subr.bf16.mxu0 0
        %1427 = vmatpush1.bf16.xpose.msra.mxu0 0
        %1428 = vmatprep.subr.bf16.mxu0 0
        %1429 = vmatpush1.bf16.xpose.msra.mxu0 0
        %1430 = vmatprep.subr.bf16.mxu0 0
        %1431 = vmatpush1.bf16.xpose.msra.mxu0 0
        %1432 = vmatprep.subr.bf16.mxu0 0
        %1433 = vmatpush1.bf16.xpose.msra.mxu0 0
        %1434 = vmatprep.subr.bf16.mxu0 0
        %1435 = vmatpush1.bf16.xpose.msra.mxu0 0
        %1436 = vmatprep.subr.bf16.mxu0 0
        %1437 = vmatpush1.bf16.xpose.msra.mxu0 0
        %1438 = vmatprep.subr.bf16.mxu0 0
        %1439 = vmatpush1.bf16.xpose.msra.mxu0 0
        %1440 = vmatprep.subr.bf16.mxu0 0
        %1441 = vmatpush1.bf16.xpose.msra.mxu0 0
        %1442 = vmatprep.subr.bf16.mxu0 0
        %1443 = vmatpush1.bf16.xpose.msra.mxu0 0
        %1444 = vmatprep.mubr.bf16.mxu0 0
        %1445 = vmatmul.mubr.bf16.gmra.mrb[0].mxu0 %v1407
        %v1446 = vpop.f32.mrb[0].mxu0
        %v1447 = vadd.f32 0.0, %v1446
        %v1448 = vpop.f32.mrb[0].mxu0
        %v1449 = vpop.f32.mrb[0].mxu0
        %v1450 = vpop.f32.mrb[0].mxu0
        %1451 = vdwg.mxu0
        %v1453 = vsel %vm1313, %v686, 0
        %v1456 = vsel %vm1313, %v1004, 0
        %1458 = vmatprep.subr.bf16.mxu0 0
        %1459 = vmatpush1.bf16.xpose.msra.mxu0 %v1456
        %1460 = vmatprep.subr.bf16.mxu0 0
        %1461 = vmatpush1.bf16.xpose.msra.mxu0 0
        %1462 = vmatprep.subr.bf16.mxu0 0
        %1463 = vmatpush1.bf16.xpose.msra.mxu0 0
        %1464 = vmatprep.subr.bf16.mxu0 0
        %1465 = vmatpush1.bf16.xpose.msra.mxu0 0
        %1466 = vmatprep.subr.bf16.mxu0 0
        %1467 = vmatpush1.bf16.xpose.msra.mxu0 0
        %1468 = vmatprep.subr.bf16.mxu0 0
        %1469 = vmatpush1.bf16.xpose.msra.mxu0 0
        %1470 = vmatprep.subr.bf16.mxu0 0
        %1471 = vmatpush1.bf16.xpose.msra.mxu0 0
        %1472 = vmatprep.subr.bf16.mxu0 0
        %1473 = vmatpush1.bf16.xpose.msra.mxu0 0
        %1474 = vmatprep.subr.bf16.mxu0 0
        %1475 = vmatpush1.bf16.xpose.msra.mxu0 0
        %1476 = vmatprep.subr.bf16.mxu0 0
        %1477 = vmatpush1.bf16.xpose.msra.mxu0 0
        %1478 = vmatprep.subr.bf16.mxu0 0
        %1479 = vmatpush1.bf16.xpose.msra.mxu0 0
        %1480 = vmatprep.subr.bf16.mxu0 0
        %1481 = vmatpush1.bf16.xpose.msra.mxu0 0
        %1482 = vmatprep.subr.bf16.mxu0 0
        %1483 = vmatpush1.bf16.xpose.msra.mxu0 0
        %1484 = vmatprep.subr.bf16.mxu0 0
        %1485 = vmatpush1.bf16.xpose.msra.mxu0 0
        %1486 = vmatprep.subr.bf16.mxu0 0
        %1487 = vmatpush1.bf16.xpose.msra.mxu0 0
        %1488 = vmatprep.subr.bf16.mxu0 0
        %1489 = vmatpush1.bf16.xpose.msra.mxu0 0
        %1490 = vmatprep.mubr.bf16.mxu0 0
        %1491 = vmatmul.mubr.bf16.gmra.mrb[0].mxu0 %v1453
        %v1492 = vpop.f32.mrb[0].mxu0
        %v1493 = vadd.f32 0.0, %v1492
        %v1494 = vpop.f32.mrb[0].mxu0
        %v1495 = vpop.f32.mrb[0].mxu0
        %v1496 = vpop.f32.mrb[0].mxu0
        %1497 = vdwg.mxu0
        %v1499 = vsel %vm1313, %v687, 0
        %v1502 = vsel %vm1313, %v1005, 0
        %1504 = vmatprep.subr.bf16.mxu0 0
        %1505 = vmatpush1.bf16.xpose.msra.mxu0 %v1502
        %1506 = vmatprep.subr.bf16.mxu0 0
        %1507 = vmatpush1.bf16.xpose.msra.mxu0 0
        %1508 = vmatprep.subr.bf16.mxu0 0
        %1509 = vmatpush1.bf16.xpose.msra.mxu0 0
        %1510 = vmatprep.subr.bf16.mxu0 0
        %1511 = vmatpush1.bf16.xpose.msra.mxu0 0
        %1512 = vmatprep.subr.bf16.mxu0 0
        %1513 = vmatpush1.bf16.xpose.msra.mxu0 0
        %1514 = vmatprep.subr.bf16.mxu0 0
        %1515 = vmatpush1.bf16.xpose.msra.mxu0 0
        %1516 = vmatprep.subr.bf16.mxu0 0
        %1517 = vmatpush1.bf16.xpose.msra.mxu0 0
        %1518 = vmatprep.subr.bf16.mxu0 0
        %1519 = vmatpush1.bf16.xpose.msra.mxu0 0
        %1520 = vmatprep.subr.bf16.mxu0 0
        %1521 = vmatpush1.bf16.xpose.msra.mxu0 0
        %1522 = vmatprep.subr.bf16.mxu0 0
        %1523 = vmatpush1.bf16.xpose.msra.mxu0 0
        %1524 = vmatprep.subr.bf16.mxu0 0
        %1525 = vmatpush1.bf16.xpose.msra.mxu0 0
        %1526 = vmatprep.subr.bf16.mxu0 0
        %1527 = vmatpush1.bf16.xpose.msra.mxu0 0
        %1528 = vmatprep.subr.bf16.mxu0 0
        %1529 = vmatpush1.bf16.xpose.msra.mxu0 0
        %1530 = vmatprep.subr.bf16.mxu0 0
        %1531 = vmatpush1.bf16.xpose.msra.mxu0 0
        %1532 = vmatprep.subr.bf16.mxu0 0
        %1533 = vmatpush1.bf16.xpose.msra.mxu0 0
        %1534 = vmatprep.subr.bf16.mxu0 0
        %1535 = vmatpush1.bf16.xpose.msra.mxu0 0
        %1536 = vmatprep.mubr.bf16.mxu0 0
        %1537 = vmatmul.mubr.bf16.gmra.mrb[0].mxu0 %v1499
        %v1538 = vpop.f32.mrb[0].mxu0
        %v1539 = vadd.f32 0.0, %v1538
        %v1540 = vpop.f32.mrb[0].mxu0
        %v1541 = vpop.f32.mrb[0].mxu0
        %v1542 = vpop.f32.mrb[0].mxu0
        %1543 = vdwg.mxu0
        %v1545 = vsel %vm1313, %v688, 0
        %v1548 = vsel %vm1313, %v1006, 0
        %1550 = vmatprep.subr.bf16.mxu0 0
        %1551 = vmatpush1.bf16.xpose.msra.mxu0 %v1548
        %1552 = vmatprep.subr.bf16.mxu0 0
        %1553 = vmatpush1.bf16.xpose.msra.mxu0 0
        %1554 = vmatprep.subr.bf16.mxu0 0
        %1555 = vmatpush1.bf16.xpose.msra.mxu0 0
        %1556 = vmatprep.subr.bf16.mxu0 0
        %1557 = vmatpush1.bf16.xpose.msra.mxu0 0
        %1558 = vmatprep.subr.bf16.mxu0 0
        %1559 = vmatpush1.bf16.xpose.msra.mxu0 0
        %1560 = vmatprep.subr.bf16.mxu0 0
        %1561 = vmatpush1.bf16.xpose.msra.mxu0 0
        %1562 = vmatprep.subr.bf16.mxu0 0
        %1563 = vmatpush1.bf16.xpose.msra.mxu0 0
        %1564 = vmatprep.subr.bf16.mxu0 0
        %1565 = vmatpush1.bf16.xpose.msra.mxu0 0
        %1566 = vmatprep.subr.bf16.mxu0 0
        %1567 = vmatpush1.bf16.xpose.msra.mxu0 0
        %1568 = vmatprep.subr.bf16.mxu0 0
        %1569 = vmatpush1.bf16.xpose.msra.mxu0 0
        %1570 = vmatprep.subr.bf16.mxu0 0
        %1571 = vmatpush1.bf16.xpose.msra.mxu0 0
        %1572 = vmatprep.subr.bf16.mxu0 0
        %1573 = vmatpush1.bf16.xpose.msra.mxu0 0
        %1574 = vmatprep.subr.bf16.mxu0 0
        %1575 = vmatpush1.bf16.xpose.msra.mxu0 0
        %1576 = vmatprep.subr.bf16.mxu0 0
        %1577 = vmatpush1.bf16.xpose.msra.mxu0 0
        %1578 = vmatprep.subr.bf16.mxu0 0
        %1579 = vmatpush1.bf16.xpose.msra.mxu0 0
        %1580 = vmatprep.subr.bf16.mxu0 0
        %1581 = vmatpush1.bf16.xpose.msra.mxu0 0
        %1582 = vmatprep.mubr.bf16.mxu0 0
        %1583 = vmatmul.mubr.bf16.gmra.mrb[0].mxu0 %v1545
        %v1584 = vpop.f32.mrb[0].mxu0
        %v1585 = vadd.f32 0.0, %v1584
        %v1586 = vpop.f32.mrb[0].mxu0
        %v1587 = vpop.f32.mrb[0].mxu0
        %v1588 = vpop.f32.mrb[0].mxu0
        %1589 = vdwg.mxu0
        %v1591 = vsel %vm1313, %v689, 0
        %v1594 = vsel %vm1313, %v1007, 0
        %1596 = vmatprep.subr.bf16.mxu0 0
        %1597 = vmatpush1.bf16.xpose.msra.mxu0 %v1594
        %1598 = vmatprep.subr.bf16.mxu0 0
        %1599 = vmatpush1.bf16.xpose.msra.mxu0 0
        %1600 = vmatprep.subr.bf16.mxu0 0
        %1601 = vmatpush1.bf16.xpose.msra.mxu0 0
        %1602 = vmatprep.subr.bf16.mxu0 0
        %1603 = vmatpush1.bf16.xpose.msra.mxu0 0
        %1604 = vmatprep.subr.bf16.mxu0 0
        %1605 = vmatpush1.bf16.xpose.msra.mxu0 0
        %1606 = vmatprep.subr.bf16.mxu0 0
        %1607 = vmatpush1.bf16.xpose.msra.mxu0 0
        %1608 = vmatprep.subr.bf16.mxu0 0
        %1609 = vmatpush1.bf16.xpose.msra.mxu0 0
        %1610 = vmatprep.subr.bf16.mxu0 0
        %1611 = vmatpush1.bf16.xpose.msra.mxu0 0
        %1612 = vmatprep.subr.bf16.mxu0 0
        %1613 = vmatpush1.bf16.xpose.msra.mxu0 0
        %1614 = vmatprep.subr.bf16.mxu0 0
        %1615 = vmatpush1.bf16.xpose.msra.mxu0 0
        %1616 = vmatprep.subr.bf16.mxu0 0
        %1617 = vmatpush1.bf16.xpose.msra.mxu0 0
        %1618 = vmatprep.subr.bf16.mxu0 0
        %1619 = vmatpush1.bf16.xpose.msra.mxu0 0
        %1620 = vmatprep.subr.bf16.mxu0 0
        %1621 = vmatpush1.bf16.xpose.msra.mxu0 0
        %1622 = vmatprep.subr.bf16.mxu0 0
        %1623 = vmatpush1.bf16.xpose.msra.mxu0 0
        %1624 = vmatprep.subr.bf16.mxu0 0
        %1625 = vmatpush1.bf16.xpose.msra.mxu0 0
        %1626 = vmatprep.subr.bf16.mxu0 0
        %1627 = vmatpush1.bf16.xpose.msra.mxu0 0
        %1628 = vmatprep.mubr.bf16.mxu0 0
        %1629 = vmatmul.mubr.bf16.gmra.mrb[0].mxu0 %v1591
        %v1630 = vpop.f32.mrb[0].mxu0
        %v1631 = vadd.f32 0.0, %v1630
        %v1632 = vpop.f32.mrb[0].mxu0
        %v1633 = vpop.f32.mrb[0].mxu0
        %v1634 = vpop.f32.mrb[0].mxu0
        %1635 = vdwg.mxu0
        %v1637 = vsel %vm1313, %v690, 0
        %v1640 = vsel %vm1313, %v1008, 0
        %1642 = vmatprep.subr.bf16.mxu0 0
        %1643 = vmatpush1.bf16.xpose.msra.mxu0 %v1640
        %1644 = vmatprep.subr.bf16.mxu0 0
        %1645 = vmatpush1.bf16.xpose.msra.mxu0 0
        %1646 = vmatprep.subr.bf16.mxu0 0
        %1647 = vmatpush1.bf16.xpose.msra.mxu0 0
        %1648 = vmatprep.subr.bf16.mxu0 0
        %1649 = vmatpush1.bf16.xpose.msra.mxu0 0
        %1650 = vmatprep.subr.bf16.mxu0 0
        %1651 = vmatpush1.bf16.xpose.msra.mxu0 0
        %1652 = vmatprep.subr.bf16.mxu0 0
        %1653 = vmatpush1.bf16.xpose.msra.mxu0 0
        %1654 = vmatprep.subr.bf16.mxu0 0
        %1655 = vmatpush1.bf16.xpose.msra.mxu0 0
        %1656 = vmatprep.subr.bf16.mxu0 0
        %1657 = vmatpush1.bf16.xpose.msra.mxu0 0
        %1658 = vmatprep.subr.bf16.mxu0 0
        %1659 = vmatpush1.bf16.xpose.msra.mxu0 0
        %1660 = vmatprep.subr.bf16.mxu0 0
        %1661 = vmatpush1.bf16.xpose.msra.mxu0 0
        %1662 = vmatprep.subr.bf16.mxu0 0
        %1663 = vmatpush1.bf16.xpose.msra.mxu0 0
        %1664 = vmatprep.subr.bf16.mxu0 0
        %1665 = vmatpush1.bf16.xpose.msra.mxu0 0
        %1666 = vmatprep.subr.bf16.mxu0 0
        %1667 = vmatpush1.bf16.xpose.msra.mxu0 0
        %1668 = vmatprep.subr.bf16.mxu0 0
        %1669 = vmatpush1.bf16.xpose.msra.mxu0 0
        %1670 = vmatprep.subr.bf16.mxu0 0
        %1671 = vmatpush1.bf16.xpose.msra.mxu0 0
        %1672 = vmatprep.subr.bf16.mxu0 0
        %1673 = vmatpush1.bf16.xpose.msra.mxu0 0
        %1674 = vmatprep.mubr.bf16.mxu0 0
        %1675 = vmatmul.mubr.bf16.gmra.mrb[0].mxu0 %v1637
        %v1676 = vpop.f32.mrb[0].mxu0
        %v1677 = vadd.f32 0.0, %v1676
        %v1678 = vpop.f32.mrb[0].mxu0
        %v1679 = vpop.f32.mrb[0].mxu0
        %v1680 = vpop.f32.mrb[0].mxu0
        %1681 = vdwg.mxu0
        %v1682 = vsel %vm1313, %v1355, -inf
        %1683 = vmax.xlane.f32.xlu0 %v1682
        %v1684 = vpop.xlane.xlu0 %1683
        %v1685 = vsel %vm1313, %v1401, -inf
        %1686 = vmax.xlane.f32.xlu0 %v1685
        %v1687 = vpop.xlane.xlu0 %1686
        %v1688 = vsel %vm1313, %v1447, -inf
        %1689 = vmax.xlane.f32.xlu0 %v1688
        %v1690 = vpop.xlane.xlu0 %1689
        %v1691 = vsel %vm1313, %v1493, -inf
        %1692 = vmax.xlane.f32.xlu0 %v1691
        %v1693 = vpop.xlane.xlu0 %1692
        %v1694 = vsel %vm1313, %v1539, -inf
        %1695 = vmax.xlane.f32.xlu0 %v1694
        %v1696 = vpop.xlane.xlu0 %1695
        %v1697 = vsel %vm1313, %v1585, -inf
        %1698 = vmax.xlane.f32.xlu0 %v1697
        %v1699 = vpop.xlane.xlu0 %1698
        %v1700 = vsel %vm1313, %v1631, -inf
        %1701 = vmax.xlane.f32.xlu0 %v1700
        %v1702 = vpop.xlane.xlu0 %1701
        %v1703 = vsel %vm1313, %v1677, -inf
        %1704 = vmax.xlane.f32.xlu0 %v1703
        %v1705 = vpop.xlane.xlu0 %1704
        %v1706 = vsub.f32 %v1355, %v1684
        %v1707 = vsub.f32 %v1401, %v1687
        %v1708 = vsub.f32 %v1447, %v1690
        %v1709 = vsub.f32 %v1493, %v1693
        %v1710 = vsub.f32 %v1539, %v1696
        %v1711 = vsub.f32 %v1585, %v1699
        %v1712 = vsub.f32 %v1631, %v1702
        %v1713 = vsub.f32 %v1677, %v1705
        %v1714 = vmul.f32 %v1706, 1.442695
        %v1715 = vpow.pop %v1714
        %v1716 = vmul.f32 %v1707, 1.442695
        %v1717 = vpow.pop %v1716
        %v1718 = vmul.f32 %v1708, 1.442695
        %v1719 = vpow.pop %v1718
        %v1720 = vmul.f32 %v1709, 1.442695
        %v1721 = vpow.pop %v1720
        %v1722 = vmul.f32 %v1710, 1.442695
        %v1723 = vpow.pop %v1722
        %v1724 = vmul.f32 %v1711, 1.442695
        %v1725 = vpow.pop %v1724
        %v1726 = vmul.f32 %v1712, 1.442695
        %v1727 = vpow.pop %v1726
        %v1728 = vmul.f32 %v1713, 1.442695
        %v1729 = vpow.pop %v1728
        %v1730 = vsel %vm1313, %v1715, 0.0
        %1731 = vadd.xlane.f32.xlu0 %v1730
        %v1732 = vpop.xlane.xlu0 %1731
        %v1733 = vsel %vm1313, %v1717, 0.0
        %1734 = vadd.xlane.f32.xlu0 %v1733
        %v1735 = vpop.xlane.xlu0 %1734
        %v1736 = vsel %vm1313, %v1719, 0.0
        %1737 = vadd.xlane.f32.xlu0 %v1736
        %v1738 = vpop.xlane.xlu0 %1737
        %v1739 = vsel %vm1313, %v1721, 0.0
        %1740 = vadd.xlane.f32.xlu0 %v1739
        %v1741 = vpop.xlane.xlu0 %1740
        %v1742 = vsel %vm1313, %v1723, 0.0
        %1743 = vadd.xlane.f32.xlu0 %v1742
        %v1744 = vpop.xlane.xlu0 %1743
        %v1745 = vsel %vm1313, %v1725, 0.0
        %1746 = vadd.xlane.f32.xlu0 %v1745
        %v1747 = vpop.xlane.xlu0 %1746
        %v1748 = vsel %vm1313, %v1727, 0.0
        %1749 = vadd.xlane.f32.xlu0 %v1748
        %v1750 = vpop.xlane.xlu0 %1749
        %v1751 = vsel %vm1313, %v1729, 0.0
        %1752 = vadd.xlane.f32.xlu0 %v1751
        %v1753 = vpop.xlane.xlu0 %1752
        %v1754 = vrcp.pop %v1732
        %v1755 = vmul.f32 1.0, %v1754
        %v1756 = vrcp.pop %v1735
        %v1757 = vmul.f32 1.0, %v1756
        %v1758 = vrcp.pop %v1738
        %v1759 = vmul.f32 1.0, %v1758
        %v1760 = vrcp.pop %v1741
        %v1761 = vmul.f32 1.0, %v1760
        %v1762 = vrcp.pop %v1744
        %v1763 = vmul.f32 1.0, %v1762
        %v1764 = vrcp.pop %v1747
        %v1765 = vmul.f32 1.0, %v1764
        %v1766 = vrcp.pop %v1750
        %v1767 = vmul.f32 1.0, %v1766
        %v1768 = vrcp.pop %v1753
        %v1769 = vmul.f32 1.0, %v1768
        %v1770 = vmul.f32 %v1715, %v1755
        %v1771 = vmul.f32 %v1717, %v1757
        %v1772 = vmul.f32 %v1719, %v1759
        %v1773 = vmul.f32 %v1721, %v1761
        %v1774 = vmul.f32 %v1723, %v1763
        %v1775 = vmul.f32 %v1725, %v1765
        %v1776 = vmul.f32 %v1727, %v1767
        %v1777 = vmul.f32 %v1729, %v1769
        %v1778 = vpack.c.bf16 %v1770, %v1770
        %v1779 = vpack.c.bf16 %v1771, %v1771
        %v1780 = vpack.c.bf16 %v1772, %v1772
        %v1781 = vpack.c.bf16 %v1773, %v1773
        %v1782 = vpack.c.bf16 %v1774, %v1774
        %v1783 = vpack.c.bf16 %v1775, %v1775
        %v1784 = vpack.c.bf16 %v1776, %v1776
        %v1785 = vpack.c.bf16 %v1777, %v1777
        %vm1786 = vcmask 60416
        %1787 = vst.msk [vmem:[%s309] sm:$0xf] %vm1786, %v1778
        %1788 = vst.msk [vmem:[%s309 + $0x4] sm:$0xf] %vm1786, %v1779
        %1789 = vst.msk [vmem:[%s309 + $0x8] sm:$0xf] %vm1786, %v1780
        %1790 = vst.msk [vmem:[%s309 + $0xc] sm:$0xf] %vm1786, %v1781
        %1791 = vst.msk [vmem:[%s309 + $0x10] sm:$0xf] %vm1786, %v1782
        %1792 = vst.msk [vmem:[%s309 + $0x14] sm:$0xf] %vm1786, %v1783
        %1793 = vst.msk [vmem:[%s309 + $0x18] sm:$0xf] %vm1786, %v1784
        %1794 = vst.msk [vmem:[%s309 + $0x1c] sm:$0xf] %vm1786, %v1785
        %v1796 = vsel %vm1313, %v1778, 0
        %vm1798 = vcmask 1043456
        %v1800 = vsel %vm1798, %v1305, 0
        %1802 = vmatprep.subr.bf16.mxu0 0
        %1803 = vmatpush1.bf16.msra.mxu0 %v1800
        %1804 = vmatprep.subr.bf16.mxu0 0
        %1805 = vmatpush1.bf16.msra.mxu0 0
        %1806 = vmatprep.subr.bf16.mxu0 0
        %1807 = vmatpush1.bf16.msra.mxu0 0
        %1808 = vmatprep.subr.bf16.mxu0 0
        %1809 = vmatpush1.bf16.msra.mxu0 0
        %1810 = vmatprep.subr.bf16.mxu0 0
        %1811 = vmatpush1.bf16.msra.mxu0 0
        %1812 = vmatprep.subr.bf16.mxu0 0
        %1813 = vmatpush1.bf16.msra.mxu0 0
        %1814 = vmatprep.subr.bf16.mxu0 0
        %1815 = vmatpush1.bf16.msra.mxu0 0
        %1816 = vmatprep.subr.bf16.mxu0 0
        %1817 = vmatpush1.bf16.msra.mxu0 0
        %1818 = vmatprep.subr.bf16.mxu0 0
        %1819 = vmatpush1.bf16.msra.mxu0 0
        %1820 = vmatprep.subr.bf16.mxu0 0
        %1821 = vmatpush1.bf16.msra.mxu0 0
        %1822 = vmatprep.subr.bf16.mxu0 0
        %1823 = vmatpush1.bf16.msra.mxu0 0
        %1824 = vmatprep.subr.bf16.mxu0 0
        %1825 = vmatpush1.bf16.msra.mxu0 0
        %1826 = vmatprep.subr.bf16.mxu0 0
        %1827 = vmatpush1.bf16.msra.mxu0 0
        %1828 = vmatprep.subr.bf16.mxu0 0
        %1829 = vmatpush1.bf16.msra.mxu0 0
        %1830 = vmatprep.subr.bf16.mxu0 0
        %1831 = vmatpush1.bf16.msra.mxu0 0
        %1832 = vmatprep.subr.bf16.mxu0 0
        %1833 = vmatpush1.bf16.msra.mxu0 0
        %1834 = vmatprep.mubr.bf16.mxu0 0
        %1835 = vmatmul.mubr.bf16.gmra.mrb[0].mxu0 %v1796
        %v1836 = vpop.f32.mrb[0].mxu0
        %v1837 = vadd.f32 0.0, %v1836
        %v1838 = vpop.f32.mrb[0].mxu0
        %v1839 = vpop.f32.mrb[0].mxu0
        %v1840 = vpop.f32.mrb[0].mxu0
        %1841 = vdwg.mxu0
        %v1843 = vsel %vm1313, %v1779, 0
        %v1846 = vsel %vm1798, %v1306, 0
        %1848 = vmatprep.subr.bf16.mxu0 0
        %1849 = vmatpush1.bf16.msra.mxu0 %v1846
        %1850 = vmatprep.subr.bf16.mxu0 0
        %1851 = vmatpush1.bf16.msra.mxu0 0
        %1852 = vmatprep.subr.bf16.mxu0 0
        %1853 = vmatpush1.bf16.msra.mxu0 0
        %1854 = vmatprep.subr.bf16.mxu0 0
        %1855 = vmatpush1.bf16.msra.mxu0 0
        %1856 = vmatprep.subr.bf16.mxu0 0
        %1857 = vmatpush1.bf16.msra.mxu0 0
        %1858 = vmatprep.subr.bf16.mxu0 0
        %1859 = vmatpush1.bf16.msra.mxu0 0
        %1860 = vmatprep.subr.bf16.mxu0 0
        %1861 = vmatpush1.bf16.msra.mxu0 0
        %1862 = vmatprep.subr.bf16.mxu0 0
        %1863 = vmatpush1.bf16.msra.mxu0 0
        %1864 = vmatprep.subr.bf16.mxu0 0
        %1865 = vmatpush1.bf16.msra.mxu0 0
        %1866 = vmatprep.subr.bf16.mxu0 0
        %1867 = vmatpush1.bf16.msra.mxu0 0
        %1868 = vmatprep.subr.bf16.mxu0 0
        %1869 = vmatpush1.bf16.msra.mxu0 0
        %1870 = vmatprep.subr.bf16.mxu0 0
        %1871 = vmatpush1.bf16.msra.mxu0 0
        %1872 = vmatprep.subr.bf16.mxu0 0
        %1873 = vmatpush1.bf16.msra.mxu0 0
        %1874 = vmatprep.subr.bf16.mxu0 0
        %1875 = vmatpush1.bf16.msra.mxu0 0
        %1876 = vmatprep.subr.bf16.mxu0 0
        %1877 = vmatpush1.bf16.msra.mxu0 0
        %1878 = vmatprep.subr.bf16.mxu0 0
        %1879 = vmatpush1.bf16.msra.mxu0 0
        %1880 = vmatprep.mubr.bf16.mxu0 0
        %1881 = vmatmul.mubr.bf16.gmra.mrb[0].mxu0 %v1843
        %v1882 = vpop.f32.mrb[0].mxu0
        %v1883 = vadd.f32 0.0, %v1882
        %v1884 = vpop.f32.mrb[0].mxu0
        %v1885 = vpop.f32.mrb[0].mxu0
        %v1886 = vpop.f32.mrb[0].mxu0
        %1887 = vdwg.mxu0
        %v1889 = vsel %vm1313, %v1780, 0
        %v1892 = vsel %vm1798, %v1307, 0
        %1894 = vmatprep.subr.bf16.mxu0 0
        %1895 = vmatpush1.bf16.msra.mxu0 %v1892
        %1896 = vmatprep.subr.bf16.mxu0 0
        %1897 = vmatpush1.bf16.msra.mxu0 0
        %1898 = vmatprep.subr.bf16.mxu0 0
        %1899 = vmatpush1.bf16.msra.mxu0 0
        %1900 = vmatprep.subr.bf16.mxu0 0
        %1901 = vmatpush1.bf16.msra.mxu0 0
        %1902 = vmatprep.subr.bf16.mxu0 0
        %1903 = vmatpush1.bf16.msra.mxu0 0
        %1904 = vmatprep.subr.bf16.mxu0 0
        %1905 = vmatpush1.bf16.msra.mxu0 0
        %1906 = vmatprep.subr.bf16.mxu0 0
        %1907 = vmatpush1.bf16.msra.mxu0 0
        %1908 = vmatprep.subr.bf16.mxu0 0
        %1909 = vmatpush1.bf16.msra.mxu0 0
        %1910 = vmatprep.subr.bf16.mxu0 0
        %1911 = vmatpush1.bf16.msra.mxu0 0
        %1912 = vmatprep.subr.bf16.mxu0 0
        %1913 = vmatpush1.bf16.msra.mxu0 0
        %1914 = vmatprep.subr.bf16.mxu0 0
        %1915 = vmatpush1.bf16.msra.mxu0 0
        %1916 = vmatprep.subr.bf16.mxu0 0
        %1917 = vmatpush1.bf16.msra.mxu0 0
        %1918 = vmatprep.subr.bf16.mxu0 0
        %1919 = vmatpush1.bf16.msra.mxu0 0
        %1920 = vmatprep.subr.bf16.mxu0 0
        %1921 = vmatpush1.bf16.msra.mxu0 0
        %1922 = vmatprep.subr.bf16.mxu0 0
        %1923 = vmatpush1.bf16.msra.mxu0 0
        %1924 = vmatprep.subr.bf16.mxu0 0
        %1925 = vmatpush1.bf16.msra.mxu0 0
        %1926 = vmatprep.mubr.bf16.mxu0 0
        %1927 = vmatmul.mubr.bf16.gmra.mrb[0].mxu0 %v1889
        %v1928 = vpop.f32.mrb[0].mxu0
        %v1929 = vadd.f32 0.0, %v1928
        %v1930 = vpop.f32.mrb[0].mxu0
        %v1931 = vpop.f32.mrb[0].mxu0
        %v1932 = vpop.f32.mrb[0].mxu0
        %1933 = vdwg.mxu0
        %v1935 = vsel %vm1313, %v1781, 0
        %v1938 = vsel %vm1798, %v1308, 0
        %1940 = vmatprep.subr.bf16.mxu0 0
        %1941 = vmatpush1.bf16.msra.mxu0 %v1938
        %1942 = vmatprep.subr.bf16.mxu0 0
        %1943 = vmatpush1.bf16.msra.mxu0 0
        %1944 = vmatprep.subr.bf16.mxu0 0
        %1945 = vmatpush1.bf16.msra.mxu0 0
        %1946 = vmatprep.subr.bf16.mxu0 0
        %1947 = vmatpush1.bf16.msra.mxu0 0
        %1948 = vmatprep.subr.bf16.mxu0 0
        %1949 = vmatpush1.bf16.msra.mxu0 0
        %1950 = vmatprep.subr.bf16.mxu0 0
        %1951 = vmatpush1.bf16.msra.mxu0 0
        %1952 = vmatprep.subr.bf16.mxu0 0
        %1953 = vmatpush1.bf16.msra.mxu0 0
        %1954 = vmatprep.subr.bf16.mxu0 0
        %1955 = vmatpush1.bf16.msra.mxu0 0
        %1956 = vmatprep.subr.bf16.mxu0 0
        %1957 = vmatpush1.bf16.msra.mxu0 0
        %1958 = vmatprep.subr.bf16.mxu0 0
        %1959 = vmatpush1.bf16.msra.mxu0 0
        %1960 = vmatprep.subr.bf16.mxu0 0
        %1961 = vmatpush1.bf16.msra.mxu0 0
        %1962 = vmatprep.subr.bf16.mxu0 0
        %1963 = vmatpush1.bf16.msra.mxu0 0
        %1964 = vmatprep.subr.bf16.mxu0 0
        %1965 = vmatpush1.bf16.msra.mxu0 0
        %1966 = vmatprep.subr.bf16.mxu0 0
        %1967 = vmatpush1.bf16.msra.mxu0 0
        %1968 = vmatprep.subr.bf16.mxu0 0
        %1969 = vmatpush1.bf16.msra.mxu0 0
        %1970 = vmatprep.subr.bf16.mxu0 0
        %1971 = vmatpush1.bf16.msra.mxu0 0
        %1972 = vmatprep.mubr.bf16.mxu0 0
        %1973 = vmatmul.mubr.bf16.gmra.mrb[0].mxu0 %v1935
        %v1974 = vpop.f32.mrb[0].mxu0
        %v1975 = vadd.f32 0.0, %v1974
        %v1976 = vpop.f32.mrb[0].mxu0
        %v1977 = vpop.f32.mrb[0].mxu0
        %v1978 = vpop.f32.mrb[0].mxu0
        %1979 = vdwg.mxu0
        %v1981 = vsel %vm1313, %v1782, 0
        %v1984 = vsel %vm1798, %v1309, 0
        %1986 = vmatprep.subr.bf16.mxu0 0
        %1987 = vmatpush1.bf16.msra.mxu0 %v1984
        %1988 = vmatprep.subr.bf16.mxu0 0
        %1989 = vmatpush1.bf16.msra.mxu0 0
        %1990 = vmatprep.subr.bf16.mxu0 0
        %1991 = vmatpush1.bf16.msra.mxu0 0
        %1992 = vmatprep.subr.bf16.mxu0 0
        %1993 = vmatpush1.bf16.msra.mxu0 0
        %1994 = vmatprep.subr.bf16.mxu0 0
        %1995 = vmatpush1.bf16.msra.mxu0 0
        %1996 = vmatprep.subr.bf16.mxu0 0
        %1997 = vmatpush1.bf16.msra.mxu0 0
        %1998 = vmatprep.subr.bf16.mxu0 0
        %1999 = vmatpush1.bf16.msra.mxu0 0
        %2000 = vmatprep.subr.bf16.mxu0 0
        %2001 = vmatpush1.bf16.msra.mxu0 0
        %2002 = vmatprep.subr.bf16.mxu0 0
        %2003 = vmatpush1.bf16.msra.mxu0 0
        %2004 = vmatprep.subr.bf16.mxu0 0
        %2005 = vmatpush1.bf16.msra.mxu0 0
        %2006 = vmatprep.subr.bf16.mxu0 0
        %2007 = vmatpush1.bf16.msra.mxu0 0
        %2008 = vmatprep.subr.bf16.mxu0 0
        %2009 = vmatpush1.bf16.msra.mxu0 0
        %2010 = vmatprep.subr.bf16.mxu0 0
        %2011 = vmatpush1.bf16.msra.mxu0 0
        %2012 = vmatprep.subr.bf16.mxu0 0
        %2013 = vmatpush1.bf16.msra.mxu0 0
        %2014 = vmatprep.subr.bf16.mxu0 0
        %2015 = vmatpush1.bf16.msra.mxu0 0
        %2016 = vmatprep.subr.bf16.mxu0 0
        %2017 = vmatpush1.bf16.msra.mxu0 0
        %2018 = vmatprep.mubr.bf16.mxu0 0
        %2019 = vmatmul.mubr.bf16.gmra.mrb[0].mxu0 %v1981
        %v2020 = vpop.f32.mrb[0].mxu0
        %v2021 = vadd.f32 0.0, %v2020
        %v2022 = vpop.f32.mrb[0].mxu0
        %v2023 = vpop.f32.mrb[0].mxu0
        %v2024 = vpop.f32.mrb[0].mxu0
        %2025 = vdwg.mxu0
        %v2027 = vsel %vm1313, %v1783, 0
        %v2030 = vsel %vm1798, %v1310, 0
        %2032 = vmatprep.subr.bf16.mxu0 0
        %2033 = vmatpush1.bf16.msra.mxu0 %v2030
        %2034 = vmatprep.subr.bf16.mxu0 0
        %2035 = vmatpush1.bf16.msra.mxu0 0
        %2036 = vmatprep.subr.bf16.mxu0 0
        %2037 = vmatpush1.bf16.msra.mxu0 0
        %2038 = vmatprep.subr.bf16.mxu0 0
        %2039 = vmatpush1.bf16.msra.mxu0 0
        %2040 = vmatprep.subr.bf16.mxu0 0
        %2041 = vmatpush1.bf16.msra.mxu0 0
        %2042 = vmatprep.subr.bf16.mxu0 0
        %2043 = vmatpush1.bf16.msra.mxu0 0
        %2044 = vmatprep.subr.bf16.mxu0 0
        %2045 = vmatpush1.bf16.msra.mxu0 0
        %2046 = vmatprep.subr.bf16.mxu0 0
        %2047 = vmatpush1.bf16.msra.mxu0 0
        %2048 = vmatprep.subr.bf16.mxu0 0
        %2049 = vmatpush1.bf16.msra.mxu0 0
        %2050 = vmatprep.subr.bf16.mxu0 0
        %2051 = vmatpush1.bf16.msra.mxu0 0
        %2052 = vmatprep.subr.bf16.mxu0 0
        %2053 = vmatpush1.bf16.msra.mxu0 0
        %2054 = vmatprep.subr.bf16.mxu0 0
        %2055 = vmatpush1.bf16.msra.mxu0 0
        %2056 = vmatprep.subr.bf16.mxu0 0
        %2057 = vmatpush1.bf16.msra.mxu0 0
        %2058 = vmatprep.subr.bf16.mxu0 0
        %2059 = vmatpush1.bf16.msra.mxu0 0
        %2060 = vmatprep.subr.bf16.mxu0 0
        %2061 = vmatpush1.bf16.msra.mxu0 0
        %2062 = vmatprep.subr.bf16.mxu0 0
        %2063 = vmatpush1.bf16.msra.mxu0 0
        %2064 = vmatprep.mubr.bf16.mxu0 0
        %2065 = vmatmul.mubr.bf16.gmra.mrb[0].mxu0 %v2027
        %v2066 = vpop.f32.mrb[0].mxu0
        %v2067 = vadd.f32 0.0, %v2066
        %v2068 = vpop.f32.mrb[0].mxu0
        %v2069 = vpop.f32.mrb[0].mxu0
        %v2070 = vpop.f32.mrb[0].mxu0
        %2071 = vdwg.mxu0
        %v2073 = vsel %vm1313, %v1784, 0
        %v2076 = vsel %vm1798, %v1311, 0
        %2078 = vmatprep.subr.bf16.mxu0 0
        %2079 = vmatpush1.bf16.msra.mxu0 %v2076
        %2080 = vmatprep.subr.bf16.mxu0 0
        %2081 = vmatpush1.bf16.msra.mxu0 0
        %2082 = vmatprep.subr.bf16.mxu0 0
        %2083 = vmatpush1.bf16.msra.mxu0 0
        %2084 = vmatprep.subr.bf16.mxu0 0
        %2085 = vmatpush1.bf16.msra.mxu0 0
        %2086 = vmatprep.subr.bf16.mxu0 0
        %2087 = vmatpush1.bf16.msra.mxu0 0
        %2088 = vmatprep.subr.bf16.mxu0 0
        %2089 = vmatpush1.bf16.msra.mxu0 0
        %2090 = vmatprep.subr.bf16.mxu0 0
        %2091 = vmatpush1.bf16.msra.mxu0 0
        %2092 = vmatprep.subr.bf16.mxu0 0
        %2093 = vmatpush1.bf16.msra.mxu0 0
        %2094 = vmatprep.subr.bf16.mxu0 0
        %2095 = vmatpush1.bf16.msra.mxu0 0
        %2096 = vmatprep.subr.bf16.mxu0 0
        %2097 = vmatpush1.bf16.msra.mxu0 0
        %2098 = vmatprep.subr.bf16.mxu0 0
        %2099 = vmatpush1.bf16.msra.mxu0 0
        %2100 = vmatprep.subr.bf16.mxu0 0
        %2101 = vmatpush1.bf16.msra.mxu0 0
        %2102 = vmatprep.subr.bf16.mxu0 0
        %2103 = vmatpush1.bf16.msra.mxu0 0
        %2104 = vmatprep.subr.bf16.mxu0 0
        %2105 = vmatpush1.bf16.msra.mxu0 0
        %2106 = vmatprep.subr.bf16.mxu0 0
        %2107 = vmatpush1.bf16.msra.mxu0 0
        %2108 = vmatprep.subr.bf16.mxu0 0
        %2109 = vmatpush1.bf16.msra.mxu0 0
        %2110 = vmatprep.mubr.bf16.mxu0 0
        %2111 = vmatmul.mubr.bf16.gmra.mrb[0].mxu0 %v2073
        %v2112 = vpop.f32.mrb[0].mxu0
        %v2113 = vadd.f32 0.0, %v2112
        %v2114 = vpop.f32.mrb[0].mxu0
        %v2115 = vpop.f32.mrb[0].mxu0
        %v2116 = vpop.f32.mrb[0].mxu0
        %2117 = vdwg.mxu0
        %v2119 = vsel %vm1313, %v1785, 0
        %v2122 = vsel %vm1798, %v1312, 0
        %2124 = vmatprep.subr.bf16.mxu0 0
        %2125 = vmatpush1.bf16.msra.mxu0 %v2122
        %2126 = vmatprep.subr.bf16.mxu0 0
        %2127 = vmatpush1.bf16.msra.mxu0 0
        %2128 = vmatprep.subr.bf16.mxu0 0
        %2129 = vmatpush1.bf16.msra.mxu0 0
        %2130 = vmatprep.subr.bf16.mxu0 0
        %2131 = vmatpush1.bf16.msra.mxu0 0
        %2132 = vmatprep.subr.bf16.mxu0 0
        %2133 = vmatpush1.bf16.msra.mxu0 0
        %2134 = vmatprep.subr.bf16.mxu0 0
        %2135 = vmatpush1.bf16.msra.mxu0 0
        %2136 = vmatprep.subr.bf16.mxu0 0
        %2137 = vmatpush1.bf16.msra.mxu0 0
        %2138 = vmatprep.subr.bf16.mxu0 0
        %2139 = vmatpush1.bf16.msra.mxu0 0
        %2140 = vmatprep.subr.bf16.mxu0 0
        %2141 = vmatpush1.bf16.msra.mxu0 0
        %2142 = vmatprep.subr.bf16.mxu0 0
        %2143 = vmatpush1.bf16.msra.mxu0 0
        %2144 = vmatprep.subr.bf16.mxu0 0
        %2145 = vmatpush1.bf16.msra.mxu0 0
        %2146 = vmatprep.subr.bf16.mxu0 0
        %2147 = vmatpush1.bf16.msra.mxu0 0
        %2148 = vmatprep.subr.bf16.mxu0 0
        %2149 = vmatpush1.bf16.msra.mxu0 0
        %2150 = vmatprep.subr.bf16.mxu0 0
        %2151 = vmatpush1.bf16.msra.mxu0 0
        %2152 = vmatprep.subr.bf16.mxu0 0
        %2153 = vmatpush1.bf16.msra.mxu0 0
        %2154 = vmatprep.subr.bf16.mxu0 0
        %2155 = vmatpush1.bf16.msra.mxu0 0
        %2156 = vmatprep.mubr.bf16.mxu0 0
        %2157 = vmatmul.mubr.bf16.gmra.mrb[0].mxu0 %v2119
        %v2158 = vpop.f32.mrb[0].mxu0
        %v2159 = vadd.f32 0.0, %v2158
        %v2160 = vpop.f32.mrb[0].mxu0
        %v2161 = vpop.f32.mrb[0].mxu0
        %v2162 = vpop.f32.mrb[0].mxu0
        %2163 = vdwg.mxu0
        %v2164 = vcombine.low %v1837, %v1929
        %v2165 = vcombine.high %v1837, %v1929
        %v2167 = vunpack.c.l.s4 1983009808
        %v2168 = vunpack.c.0.s8 %v2167
        %v2169 = vlaneseq
        %v2170 = vshrl.u32 %v2169, 7
        %v2171 = vsub.s32 %v2168, %v2170
        %v2172 = vrot.slane %v2164, %v2171
        %v2174 = vunpack.c.l.s4 1983009808
        %v2175 = vunpack.c.0.s8 %v2174
        %v2176 = vlaneseq
        %v2177 = vshrl.u32 %v2176, 7
        %v2178 = vsub.s32 %v2175, %v2177
        %v2179 = vrot.slane %v2165, %v2178
        %v2180 = vcombine.low %v1883, %v1975
        %v2181 = vcombine.high %v1883, %v1975
        %v2183 = vunpack.c.l.s4 1983009808
        %v2184 = vunpack.c.0.s8 %v2183
        %v2185 = vlaneseq
        %v2186 = vshrl.u32 %v2185, 7
        %v2187 = vsub.s32 %v2184, %v2186
        %v2188 = vrot.slane %v2180, %v2187
        %v2190 = vunpack.c.l.s4 1983009808
        %v2191 = vunpack.c.0.s8 %v2190
        %v2192 = vlaneseq
        %v2193 = vshrl.u32 %v2192, 7
        %v2194 = vsub.s32 %v2191, %v2193
        %v2195 = vrot.slane %v2181, %v2194
        %v2196 = vcombine.low %v2172, %v2188
        %v2197 = vcombine.high %v2172, %v2188
        %v2199 = vunpack.c.l.s4 1934713408
        %v2200 = vunpack.c.0.s8 %v2199
        %v2201 = vlaneseq
        %v2202 = vshrl.u32 %v2201, 7
        %v2203 = vsub.s32 %v2200, %v2202
        %v2204 = vrot.slane %v2196, %v2203
        %v2206 = vunpack.c.l.s4 1934713408
        %v2207 = vunpack.c.0.s8 %v2206
        %v2208 = vlaneseq
        %v2209 = vshrl.u32 %v2208, 7
        %v2210 = vsub.s32 %v2207, %v2209
        %v2211 = vrot.slane %v2197, %v2210
        %v2212 = vcombine.low %v2179, %v2195
        %v2213 = vcombine.high %v2179, %v2195
        %v2215 = vunpack.c.l.s4 1934713408
        %v2216 = vunpack.c.0.s8 %v2215
        %v2217 = vlaneseq
        %v2218 = vshrl.u32 %v2217, 7
        %v2219 = vsub.s32 %v2216, %v2218
        %v2220 = vrot.slane %v2212, %v2219
        %v2222 = vunpack.c.l.s4 1934713408
        %v2223 = vunpack.c.0.s8 %v2222
        %v2224 = vlaneseq
        %v2225 = vshrl.u32 %v2224, 7
        %v2226 = vsub.s32 %v2223, %v2225
        %v2227 = vrot.slane %v2213, %v2226
        %v2228 = vcombine.high %v2204, 0.0
        %v2229 = vcombine.high %v2211, 0.0
        %v2230 = vcombine.high %v2220, 0.0
        %v2231 = vcombine.high %v2227, 0.0
        %v2232 = vcombine.low %v2021, %v2113
        %v2233 = vcombine.high %v2021, %v2113
        %v2235 = vunpack.c.l.s4 1983009808
        %v2236 = vunpack.c.0.s8 %v2235
        %v2237 = vlaneseq
        %v2238 = vshrl.u32 %v2237, 7
        %v2239 = vsub.s32 %v2236, %v2238
        %v2240 = vrot.slane %v2232, %v2239
        %v2242 = vunpack.c.l.s4 1983009808
        %v2243 = vunpack.c.0.s8 %v2242
        %v2244 = vlaneseq
        %v2245 = vshrl.u32 %v2244, 7
        %v2246 = vsub.s32 %v2243, %v2245
        %v2247 = vrot.slane %v2233, %v2246
        %v2248 = vcombine.low %v2067, %v2159
        %v2249 = vcombine.high %v2067, %v2159
        %v2251 = vunpack.c.l.s4 1983009808
        %v2252 = vunpack.c.0.s8 %v2251
        %v2253 = vlaneseq
        %v2254 = vshrl.u32 %v2253, 7
        %v2255 = vsub.s32 %v2252, %v2254
        %v2256 = vrot.slane %v2248, %v2255
        %v2258 = vunpack.c.l.s4 1983009808
        %v2259 = vunpack.c.0.s8 %v2258
        %v2260 = vlaneseq
        %v2261 = vshrl.u32 %v2260, 7
        %v2262 = vsub.s32 %v2259, %v2261
        %v2263 = vrot.slane %v2249, %v2262
        %v2264 = vcombine.low %v2240, %v2256
        %v2265 = vcombine.high %v2240, %v2256
        %v2267 = vunpack.c.l.s4 1934713408
        %v2268 = vunpack.c.0.s8 %v2267
        %v2269 = vlaneseq
        %v2270 = vshrl.u32 %v2269, 7
        %v2271 = vsub.s32 %v2268, %v2270
        %v2272 = vrot.slane %v2264, %v2271
        %v2274 = vunpack.c.l.s4 1934713408
        %v2275 = vunpack.c.0.s8 %v2274
        %v2276 = vlaneseq
        %v2277 = vshrl.u32 %v2276, 7
        %v2278 = vsub.s32 %v2275, %v2277
        %v2279 = vrot.slane %v2265, %v2278
        %v2280 = vcombine.low %v2247, %v2263
        %v2281 = vcombine.high %v2247, %v2263
        %v2283 = vunpack.c.l.s4 1934713408
        %v2284 = vunpack.c.0.s8 %v2283
        %v2285 = vlaneseq
        %v2286 = vshrl.u32 %v2285, 7
        %v2287 = vsub.s32 %v2284, %v2286
        %v2288 = vrot.slane %v2280, %v2287
        %v2290 = vunpack.c.l.s4 1934713408
        %v2291 = vunpack.c.0.s8 %v2290
        %v2292 = vlaneseq
        %v2293 = vshrl.u32 %v2292, 7
        %v2294 = vsub.s32 %v2291, %v2293
        %v2295 = vrot.slane %v2281, %v2294
        %v2296 = vcombine.high %v2272, 0.0
        %v2297 = vcombine.high %v2279, 0.0
        %v2298 = vcombine.high %v2288, 0.0
        %v2299 = vcombine.high %v2295, 0.0
        %v2300 = vcombine.low %v2204, %v2211
        %v2302 = vunpack.c.l.s4 1983009808
        %v2303 = vunpack.c.0.s8 %v2302
        %v2304 = vlaneseq
        %v2305 = vshrl.u32 %v2304, 7
        %v2306 = vsub.s32 %v2303, %v2305
        %v2307 = vrot.slane %v2300, %v2306
        %v2308 = vcombine.low %v2228, %v2229
        %v2310 = vunpack.c.l.s4 1983009808
        %v2311 = vunpack.c.0.s8 %v2310
        %v2312 = vlaneseq
        %v2313 = vshrl.u32 %v2312, 7
        %v2314 = vsub.s32 %v2311, %v2313
        %v2315 = vrot.slane %v2308, %v2314
        %v2316 = vcombine.low %v2220, %v2227
        %v2318 = vunpack.c.l.s4 1983009808
        %v2319 = vunpack.c.0.s8 %v2318
        %v2320 = vlaneseq
        %v2321 = vshrl.u32 %v2320, 7
        %v2322 = vsub.s32 %v2319, %v2321
        %v2323 = vrot.slane %v2316, %v2322
        %v2324 = vcombine.low %v2230, %v2231
        %v2326 = vunpack.c.l.s4 1983009808
        %v2327 = vunpack.c.0.s8 %v2326
        %v2328 = vlaneseq
        %v2329 = vshrl.u32 %v2328, 7
        %v2330 = vsub.s32 %v2327, %v2329
        %v2331 = vrot.slane %v2324, %v2330
        %v2332 = vcombine.low %v2307, %v2315
        %v2333 = vcombine.high %v2307, %v2315
        %v2335 = vunpack.c.l.s4 1934713408
        %v2336 = vunpack.c.0.s8 %v2335
        %v2337 = vlaneseq
        %v2338 = vshrl.u32 %v2337, 7
        %v2339 = vsub.s32 %v2336, %v2338
        %v2340 = vrot.slane %v2332, %v2339
        %v2342 = vunpack.c.l.s4 1934713408
        %v2343 = vunpack.c.0.s8 %v2342
        %v2344 = vlaneseq
        %v2345 = vshrl.u32 %v2344, 7
        %v2346 = vsub.s32 %v2343, %v2345
        %v2347 = vrot.slane %v2333, %v2346
        %v2348 = vcombine.low %v2323, %v2331
        %v2349 = vcombine.high %v2323, %v2331
        %v2351 = vunpack.c.l.s4 1934713408
        %v2352 = vunpack.c.0.s8 %v2351
        %v2353 = vlaneseq
        %v2354 = vshrl.u32 %v2353, 7
        %v2355 = vsub.s32 %v2352, %v2354
        %v2356 = vrot.slane %v2348, %v2355
        %v2358 = vunpack.c.l.s4 1934713408
        %v2359 = vunpack.c.0.s8 %v2358
        %v2360 = vlaneseq
        %v2361 = vshrl.u32 %v2360, 7
        %v2362 = vsub.s32 %v2359, %v2361
        %v2363 = vrot.slane %v2349, %v2362
        %v2364 = vcombine.low %v2340, %v2356
        %v2365 = vcombine.high %v2340, %v2356
        %v2366 = vcombine.low %v2347, %v2363
        %v2367 = vcombine.high %v2347, %v2363
        %v2368 = vcombine.low %v2272, %v2279
        %v2370 = vunpack.c.l.s4 1983009808
        %v2371 = vunpack.c.0.s8 %v2370
        %v2372 = vlaneseq
        %v2373 = vshrl.u32 %v2372, 7
        %v2374 = vsub.s32 %v2371, %v2373
        %v2375 = vrot.slane %v2368, %v2374
        %v2376 = vcombine.low %v2296, %v2297
        %v2378 = vunpack.c.l.s4 1983009808
        %v2379 = vunpack.c.0.s8 %v2378
        %v2380 = vlaneseq
        %v2381 = vshrl.u32 %v2380, 7
        %v2382 = vsub.s32 %v2379, %v2381
        %v2383 = vrot.slane %v2376, %v2382
        %v2384 = vcombine.low %v2288, %v2295
        %v2386 = vunpack.c.l.s4 1983009808
        %v2387 = vunpack.c.0.s8 %v2386
        %v2388 = vlaneseq
        %v2389 = vshrl.u32 %v2388, 7
        %v2390 = vsub.s32 %v2387, %v2389
        %v2391 = vrot.slane %v2384, %v2390
        %v2392 = vcombine.low %v2298, %v2299
        %v2394 = vunpack.c.l.s4 1983009808
        %v2395 = vunpack.c.0.s8 %v2394
        %v2396 = vlaneseq
        %v2397 = vshrl.u32 %v2396, 7
        %v2398 = vsub.s32 %v2395, %v2397
        %v2399 = vrot.slane %v2392, %v2398
        %v2400 = vcombine.low %v2375, %v2383
        %v2401 = vcombine.high %v2375, %v2383
        %v2403 = vunpack.c.l.s4 1934713408
        %v2404 = vunpack.c.0.s8 %v2403
        %v2405 = vlaneseq
        %v2406 = vshrl.u32 %v2405, 7
        %v2407 = vsub.s32 %v2404, %v2406
        %v2408 = vrot.slane %v2400, %v2407
        %v2410 = vunpack.c.l.s4 1934713408
        %v2411 = vunpack.c.0.s8 %v2410
        %v2412 = vlaneseq
        %v2413 = vshrl.u32 %v2412, 7
        %v2414 = vsub.s32 %v2411, %v2413
        %v2415 = vrot.slane %v2401, %v2414
        %v2416 = vcombine.low %v2391, %v2399
        %v2417 = vcombine.high %v2391, %v2399
        %v2419 = vunpack.c.l.s4 1934713408
        %v2420 = vunpack.c.0.s8 %v2419
        %v2421 = vlaneseq
        %v2422 = vshrl.u32 %v2421, 7
        %v2423 = vsub.s32 %v2420, %v2422
        %v2424 = vrot.slane %v2416, %v2423
        %v2426 = vunpack.c.l.s4 1934713408
        %v2427 = vunpack.c.0.s8 %v2426
        %v2428 = vlaneseq
        %v2429 = vshrl.u32 %v2428, 7
        %v2430 = vsub.s32 %v2427, %v2429
        %v2431 = vrot.slane %v2417, %v2430
        %v2432 = vcombine.low %v2408, %v2424
        %v2433 = vcombine.high %v2408, %v2424
        %v2434 = vcombine.low %v2415, %v2431
        %v2435 = vcombine.high %v2415, %v2431
        %2438 = vrot.lane.b32.xlu0 %v2365, 8
        %v2439 = vpop.permute.xlu0 %2438
        %2440 = vrot.lane.b32.xlu0 %v2433, 8
        %v2441 = vpop.permute.xlu0 %2440
        %2446 = vrot.lane.b32.xlu0 %v2366, 16
        %v2447 = vpop.permute.xlu0 %2446
        %2448 = vrot.lane.b32.xlu0 %v2434, 16
        %v2449 = vpop.permute.xlu0 %2448
        %2454 = vrot.lane.b32.xlu0 %v2367, 24
        %v2455 = vpop.permute.xlu0 %2454
        %2456 = vrot.lane.b32.xlu0 %v2435, 24
        %v2457 = vpop.permute.xlu0 %2456
        %v2460 = vsel %vm1313, %v2364, %v2439
        %v2461 = vsel %vm1313, %v2432, %v2441
        %vm2462 = vcmask 130048
        %v2463 = vsel %vm2462, %v2460, %v2447
        %v2464 = vsel %vm2462, %v2461, %v2449
        %vm2465 = vcmask 195584
        %v2466 = vsel %vm2465, %v2463, %v2455
        %v2467 = vsel %vm2465, %v2464, %v2457
        %v2468 = vpack.c.bf16 %v2467, %v2466
        %v2469 = vld [vmem:[#allocation7] sm:$0xf]
        %v2470 = vld [vmem:[#allocation7 + $0x4] sm:$0xf]
        %v2471 = vld [vmem:[#allocation7 + $0x8] sm:$0xf]
        %v2472 = vld [vmem:[#allocation7 + $0xc] sm:$0xf]
        %v2473 = vld [vmem:[%s4] sm:$0x1]
        %v2475 = vlaneseq
        %v2476 = vshrl.u32 %v2475, 7
        %v2477 = vsub.s32 0, %v2476
        %v2478 = vrot.slane %v2473, %v2477
        %v2484 = vunpack.c.l.b16 %v2469
        %v2485 = vunpack.c.l.b16 %v2470
        %v2486 = vunpack.c.l.b16 %v2471
        %v2487 = vunpack.c.l.b16 %v2472
        %v2488 = vpack.c.b16 %v2485, %v2484
        %v2489 = vpack.c.b16 %v2487, %v2486
        %v2493 = vsel %vm344, %v2468, 0
        %2495 = vmatprep.subr.bf16.mxu0 0
        %2496 = vmatpush1.bf16.msra.mxu0 %v2488
        %2497 = vmatprep.subr.bf16.mxu0 0
        %2498 = vmatpush1.bf16.msra.mxu0 %v2489
        %2499 = vmatprep.subr.bf16.mxu0 0
        %2500 = vmatpush1.bf16.msra.mxu0 0
        %2501 = vmatprep.subr.bf16.mxu0 0
        %2502 = vmatpush1.bf16.msra.mxu0 0
        %2503 = vmatprep.subr.bf16.mxu0 0
        %2504 = vmatpush1.bf16.msra.mxu0 0
        %2505 = vmatprep.subr.bf16.mxu0 0
        %2506 = vmatpush1.bf16.msra.mxu0 0
        %2507 = vmatprep.subr.bf16.mxu0 0
        %2508 = vmatpush1.bf16.msra.mxu0 0
        %2509 = vmatprep.subr.bf16.mxu0 0
        %2510 = vmatpush1.bf16.msra.mxu0 0
        %2511 = vmatprep.subr.bf16.mxu0 0
        %2512 = vmatpush1.bf16.msra.mxu0 0
        %2513 = vmatprep.subr.bf16.mxu0 0
        %2514 = vmatpush1.bf16.msra.mxu0 0
        %2515 = vmatprep.subr.bf16.mxu0 0
        %2516 = vmatpush1.bf16.msra.mxu0 0
        %2517 = vmatprep.subr.bf16.mxu0 0
        %2518 = vmatpush1.bf16.msra.mxu0 0
        %2519 = vmatprep.subr.bf16.mxu0 0
        %2520 = vmatpush1.bf16.msra.mxu0 0
        %2521 = vmatprep.subr.bf16.mxu0 0
        %2522 = vmatpush1.bf16.msra.mxu0 0
        %2523 = vmatprep.subr.bf16.mxu0 0
        %2524 = vmatpush1.bf16.msra.mxu0 0
        %2525 = vmatprep.subr.bf16.mxu0 0
        %2526 = vmatpush1.bf16.msra.mxu0 0
        %2527 = vmatprep.mubr.bf16.mxu0 0
        %2528 = vmatmul.mubr.bf16.gmra.mrb[0].mxu0 %v2493
        %v2529 = vpop.f32.mrb[0].mxu0
        %v2530 = vadd.f32 %v2478, %v2529
        %v2531 = vpop.f32.mrb[0].mxu0
        %v2532 = vpop.f32.mrb[0].mxu0
        %v2533 = vadd.f32 %v2478, %v2532
        %v2534 = vpop.f32.mrb[0].mxu0
        %2535 = vdwg.mxu0
        %2536 = vst.msk [vmem:[%s302] sm:$0xff] %vm344, %v2530
        %2537 = vst.msk [vmem:[%s302 + $0x8] sm:$0xff] %vm344, %v2533
        %s2538 = sand.u32 %s146, 1
        %s2539 = scalar_lea.sflag [#allocation4], %s2538
        %s2540 = sand.u32 %s146, 1
        %s2541 = smul.addr %s2540, 16
        %s2542 = scalar_lea.vmem [#allocation8], %s2541
        %s2543 = sand.u32 %s172, 1
        %s2544 = scalar_lea.sflag [#allocation10], %s2543
        %s2545 = sand.u32 %s172, 1
        %s2546 = smul.addr %s2545, 32
        %s2547 = scalar_lea.vmem [#allocation9], %s2546
        // Predicated region
        $region53: #{tpu_custom_call.1} parent=39 // pred_check
          %p2548 = pneg %p156
        $region54: #{tpu_custom_call.1} parent=39 // pred_check_branch
          %2550 = sbr.rel (%p2548) target = $region56
        $region55: #{tpu_custom_call.1} parent=39 // pred_region
          %s2551 = smul.u32 2, %s28
          %s2553 = ssub.s32 256, 256
          %2554 = vsyncadd %s2539, %s2553
          %s2555 = smul.addr %s2551, 128
          %s2556 = scalar_lea.hbm %s5, %s2555
          %s2557 = sshll.u32 %s2542, 4
          %s2558 = int_to_ptr.vmem [resolvable:$true] %s2557
          %2563 = dma.vmem_to_hbm [thread:$0]  %s2558, 256, %s2556, %s2539, 128, 128, 8
        $region56: #{tpu_custom_call.1} parent=39 // pred_fallthru
          _
        // Predicated region
        $region57: #{tpu_custom_call.1} parent=39 // pred_check
          %p2564 = pneg %p182
        $region58: #{tpu_custom_call.1} parent=39 // pred_check_branch
          %2566 = sbr.rel (%p2564) target = $region60
        $region59: #{tpu_custom_call.1} parent=39 // pred_region
          %s2567 = smul.u32 2, %s28
          %s2569 = ssub.s32 512, 512
          %2570 = vsyncadd %s2544, %s2569
          %s2571 = smul.addr %s2567, 4
          %s2572 = smul.addr %s2571, 64
          %s2573 = scalar_lea.hbm %s6, %s2572
          %s2574 = sshll.u32 %s2547, 4
          %s2575 = int_to_ptr.vmem [resolvable:$true] %s2574
          %2580 = dma.vmem_to_hbm [thread:$0]  %s2575, 512, %s2573, %s2544, 64, 64, 4
        $region60: #{tpu_custom_call.1} parent=39 // pred_fallthru
          _
      $region40: #{tpu_custom_call.1} parent=5 // pred_fallthru
        _
      %p2581 = scmp.le.s32.totalorder 2, %s23
      // Predicated region
      $region61: #{tpu_custom_call.1} parent=5 // pred_check
        %p2582 = pneg %p2581
      $region62: #{tpu_custom_call.1} parent=5 // pred_check_branch
        %2584 = sbr.rel (%p2582) target = $region64
      $region63: #{tpu_custom_call.1} parent=5 // pred_region
        %s2585 = ssub.s32 %s23, 2
        // Predicated region
        $region65: #{tpu_custom_call.1} parent=63 // pred_check
          %p2586 = pneg %p162
        $region66: #{tpu_custom_call.1} parent=63 // pred_check_branch
          %2588 = sbr.rel (%p2586) target = $region68
        $region67: #{tpu_custom_call.1} parent=63 // pred_region
          %s2589 = sand.u32 %s147, 1
          %s2590 = scalar_lea.sflag [#allocation4], %s2589
          %s2591 = sand.u32 %s147, 1
          %s2592 = smul.addr %s2591, 16
          %s2593 = scalar_lea.vmem [#allocation8], %s2592
          %2594 = dma.done %s2590, 256
        $region68: #{tpu_custom_call.1} parent=63 // pred_fallthru
          _
        // Predicated region
        $region69: #{tpu_custom_call.1} parent=63 // pred_check
          %p2595 = pneg %p188
        $region70: #{tpu_custom_call.1} parent=63 // pred_check_branch
          %2597 = sbr.rel (%p2595) target = $region72
        $region71: #{tpu_custom_call.1} parent=63 // pred_region
          %s2598 = sand.u32 %s173, 1
          %s2599 = scalar_lea.sflag [#allocation10], %s2598
          %s2600 = sand.u32 %s173, 1
          %s2601 = smul.addr %s2600, 32
          %s2602 = scalar_lea.vmem [#allocation9], %s2601
          %2603 = dma.done %s2599, 512
        $region72: #{tpu_custom_call.1} parent=63 // pred_fallthru
          _
      $region64: #{tpu_custom_call.1} parent=5 // pred_fallthru
        _
    $region6: #{tpu_custom_call.1} parent=1 // loop_footer
      %s27 = sadd.s32 1, %s23
    $region7: #{tpu_custom_call.1} parent=1 // loop_footer_branch
      %22 = sbr.rel target = $region3
    $region8: #{tpu_custom_call.1} parent=1 // loop_exit
      _
    %2604 = vsyncpa [#allocation3], 1
    %s2605 = scalar_lea.sflag [#allocation3], 1
    %2606 = vsyncpa %s2605, 1
    %2607 = vsyncpa [#allocation6], 1
    %2608 = vsyncpa [#allocation4], 1
    %s2609 = scalar_lea.sflag [#allocation4], 1
    %2610 = vsyncpa %s2609, 1
    %2611 = vsyncpa [#allocation10], 1
    %s2612 = scalar_lea.sflag [#allocation10], 1
    %2613 = vsyncpa %s2612, 1

</llo_original>
